<compile_context>
chip_gen: v7x
topology: tpu7x:2x2x1
jax: 0.10.0
libtpu: 0.0.40
codegen_flags: <defaults>
</compile_context>

<pallas_src>
import functools

import jax
import jax.numpy as jnp
import numpy as np
from jax import lax
from jax.experimental import pallas as pl
from jax.experimental.pallas import tpu as pltpu


# ------------------- GroupNorm stats -> per-channel (scale, shift) -------------------
def _gn_stats_kernel(x_ref, gamma_ref, beta_ref, m_ref, scale_ref, shift_ref,
                     s_ref, *, eps, count):
    r = pl.program_id(1)

    @pl.when(r == 0)
    def _():
        s_ref[...] = jnp.zeros_like(s_ref)

    x = x_ref[0]                                    # (TH, W, C) f32
    x2d = x.reshape(-1, x.shape[-1])                # (TH*W, C) -- W % 8 == 0 => clean reshape
    s_ref[0:1, :] += jnp.sum(x2d, axis=0, keepdims=True)
    s_ref[1:2, :] += jnp.sum(x2d * x2d, axis=0, keepdims=True)

    @pl.when(r == pl.num_programs(1) - 1)
    def _():
        m = m_ref[...]                              # (C, G) one-hot group membership
        sg = jnp.dot(s_ref[...], m,
                     preferred_element_type=jnp.float32) / count     # (2, G)
        mean_g = sg[0:1, :]
        var_g = sg[1:2, :] - mean_g * mean_g
        inv_g = lax.rsqrt(var_g + eps)
        per_c = jnp.dot(jnp.concatenate([mean_g, inv_g], axis=0), m.T,
                        preferred_element_type=jnp.float32)          # (2, C)
        scale = per_c[1:2, :] * gamma_ref[...]      # (1, C)
        scale_ref[0] = scale
        shift_ref[0] = beta_ref[...] - per_c[0:1, :] * scale


def gn_scale_shift(x_nhwc, gamma, beta, membership, *, num_groups, block_h, eps=1e-5):
    N, H, W, C = x_nhwc.shape
    R = H // block_h
    cpg = C // num_groups
    kernel = functools.partial(_gn_stats_kernel, eps=eps, count=float(H * W * cpg))
    return pl.pallas_call(
        kernel,
        out_shape=(jax.ShapeDtypeStruct((N, 1, C), jnp.float32),
                   jax.ShapeDtypeStruct((N, 1, C), jnp.float32)),
        grid_spec=pltpu.PrefetchScalarGridSpec(
            num_scalar_prefetch=0,
            grid=(N, R),
            in_specs=[
                pl.BlockSpec((1, block_h, W, C), lambda n, r: (n, r, 0, 0)),
                pl.BlockSpec((1, C), lambda n, r: (0, 0)),
                pl.BlockSpec((1, C), lambda n, r: (0, 0)),
                pl.BlockSpec((C, num_groups), lambda n, r: (0, 0)),
            ],
            out_specs=[
                pl.BlockSpec((1, 1, C), lambda n, r: (n, 0, 0)),
                pl.BlockSpec((1, 1, C), lambda n, r: (n, 0, 0)),
            ],
            scratch_shapes=[pltpu.VMEM((2, C), jnp.float32)],
        ),
        compiler_params=pltpu.CompilerParams(
            dimension_semantics=("parallel", "arbitrary")),
    )(x_nhwc, gamma, beta, membership)


# ------------------- fused GroupNorm-affine + SiLU + 3x3 conv (pad=1) -------------------
def _gn_silu_conv_kernel(x_mid_ref, x_up_ref, x_dn_ref, scale_ref, shift_ref,
                         w_ref, b_ref, o_ref, hbuf_ref, acc_ref, *,
                         TH, H, W, Wp, C, Cout):
    r = pl.program_id(1)

    # ---- assemble (TH+2, W, C) rows: 1-row top halo, TH center rows, 1-row bottom halo ----
    xt = jnp.concatenate([x_up_ref[0], x_mid_ref[0], x_dn_ref[0]], axis=0)

    # ---- fused GroupNorm affine + SiLU (per-channel scale/shift precomputed) ----
    y = xt * scale_ref[...] + shift_ref[...]
    h = y * jax.nn.sigmoid(y)

    # rows outside the image must be zero *after* the activation (this IS the conv zero pad)
    gi = r * TH - 1 + lax.broadcasted_iota(jnp.int32, (TH + 2, 1, 1), 0)
    h = jnp.where(jnp.logical_and(gi >= 0, gi < H), h, 0.0)

    # ---- stage into padded VMEM scratch: col 0 = left pad, [1, W+1) = data, rest = zero ----
    hbuf_ref[0:TH + 2, 1:W + 1, :] = h
    hbuf_ref[0:TH + 2, 0:1, :] = jnp.zeros((TH + 2, 1, C), jnp.float32)
    hbuf_ref[0:TH + 2, W + 1:Wp, :] = jnp.zeros((TH + 2, Wp - W - 1, C), jnp.float32)
    # (row TH+2 of the scratch is never read for valid output columns)

    hb = hbuf_ref[...].reshape((TH + 3) * Wp, C)   # Wp % 8 == 0 => layout-clean flatten
    span = (TH + 2) * Wp

    # ---- 3x3 conv: 9 MXU matmuls, bf16 operands, f32 accumulation in VMEM scratch ----
    acc_ref[...] = jnp.zeros_like(acc_ref)
    for kx in range(3):
        # the column shift is folded into a flat row offset (hoisted once per kx)
        hs = hb[kx:kx + span, :].astype(jnp.bfloat16)
        for ky in range(3):
            lhs = hs[ky * Wp:ky * Wp + TH * Wp, :]      # 8-aligned row window
            acc_ref[...] += jnp.dot(lhs, w_ref[ky * 3 + kx],
                                    preferred_element_type=jnp.float32)

    out = acc_ref[...].reshape(TH, Wp, Cout)[:, 0:W, :] + b_ref[...]
    o_ref[0] = out


def gn_silu_conv3x3(x_nhwc, scale, shift, w_taps, bias, *, block_h):
    N, H, W, C = x_nhwc.shape
    Cout = w_taps.shape[-1]
    TH = block_h
    R = H // TH
    Wp = ((W + 2 + 7) // 8) * 8        # padded width (>= W+2), multiple of 8

    kernel = functools.partial(_gn_silu_conv_kernel,
                               TH=TH, H=H, W=W, Wp=Wp, C=C, Cout=Cout)
    return pl.pallas_call(
        kernel,
        out_shape=jax.ShapeDtypeStruct((N, H, W, Cout), jnp.float32),
        grid_spec=pltpu.PrefetchScalarGridSpec(
            num_scalar_prefetch=0,
            grid=(N, R),
            in_specs=[
                # center rows of the tile
                pl.BlockSpec((1, TH, W, C), lambda n, r: (n, r, 0, 0)),
                # single-row halos; index clamped at the image boundary (masked in-kernel)
                pl.BlockSpec((1, 1, W, C),
                             lambda n, r: (n, jnp.maximum(r * TH - 1, 0), 0, 0)),
                pl.BlockSpec((1, 1, W, C),
                             lambda n, r: (n, jnp.minimum(r * TH + TH, H - 1), 0, 0)),
                pl.BlockSpec((1, 1, C), lambda n, r: (n, 0, 0)),      # GN scale
                pl.BlockSpec((1, 1, C), lambda n, r: (n, 0, 0)),      # GN shift
                pl.BlockSpec((9, C, Cout), lambda n, r: (0, 0, 0)),   # conv taps (resident)
                pl.BlockSpec((1, Cout), lambda n, r: (0, 0)),         # conv bias
            ],
            out_specs=pl.BlockSpec((1, TH, W, Cout), lambda n, r: (n, r, 0, 0)),
            scratch_shapes=[
                pltpu.VMEM((TH + 3, Wp, C), jnp.float32),   # padded, normalized tile
                pltpu.VMEM((TH * Wp, Cout), jnp.float32),   # f32 conv accumulator
            ],
        ),
        compiler_params=pltpu.CompilerParams(
            dimension_semantics=("parallel", "parallel"),
            vmem_limit_bytes=64 * 1024 * 1024),
    )(x_nhwc, x_nhwc, x_nhwc, scale, shift, w_taps, bias)


# ------------------------- MidBlock forward -------------------------
def midblock_forward(x_nchw, params, *, num_groups=32, block_h=8):
    N, C, H, W = x_nchw.shape
    bh = min(block_h, H)
    while H % bh:                      # static: pick a row-tile that divides H
        bh -= 1

    x = jnp.transpose(x_nchw, (0, 2, 3, 1))          # NCHW -> NHWC (module-facing glue)
    mem = params["membership"]

    sc1, sh1 = gn_scale_shift(x, params["g1"], params["b1"], mem,
                              num_groups=num_groups, block_h=bh)
    h = gn_silu_conv3x3(x, sc1, sh1, params["w1"], params["cb1"], block_h=bh)

    sc2, sh2 = gn_scale_shift(h, params["g2"], params["b2"], mem,
                              num_groups=num_groups, block_h=bh)
    h = gn_silu_conv3x3(h, sc2, sh2, params["w2"], params["cb2"], block_h=bh)

    return jnp.transpose(h, (0, 3, 1, 2))            # NHWC -> NCHW


# ------------------------- pure-JAX reference -------------------------
def _ref_groupnorm_silu(x_nchw, gamma, beta, num_groups, eps=1e-5):
    N, C, H, W = x_nchw.shape
    xg = x_nchw.reshape(N, num_groups, (C // num_groups) * H * W)
    mean = jnp.mean(xg, axis=-1, keepdims=True)
    var = jnp.var(xg, axis=-1, keepdims=True)
    xn = ((xg - mean) / jnp.sqrt(var + eps)).reshape(N, C, H, W)
    y = xn * gamma.reshape(1, C, 1, 1) + beta.reshape(1, C, 1, 1)
    return y * jax.nn.sigmoid(y)


def _ref_conv(x_nchw, w_oihw, b):
    y = lax.conv_general_dilated(
        x_nchw, w_oihw, window_strides=(1, 1), padding=((1, 1), (1, 1)),
        dimension_numbers=("NCHW", "OIHW", "NCHW"))
    return y + b.reshape(1, -1, 1, 1)


def midblock_reference(x_nchw, raw, num_groups=32):
    h = _ref_groupnorm_silu(x_nchw, raw["g1"], raw["b1"], num_groups)
    h = _ref_conv(h, raw["w1_oihw"], raw["cb1"])
    h = _ref_groupnorm_silu(h, raw["g2"], raw["b2"], num_groups)
    h = _ref_conv(h, raw["w2_oihw"], raw["cb2"])
    return h


# ------------------------- param init -------------------------
def init_params(key, C, num_groups=32):
    ks = jax.random.split(key, 8)
    fan_in = C * 9
    bound = 1.0 / np.sqrt(fan_in)

    def conv_w(k):
        return jax.random.uniform(k, (C, C, 3, 3), jnp.float32, -bound, bound)

    def conv_b(k):
        return jax.random.uniform(k, (C,), jnp.float32, -bound, bound)

    raw = {
        "g1": jax.random.normal(ks[0], (C,), jnp.float32) * 0.1 + 1.0,
        "b1": jax.random.normal(ks[1], (C,), jnp.float32) * 0.1,
        "g2": jax.random.normal(ks[2], (C,), jnp.float32) * 0.1 + 1.0,
        "b2": jax.random.normal(ks[3], (C,), jnp.float32) * 0.1,
        "w1_oihw": conv_w(ks[4]),
        "cb1": conv_b(ks[5]),
        "w2_oihw": conv_w(ks[6]),
        "cb2": conv_b(ks[7]),
    }

    # one-hot (C, G) membership matrix: group stats reduce/broadcast on the MXU
    cpg = C // num_groups
    membership = jnp.zeros((C, num_groups), jnp.float32)
    membership = membership.at[jnp.arange(C), jnp.arange(C) // cpg].set(1.0)

    def taps(w_oihw):  # (O, I, 3, 3) -> (9, I, O), tap index k = ky*3 + kx
        return jnp.transpose(w_oihw, (2, 3, 1, 0)).reshape(9, C, C)

    params = {
        "membership": membership,
        "g1": raw["g1"].reshape(1, C), "b1": raw["b1"].reshape(1, C),
        "g2": raw["g2"].reshape(1, C), "b2": raw["b2"].reshape(1, C),
        # bf16 MXU operands (accumulation stays f32 inside the kernel)
        "w1": taps(raw["w1_oihw"]).astype(jnp.bfloat16), "cb1": raw["cb1"].reshape(1, C),
        "w2": taps(raw["w2_oihw"]).astype(jnp.bfloat16), "cb2": raw["cb2"].reshape(1, C),
    }
    return params, raw


if __name__ == "__main__":
    N, C, H, W = 2, 64, 16, 16   # C must be divisible by num_groups=32
    key = jax.random.PRNGKey(0)
    kx_, kp = jax.random.split(key)
    x = jax.random.normal(kx_, (N, C, H, W), jnp.float32)

    params, raw = init_params(kp, C, num_groups=32)

    fwd = jax.jit(functools.partial(midblock_forward, num_groups=32, block_h=8))
    out = jax.block_until_ready(fwd(x, params))

    ref = jax.block_until_ready(midblock_reference(x, raw, num_groups=32))
    # bf16 matmul operands (f32 accumulation) => slightly relaxed tolerance vs f32 reference
    np.testing.assert_allclose(np.asarray(out), np.asarray(ref), rtol=1e-2, atol=1e-2)

    print("KERNEL_OK")
</pallas_src>

<mosaic_0001>
module attributes {stable_mosaic.version = 11 : i64} {
  func.func @_gn_stats_kernel(%arg0: i32, %arg1: i32, %arg2: memref<1x8x16x64xf32, #tpu.memory_space<vmem>>, %arg3: memref<1x64xf32, #tpu.memory_space<vmem>>, %arg4: memref<1x64xf32, #tpu.memory_space<vmem>>, %arg5: memref<64x32xf32, #tpu.memory_space<vmem>>, %arg6: memref<1x1x64xf32, #tpu.memory_space<vmem>>, %arg7: memref<1x1x64xf32, #tpu.memory_space<vmem>>, %arg8: memref<2x64xf32, #tpu.memory_space<vmem>>) attributes {dimension_semantics = [#tpu.dimension_semantics<parallel>, #tpu.dimension_semantics<arbitrary>], iteration_bounds = array<i64: 2, 2>, scalar_prefetch = 0 : i64, scratch_operands = 1 : i64, tpu.core_type = #tpu.core_type<tc>, window_params = [{transform_indices = @transform_0, window_bounds = array<i64: 1, 8, 16, 64>}, {pipeline_mode = #tpu.pipeline_mode<synchronous>, transform_indices = @transform_1, window_bounds = array<i64: 1, 64>}, {pipeline_mode = #tpu.pipeline_mode<synchronous>, transform_indices = @transform_2, window_bounds = array<i64: 1, 64>}, {pipeline_mode = #tpu.pipeline_mode<synchronous>, transform_indices = @transform_3, window_bounds = array<i64: 64, 32>}, {transform_indices = @transform_4, window_bounds = array<i64: 1, 1, 64>}, {transform_indices = @transform_5, window_bounds = array<i64: 1, 1, 64>}]} {
    %c0_i32 = arith.constant 0 : i32
    %0 = arith.cmpi eq, %arg1, %c0_i32 : i32
    %1 = arith.extui %0 : i1 to i32
    %c0_i32_0 = arith.constant 0 : i32
    %2 = arith.cmpi ne, %1, %c0_i32_0 : i32
    scf.if %2 {
      %cst_13 = arith.constant 0.000000e+00 : f32
      %20 = vector.broadcast %cst_13 : f32 to vector<2x64xf32>
      %c0_14 = arith.constant 0 : index
      %c0_15 = arith.constant 0 : index
      %21 = vector.load %arg8[%c0_14, %c0_15] : memref<2x64xf32, #tpu.memory_space<vmem>>, vector<2x64xf32>
      tpu.vector_store %arg8[%c0_14, %c0_15], %20 {strides = array<i32>} : memref<2x64xf32, #tpu.memory_space<vmem>>, vector<2x64xf32>,
    } else {
    }
    %c0 = arith.constant 0 : index
    %c0_1 = arith.constant 0 : index
    %c0_2 = arith.constant 0 : index
    %c0_3 = arith.constant 0 : index
    %3 = vector.load %arg2[%c0, %c0_1, %c0_2, %c0_3] : memref<1x8x16x64xf32, #tpu.memory_space<vmem>>, vector<1x8x16x64xf32>
    %4 = vector.shape_cast %3 : vector<1x8x16x64xf32> to vector<8x16x64xf32>
    %5 = vector.shape_cast %4 : vector<8x16x64xf32> to vector<128x64xf32>
    %c0_4 = arith.constant 0 : index
    %c0_5 = arith.constant 0 : index
    %6 = vector.load %arg8[%c0_4, %c0_5] : memref<2x64xf32, #tpu.memory_space<vmem>>, vector<1x64xf32>
    %cst = arith.constant dense<0.000000e+00> : vector<64xf32>
    %7 = vector.multi_reduction <add>, %5, %cst [0] : vector<128x64xf32> to vector<64xf32>
    %8 = vector.shape_cast %7 : vector<64xf32> to vector<1x64xf32>
    %9 = arith.addf %6, %8 : vector<1x64xf32>
    %c0_6 = arith.constant 0 : index
    %c0_7 = arith.constant 0 : index
    %10 = vector.load %arg8[%c0_6, %c0_7] : memref<2x64xf32, #tpu.memory_space<vmem>>, vector<1x64xf32>
    tpu.vector_store %arg8[%c0_6, %c0_7], %9 {strides = array<i32>} : memref<2x64xf32, #tpu.memory_space<vmem>>, vector<1x64xf32>,
    %c1 = arith.constant 1 : index
    %c0_8 = arith.constant 0 : index
    %11 = vector.load %arg8[%c1, %c0_8] : memref<2x64xf32, #tpu.memory_space<vmem>>, vector<1x64xf32>
    %12 = arith.mulf %5, %5 : vector<128x64xf32>
    %cst_9 = arith.constant dense<0.000000e+00> : vector<64xf32>
    %13 = vector.multi_reduction <add>, %12, %cst_9 [0] : vector<128x64xf32> to vector<64xf32>
    %14 = vector.shape_cast %13 : vector<64xf32> to vector<1x64xf32>
    %15 = arith.addf %11, %14 : vector<1x64xf32>
    %c1_10 = arith.constant 1 : index
    %c0_11 = arith.constant 0 : index
    %16 = vector.load %arg8[%c1_10, %c0_11] : memref<2x64xf32, #tpu.memory_space<vmem>>, vector<1x64xf32>
    tpu.vector_store %arg8[%c1_10, %c0_11], %15 {strides = array<i32>} : memref<2x64xf32, #tpu.memory_space<vmem>>, vector<1x64xf32>,
    %c1_i32 = arith.constant 1 : i32
    %17 = arith.cmpi eq, %arg1, %c1_i32 : i32
    %18 = arith.extui %17 : i1 to i32
    %c0_i32_12 = arith.constant 0 : i32
    %19 = arith.cmpi ne, %18, %c0_i32_12 : i32
    scf.if %19 {
      %c0_13 = arith.constant 0 : index
      %c0_14 = arith.constant 0 : index
      %20 = vector.load %arg5[%c0_13, %c0_14] : memref<64x32xf32, #tpu.memory_space<vmem>>, vector<64x32xf32>
      %c0_15 = arith.constant 0 : index
      %c0_16 = arith.constant 0 : index
      %21 = vector.load %arg8[%c0_15, %c0_16] : memref<2x64xf32, #tpu.memory_space<vmem>>, vector<2x64xf32>
      %cst_17 = arith.constant dense<0.000000e+00> : vector<2x32xf32>
      %22 = tpu.matmul %21, %20, %cst_17 {dimension_numbers = #tpu.dot_dimension_numbers<[1], [0], [0], [1], [0, 0, 1, 1], [], []>} : vector<2x64xf32>, vector<64x32xf32>, vector<2x32xf32> -> vector<2x32xf32>
      %cst_18 = arith.constant 5.120000e+02 : f32
      %23 = vector.broadcast %cst_18 : f32 to vector<2x32xf32>
      %24 = arith.divf %22, %23 : vector<2x32xf32>
      %25 = vector.extract_strided_slice %24 {offsets = [0, 0], sizes = [1, 32], strides = [1, 1]} : vector<2x32xf32> to vector<1x32xf32>
      %26 = vector.extract_strided_slice %24 {offsets = [1, 0], sizes = [1, 32], strides = [1, 1]} : vector<2x32xf32> to vector<1x32xf32>
      %27 = arith.mulf %25, %25 : vector<1x32xf32>
      %28 = arith.subf %26, %27 : vector<1x32xf32>
      %cst_19 = arith.constant 9.99999974E-6 : f32
      %29 = vector.broadcast %cst_19 : f32 to vector<1x32xf32>
      %30 = arith.addf %28, %29 : vector<1x32xf32>
      %31 = math.rsqrt %30 : vector<1x32xf32>
      %32 = tpu.concatenate %25, %31 in 0 : vector<1x32xf32>, vector<1x32xf32> -> vector<2x32xf32>
      %33 = tpu.transpose %20, [1, 0] : vector<64x32xf32> -> vector<32x64xf32>
      %cst_20 = arith.constant dense<0.000000e+00> : vector<2x64xf32>
      %34 = tpu.matmul %32, %33, %cst_20 {dimension_numbers = #tpu.dot_dimension_numbers<[1], [0], [0], [1], [0, 0, 1, 1], [], []>} : vector<2x32xf32>, vector<32x64xf32>, vector<2x64xf32> -> vector<2x64xf32>
      %35 = vector.extract_strided_slice %34 {offsets = [1, 0], sizes = [1, 64], strides = [1, 1]} : vector<2x64xf32> to vector<1x64xf32>
      %c0_21 = arith.constant 0 : index
      %c0_22 = arith.constant 0 : index
      %36 = vector.load %arg3[%c0_21, %c0_22] : memref<1x64xf32, #tpu.memory_space<vmem>>, vector<1x64xf32>
      %37 = arith.mulf %35, %36 : vector<1x64xf32>
      %c0_23 = arith.constant 0 : index
      %c0_24 = arith.constant 0 : index
      %c0_25 = arith.constant 0 : index
      %38 = vector.load %arg6[%c0_23, %c0_24, %c0_25] : memref<1x1x64xf32, #tpu.memory_space<vmem>>, vector<1x1x64xf32>
      %39 = vector.shape_cast %38 : vector<1x1x64xf32> to vector<1x64xf32>
      %40 = vector.shape_cast %37 : vector<1x64xf32> to vector<1x1x64xf32>
      tpu.vector_store %arg6[%c0_23, %c0_24, %c0_25], %40 {strides = array<i32>} : memref<1x1x64xf32, #tpu.memory_space<vmem>>, vector<1x1x64xf32>,
      %c0_26 = arith.constant 0 : index
      %c0_27 = arith.constant 0 : index
      %41 = vector.load %arg4[%c0_26, %c0_27] : memref<1x64xf32, #tpu.memory_space<vmem>>, vector<1x64xf32>
      %42 = vector.extract_strided_slice %34 {offsets = [0, 0], sizes = [1, 64], strides = [1, 1]} : vector<2x64xf32> to vector<1x64xf32>
      %43 = arith.mulf %42, %37 : vector<1x64xf32>
      %44 = arith.subf %41, %43 : vector<1x64xf32>
      %c0_28 = arith.constant 0 : index
      %c0_29 = arith.constant 0 : index
      %c0_30 = arith.constant 0 : index
      %45 = vector.load %arg7[%c0_28, %c0_29, %c0_30] : memref<1x1x64xf32, #tpu.memory_space<vmem>>, vector<1x1x64xf32>
      %46 = vector.shape_cast %45 : vector<1x1x64xf32> to vector<1x64xf32>
      %47 = vector.shape_cast %44 : vector<1x64xf32> to vector<1x1x64xf32>
      tpu.vector_store %arg7[%c0_28, %c0_29, %c0_30], %47 {strides = array<i32>} : memref<1x1x64xf32, #tpu.memory_space<vmem>>, vector<1x1x64xf32>,
    } else {
    }
    return
  }
  func.func @transform_0(%arg0: i32, %arg1: i32) -> (i32, i32, i32, i32) {
    %c0_i32 = arith.constant 0 : i32
    %c0_i32_0 = arith.constant 0 : i32
    %c0_i32_1 = arith.constant 0 : i32
    return %arg0, %arg1, %c0_i32, %c0_i32_0 : i32, i32, i32, i32
  }
  func.func @transform_1(%arg0: i32, %arg1: i32) -> (i32, i32) {
    %c0_i32 = arith.constant 0 : i32
    %c0_i32_0 = arith.constant 0 : i32
    %c0_i32_1 = arith.constant 0 : i32
    return %c0_i32, %c0_i32_0 : i32, i32
  }
  func.func @transform_2(%arg0: i32, %arg1: i32) -> (i32, i32) {
    %c0_i32 = arith.constant 0 : i32
    %c0_i32_0 = arith.constant 0 : i32
    %c0_i32_1 = arith.constant 0 : i32
    return %c0_i32, %c0_i32_0 : i32, i32
  }
  func.func @transform_3(%arg0: i32, %arg1: i32) -> (i32, i32) {
    %c0_i32 = arith.constant 0 : i32
    %c0_i32_0 = arith.constant 0 : i32
    %c0_i32_1 = arith.constant 0 : i32
    return %c0_i32, %c0_i32_0 : i32, i32
  }
  func.func @transform_4(%arg0: i32, %arg1: i32) -> (i32, i32, i32) {
    %c0_i32 = arith.constant 0 : i32
    %c0_i32_0 = arith.constant 0 : i32
    %c0_i32_1 = arith.constant 0 : i32
    return %arg0, %c0_i32, %c0_i32_0 : i32, i32, i32
  }
  func.func @transform_5(%arg0: i32, %arg1: i32) -> (i32, i32, i32) {
    %c0_i32 = arith.constant 0 : i32
    %c0_i32_0 = arith.constant 0 : i32
    %c0_i32_1 = arith.constant 0 : i32
    return %arg0, %c0_i32, %c0_i32_0 : i32, i32, i32
  }
}

module attributes {stable_mosaic.version = 11 : i64} {
  func.func @_gn_silu_conv_kernel(%arg0: i32, %arg1: i32, %arg2: memref<1x8x16x64xf32, #tpu.memory_space<vmem>>, %arg3: memref<1x1x16x64xf32, #tpu.memory_space<vmem>>, %arg4: memref<1x1x16x64xf32, #tpu.memory_space<vmem>>, %arg5: memref<1x1x64xf32, #tpu.memory_space<vmem>>, %arg6: memref<1x1x64xf32, #tpu.memory_space<vmem>>, %arg7: memref<9x64x64xbf16, #tpu.memory_space<vmem>>, %arg8: memref<1x64xf32, #tpu.memory_space<vmem>>, %arg9: memref<1x8x16x64xf32, #tpu.memory_space<vmem>>, %arg10: memref<11x24x64xf32, #tpu.memory_space<vmem>>, %arg11: memref<192x64xf32, #tpu.memory_space<vmem>>) attributes {dimension_semantics = [#tpu.dimension_semantics<parallel>, #tpu.dimension_semantics<parallel>], iteration_bounds = array<i64: 2, 2>, scalar_prefetch = 0 : i64, scratch_operands = 2 : i64, tpu.core_type = #tpu.core_type<tc>, window_params = [{transform_indices = @transform_0, window_bounds = array<i64: 1, 8, 16, 64>}, {transform_indices = @transform_1, window_bounds = array<i64: 1, 1, 16, 64>}, {transform_indices = @transform_2, window_bounds = array<i64: 1, 1, 16, 64>}, {transform_indices = @transform_3, window_bounds = array<i64: 1, 1, 64>}, {transform_indices = @transform_4, window_bounds = array<i64: 1, 1, 64>}, {pipeline_mode = #tpu.pipeline_mode<synchronous>, transform_indices = @transform_5, window_bounds = array<i64: 9, 64, 64>}, {pipeline_mode = #tpu.pipeline_mode<synchronous>, transform_indices = @transform_6, window_bounds = array<i64: 1, 64>}, {transform_indices = @transform_7, window_bounds = array<i64: 1, 8, 16, 64>}]} {
    %c0 = arith.constant 0 : index
    %c0_0 = arith.constant 0 : index
    %c0_1 = arith.constant 0 : index
    %c0_2 = arith.constant 0 : index
    %0 = vector.load %arg3[%c0, %c0_0, %c0_1, %c0_2] : memref<1x1x16x64xf32, #tpu.memory_space<vmem>>, vector<1x1x16x64xf32>
    %1 = vector.shape_cast %0 : vector<1x1x16x64xf32> to vector<1x16x64xf32>
    %c0_3 = arith.constant 0 : index
    %c0_4 = arith.constant 0 : index
    %c0_5 = arith.constant 0 : index
    %c0_6 = arith.constant 0 : index
    %2 = vector.load %arg2[%c0_3, %c0_4, %c0_5, %c0_6] : memref<1x8x16x64xf32, #tpu.memory_space<vmem>>, vector<1x8x16x64xf32>
    %3 = vector.shape_cast %2 : vector<1x8x16x64xf32> to vector<8x16x64xf32>
    %c0_7 = arith.constant 0 : index
    %c0_8 = arith.constant 0 : index
    %c0_9 = arith.constant 0 : index
    %c0_10 = arith.constant 0 : index
    %4 = vector.load %arg4[%c0_7, %c0_8, %c0_9, %c0_10] : memref<1x1x16x64xf32, #tpu.memory_space<vmem>>, vector<1x1x16x64xf32>
    %5 = vector.shape_cast %4 : vector<1x1x16x64xf32> to vector<1x16x64xf32>
    %6 = tpu.concatenate %1, %3, %5 in 0 : vector<1x16x64xf32>, vector<8x16x64xf32>, vector<1x16x64xf32> -> vector<10x16x64xf32>
    %c0_11 = arith.constant 0 : index
    %c0_12 = arith.constant 0 : index
    %c0_13 = arith.constant 0 : index
    %7 = vector.load %arg5[%c0_11, %c0_12, %c0_13] : memref<1x1x64xf32, #tpu.memory_space<vmem>>, vector<1x1x64xf32>
    %8 = vector.broadcast %7 : vector<1x1x64xf32> to vector<10x16x64xf32>
    %9 = arith.mulf %6, %8 : vector<10x16x64xf32>
    %c0_14 = arith.constant 0 : index
    %c0_15 = arith.constant 0 : index
    %c0_16 = arith.constant 0 : index
    %10 = vector.load %arg6[%c0_14, %c0_15, %c0_16] : memref<1x1x64xf32, #tpu.memory_space<vmem>>, vector<1x1x64xf32>
    %11 = vector.broadcast %10 : vector<1x1x64xf32> to vector<10x16x64xf32>
    %12 = arith.addf %9, %11 : vector<10x16x64xf32>
    %13 = arith.negf %12 : vector<10x16x64xf32>
    %14 = math.exp %13 : vector<10x16x64xf32>
    %cst = arith.constant 1.000000e+00 : f32
    %15 = vector.broadcast %cst : f32 to vector<10x16x64xf32>
    %16 = arith.addf %15, %14 : vector<10x16x64xf32>
    %17 = arith.divf %15, %16 : vector<10x16x64xf32>
    %18 = arith.mulf %12, %17 : vector<10x16x64xf32>
    %c8_i32 = arith.constant 8 : i32
    %19 = arith.muli %arg1, %c8_i32 : i32
    %c1_i32 = arith.constant 1 : i32
    %20 = arith.subi %19, %c1_i32 : i32
    %21 = tpu.iota {dimensions = array<i32: 0>} : vector<10x1x1xi32>
    %22 = vector.broadcast %20 : i32 to vector<10x1x1xi32>
    %23 = arith.addi %22, %21 : vector<10x1x1xi32>
    %c0_i32 = arith.constant 0 : i32
    %24 = vector.broadcast %c0_i32 : i32 to vector<10x1x1xi32>
    %25 = arith.cmpi sge, %23, %24 : vector<10x1x1xi32>
    %c16_i32 = arith.constant 16 : i32
    %26 = vector.broadcast %c16_i32 : i32 to vector<10x1x1xi32>
    %27 = arith.cmpi slt, %23, %26 : vector<10x1x1xi32>
    %28 = arith.andi %25, %27 : vector<10x1x1xi1>
    %cst_17 = arith.constant 0.000000e+00 : f32
    %29 = vector.shape_cast %28 : vector<10x1x1xi1> to vector<10x1x1xi1>
    %30 = vector.broadcast %29 : vector<10x1x1xi1> to vector<10x16x64xi1>
    %31 = vector.broadcast %cst_17 : f32 to vector<10x16x64xf32>
    %32 = arith.select %30, %18, %31 : vector<10x16x64xi1>, vector<10x16x64xf32>
    %c0_18 = arith.constant 0 : index
    %c1 = arith.constant 1 : index
    %c0_19 = arith.constant 0 : index
    %33 = vector.load %arg10[%c0_18, %c1, %c0_19] : memref<11x24x64xf32, #tpu.memory_space<vmem>>, vector<10x16x64xf32>
    tpu.vector_store %arg10[%c0_18, %c1, %c0_19], %32 {strides = array<i32>} : memref<11x24x64xf32, #tpu.memory_space<vmem>>, vector<10x16x64xf32>,
    %cst_20 = arith.constant 0.000000e+00 : f32
    %34 = vector.broadcast %cst_20 : f32 to vector<10x1x64xf32>
    %c0_21 = arith.constant 0 : index
    %c0_22 = arith.constant 0 : index
    %c0_23 = arith.constant 0 : index
    %35 = vector.load %arg10[%c0_21, %c0_22, %c0_23] : memref<11x24x64xf32, #tpu.memory_space<vmem>>, vector<10x1x64xf32>
    tpu.vector_store %arg10[%c0_21, %c0_22, %c0_23], %34 {strides = array<i32>} : memref<11x24x64xf32, #tpu.memory_space<vmem>>, vector<10x1x64xf32>,
    %cst_24 = arith.constant 0.000000e+00 : f32
    %36 = vector.broadcast %cst_24 : f32 to vector<10x7x64xf32>
    %c0_25 = arith.constant 0 : index
    %c17 = arith.constant 17 : index
    %c0_26 = arith.constant 0 : index
    %37 = vector.load %arg10[%c0_25, %c17, %c0_26] : memref<11x24x64xf32, #tpu.memory_space<vmem>>, vector<10x7x64xf32>
    tpu.vector_store %arg10[%c0_25, %c17, %c0_26], %36 {strides = array<i32>} : memref<11x24x64xf32, #tpu.memory_space<vmem>>, vector<10x7x64xf32>,
    %c0_27 = arith.constant 0 : index
    %c0_28 = arith.constant 0 : index
    %c0_29 = arith.constant 0 : index
    %38 = vector.load %arg10[%c0_27, %c0_28, %c0_29] : memref<11x24x64xf32, #tpu.memory_space<vmem>>, vector<11x24x64xf32>
    %39 = vector.shape_cast %38 : vector<11x24x64xf32> to vector<264x64xf32>
    %cst_30 = arith.constant 0.000000e+00 : f32
    %40 = vector.broadcast %cst_30 : f32 to vector<192x64xf32>
    %c0_31 = arith.constant 0 : index
    %c0_32 = arith.constant 0 : index
    %41 = vector.load %arg11[%c0_31, %c0_32] : memref<192x64xf32, #tpu.memory_space<vmem>>, vector<192x64xf32>
    tpu.vector_store %arg11[%c0_31, %c0_32], %40 {strides = array<i32>} : memref<192x64xf32, #tpu.memory_space<vmem>>, vector<192x64xf32>,
    %42 = vector.extract_strided_slice %39 {offsets = [0, 0], sizes = [240, 64], strides = [1, 1]} : vector<264x64xf32> to vector<240x64xf32>
    %43 = arith.truncf %42 : vector<240x64xf32> to vector<240x64xbf16>
    %44 = vector.extract_strided_slice %43 {offsets = [0, 0], sizes = [192, 64], strides = [1, 1]} : vector<240x64xbf16> to vector<192x64xbf16>
    %c0_33 = arith.constant 0 : index
    %c0_34 = arith.constant 0 : index
    %45 = vector.load %arg11[%c0_33, %c0_34] : memref<192x64xf32, #tpu.memory_space<vmem>>, vector<192x64xf32>
    %c0_35 = arith.constant 0 : index
    %c0_36 = arith.constant 0 : index
    %c0_37 = arith.constant 0 : index
    %46 = vector.load %arg7[%c0_35, %c0_36, %c0_37] : memref<9x64x64xbf16, #tpu.memory_space<vmem>>, vector<1x64x64xbf16>
    %47 = vector.shape_cast %46 : vector<1x64x64xbf16> to vector<64x64xbf16>
    %cst_38 = arith.constant dense<0.000000e+00> : vector<192x64xf32>
    %48 = tpu.matmul %44, %47, %cst_38 {dimension_numbers = #tpu.dot_dimension_numbers<[1], [0], [0], [1], [0, 0, 1, 1], [], []>} : vector<192x64xbf16>, vector<64x64xbf16>, vector<192x64xf32> -> vector<192x64xf32>
    %49 = arith.addf %45, %48 : vector<192x64xf32>
    %c0_39 = arith.constant 0 : index
    %c0_40 = arith.constant 0 : index
    %50 = vector.load %arg11[%c0_39, %c0_40] : memref<192x64xf32, #tpu.memory_space<vmem>>, vector<192x64xf32>
    tpu.vector_store %arg11[%c0_39, %c0_40], %49 {strides = array<i32>} : memref<192x64xf32, #tpu.memory_space<vmem>>, vector<192x64xf32>,
    %51 = vector.extract_strided_slice %43 {offsets = [24, 0], sizes = [192, 64], strides = [1, 1]} : vector<240x64xbf16> to vector<192x64xbf16>
    %c0_41 = arith.constant 0 : index
    %c0_42 = arith.constant 0 : index
    %52 = vector.load %arg11[%c0_41, %c0_42] : memref<192x64xf32, #tpu.memory_space<vmem>>, vector<192x64xf32>
    %c3 = arith.constant 3 : index
    %c0_43 = arith.constant 0 : index
    %c0_44 = arith.constant 0 : index
    %53 = vector.load %arg7[%c3, %c0_43, %c0_44] : memref<9x64x64xbf16, #tpu.memory_space<vmem>>, vector<1x64x64xbf16>
    %54 = vector.shape_cast %53 : vector<1x64x64xbf16> to vector<64x64xbf16>
    %cst_45 = arith.constant dense<0.000000e+00> : vector<192x64xf32>
    %55 = tpu.matmul %51, %54, %cst_45 {dimension_numbers = #tpu.dot_dimension_numbers<[1], [0], [0], [1], [0, 0, 1, 1], [], []>} : vector<192x64xbf16>, vector<64x64xbf16>, vector<192x64xf32> -> vector<192x64xf32>
    %56 = arith.addf %52, %55 : vector<192x64xf32>
    %c0_46 = arith.constant 0 : index
    %c0_47 = arith.constant 0 : index
    %57 = vector.load %arg11[%c0_46, %c0_47] : memref<192x64xf32, #tpu.memory_space<vmem>>, vector<192x64xf32>
    tpu.vector_store %arg11[%c0_46, %c0_47], %56 {strides = array<i32>} : memref<192x64xf32, #tpu.memory_space<vmem>>, vector<192x64xf32>,
    %58 = vector.extract_strided_slice %43 {offsets = [48, 0], sizes = [192, 64], strides = [1, 1]} : vector<240x64xbf16> to vector<192x64xbf16>
    %c0_48 = arith.constant 0 : index
    %c0_49 = arith.constant 0 : index
    %59 = vector.load %arg11[%c0_48, %c0_49] : memref<192x64xf32, #tpu.memory_space<vmem>>, vector<192x64xf32>
    %c6 = arith.constant 6 : index
    %c0_50 = arith.constant 0 : index
    %c0_51 = arith.constant 0 : index
    %60 = vector.load %arg7[%c6, %c0_50, %c0_51] : memref<9x64x64xbf16, #tpu.memory_space<vmem>>, vector<1x64x64xbf16>
    %61 = vector.shape_cast %60 : vector<1x64x64xbf16> to vector<64x64xbf16>
    %cst_52 = arith.constant dense<0.000000e+00> : vector<192x64xf32>
    %62 = tpu.matmul %58, %61, %cst_52 {dimension_numbers = #tpu.dot_dimension_numbers<[1], [0], [0], [1], [0, 0, 1, 1], [], []>} : vector<192x64xbf16>, vector<64x64xbf16>, vector<192x64xf32> -> vector<192x64xf32>
    %63 = arith.addf %59, %62 : vector<192x64xf32>
    %c0_53 = arith.constant 0 : index
    %c0_54 = arith.constant 0 : index
    %64 = vector.load %arg11[%c0_53, %c0_54] : memref<192x64xf32, #tpu.memory_space<vmem>>, vector<192x64xf32>
    tpu.vector_store %arg11[%c0_53, %c0_54], %63 {strides = array<i32>} : memref<192x64xf32, #tpu.memory_space<vmem>>, vector<192x64xf32>,
    %65 = vector.extract_strided_slice %39 {offsets = [1, 0], sizes = [240, 64], strides = [1, 1]} : vector<264x64xf32> to vector<240x64xf32>
    %66 = arith.truncf %65 : vector<240x64xf32> to vector<240x64xbf16>
    %67 = vector.extract_strided_slice %66 {offsets = [0, 0], sizes = [192, 64], strides = [1, 1]} : vector<240x64xbf16> to vector<192x64xbf16>
    %c0_55 = arith.constant 0 : index
    %c0_56 = arith.constant 0 : index
    %68 = vector.load %arg11[%c0_55, %c0_56] : memref<192x64xf32, #tpu.memory_space<vmem>>, vector<192x64xf32>
    %c1_57 = arith.constant 1 : index
    %c0_58 = arith.constant 0 : index
    %c0_59 = arith.constant 0 : index
    %69 = vector.load %arg7[%c1_57, %c0_58, %c0_59] : memref<9x64x64xbf16, #tpu.memory_space<vmem>>, vector<1x64x64xbf16>
    %70 = vector.shape_cast %69 : vector<1x64x64xbf16> to vector<64x64xbf16>
    %cst_60 = arith.constant dense<0.000000e+00> : vector<192x64xf32>
    %71 = tpu.matmul %67, %70, %cst_60 {dimension_numbers = #tpu.dot_dimension_numbers<[1], [0], [0], [1], [0, 0, 1, 1], [], []>} : vector<192x64xbf16>, vector<64x64xbf16>, vector<192x64xf32> -> vector<192x64xf32>
    %72 = arith.addf %68, %71 : vector<192x64xf32>
    %c0_61 = arith.constant 0 : index
    %c0_62 = arith.constant 0 : index
    %73 = vector.load %arg11[%c0_61, %c0_62] : memref<192x64xf32, #tpu.memory_space<vmem>>, vector<192x64xf32>
    tpu.vector_store %arg11[%c0_61, %c0_62], %72 {strides = array<i32>} : memref<192x64xf32, #tpu.memory_space<vmem>>, vector<192x64xf32>,
    %74 = vector.extract_strided_slice %66 {offsets = [24, 0], sizes = [192, 64], strides = [1, 1]} : vector<240x64xbf16> to vector<192x64xbf16>
    %c0_63 = arith.constant 0 : index
    %c0_64 = arith.constant 0 : index
    %75 = vector.load %arg11[%c0_63, %c0_64] : memref<192x64xf32, #tpu.memory_space<vmem>>, vector<192x64xf32>
    %c4 = arith.constant 4 : index
    %c0_65 = arith.constant 0 : index
    %c0_66 = arith.constant 0 : index
    %76 = vector.load %arg7[%c4, %c0_65, %c0_66] : memref<9x64x64xbf16, #tpu.memory_space<vmem>>, vector<1x64x64xbf16>
    %77 = vector.shape_cast %76 : vector<1x64x64xbf16> to vector<64x64xbf16>
    %cst_67 = arith.constant dense<0.000000e+00> : vector<192x64xf32>
    %78 = tpu.matmul %74, %77, %cst_67 {dimension_numbers = #tpu.dot_dimension_numbers<[1], [0], [0], [1], [0, 0, 1, 1], [], []>} : vector<192x64xbf16>, vector<64x64xbf16>, vector<192x64xf32> -> vector<192x64xf32>
    %79 = arith.addf %75, %78 : vector<192x64xf32>
    %c0_68 = arith.constant 0 : index
    %c0_69 = arith.constant 0 : index
    %80 = vector.load %arg11[%c0_68, %c0_69] : memref<192x64xf32, #tpu.memory_space<vmem>>, vector<192x64xf32>
    tpu.vector_store %arg11[%c0_68, %c0_69], %79 {strides = array<i32>} : memref<192x64xf32, #tpu.memory_space<vmem>>, vector<192x64xf32>,
    %81 = vector.extract_strided_slice %66 {offsets = [48, 0], sizes = [192, 64], strides = [1, 1]} : vector<240x64xbf16> to vector<192x64xbf16>
    %c0_70 = arith.constant 0 : index
    %c0_71 = arith.constant 0 : index
    %82 = vector.load %arg11[%c0_70, %c0_71] : memref<192x64xf32, #tpu.memory_space<vmem>>, vector<192x64xf32>
    %c7 = arith.constant 7 : index
    %c0_72 = arith.constant 0 : index
    %c0_73 = arith.constant 0 : index
    %83 = vector.load %arg7[%c7, %c0_72, %c0_73] : memref<9x64x64xbf16, #tpu.memory_space<vmem>>, vector<1x64x64xbf16>
    %84 = vector.shape_cast %83 : vector<1x64x64xbf16> to vector<64x64xbf16>
    %cst_74 = arith.constant dense<0.000000e+00> : vector<192x64xf32>
    %85 = tpu.matmul %81, %84, %cst_74 {dimension_numbers = #tpu.dot_dimension_numbers<[1], [0], [0], [1], [0, 0, 1, 1], [], []>} : vector<192x64xbf16>, vector<64x64xbf16>, vector<192x64xf32> -> vector<192x64xf32>
    %86 = arith.addf %82, %85 : vector<192x64xf32>
    %c0_75 = arith.constant 0 : index
    %c0_76 = arith.constant 0 : index
    %87 = vector.load %arg11[%c0_75, %c0_76] : memref<192x64xf32, #tpu.memory_space<vmem>>, vector<192x64xf32>
    tpu.vector_store %arg11[%c0_75, %c0_76], %86 {strides = array<i32>} : memref<192x64xf32, #tpu.memory_space<vmem>>, vector<192x64xf32>,
    %88 = vector.extract_strided_slice %39 {offsets = [2, 0], sizes = [240, 64], strides = [1, 1]} : vector<264x64xf32> to vector<240x64xf32>
    %89 = arith.truncf %88 : vector<240x64xf32> to vector<240x64xbf16>
    %90 = vector.extract_strided_slice %89 {offsets = [0, 0], sizes = [192, 64], strides = [1, 1]} : vector<240x64xbf16> to vector<192x64xbf16>
    %c0_77 = arith.constant 0 : index
    %c0_78 = arith.constant 0 : index
    %91 = vector.load %arg11[%c0_77, %c0_78] : memref<192x64xf32, #tpu.memory_space<vmem>>, vector<192x64xf32>
    %c2 = arith.constant 2 : index
    %c0_79 = arith.constant 0 : index
    %c0_80 = arith.constant 0 : index
    %92 = vector.load %arg7[%c2, %c0_79, %c0_80] : memref<9x64x64xbf16, #tpu.memory_space<vmem>>, vector<1x64x64xbf16>
    %93 = vector.shape_cast %92 : vector<1x64x64xbf16> to vector<64x64xbf16>
    %cst_81 = arith.constant dense<0.000000e+00> : vector<192x64xf32>
    %94 = tpu.matmul %90, %93, %cst_81 {dimension_numbers = #tpu.dot_dimension_numbers<[1], [0], [0], [1], [0, 0, 1, 1], [], []>} : vector<192x64xbf16>, vector<64x64xbf16>, vector<192x64xf32> -> vector<192x64xf32>
    %95 = arith.addf %91, %94 : vector<192x64xf32>
    %c0_82 = arith.constant 0 : index
    %c0_83 = arith.constant 0 : index
    %96 = vector.load %arg11[%c0_82, %c0_83] : memref<192x64xf32, #tpu.memory_space<vmem>>, vector<192x64xf32>
    tpu.vector_store %arg11[%c0_82, %c0_83], %95 {strides = array<i32>} : memref<192x64xf32, #tpu.memory_space<vmem>>, vector<192x64xf32>,
    %97 = vector.extract_strided_slice %89 {offsets = [24, 0], sizes = [192, 64], strides = [1, 1]} : vector<240x64xbf16> to vector<192x64xbf16>
    %c0_84 = arith.constant 0 : index
    %c0_85 = arith.constant 0 : index
    %98 = vector.load %arg11[%c0_84, %c0_85] : memref<192x64xf32, #tpu.memory_space<vmem>>, vector<192x64xf32>
    %c5 = arith.constant 5 : index
    %c0_86 = arith.constant 0 : index
    %c0_87 = arith.constant 0 : index
    %99 = vector.load %arg7[%c5, %c0_86, %c0_87] : memref<9x64x64xbf16, #tpu.memory_space<vmem>>, vector<1x64x64xbf16>
    %100 = vector.shape_cast %99 : vector<1x64x64xbf16> to vector<64x64xbf16>
    %cst_88 = arith.constant dense<0.000000e+00> : vector<192x64xf32>
    %101 = tpu.matmul %97, %100, %cst_88 {dimension_numbers = #tpu.dot_dimension_numbers<[1], [0], [0], [1], [0, 0, 1, 1], [], []>} : vector<192x64xbf16>, vector<64x64xbf16>, vector<192x64xf32> -> vector<192x64xf32>
    %102 = arith.addf %98, %101 : vector<192x64xf32>
    %c0_89 = arith.constant 0 : index
    %c0_90 = arith.constant 0 : index
    %103 = vector.load %arg11[%c0_89, %c0_90] : memref<192x64xf32, #tpu.memory_space<vmem>>, vector<192x64xf32>
    tpu.vector_store %arg11[%c0_89, %c0_90], %102 {strides = array<i32>} : memref<192x64xf32, #tpu.memory_space<vmem>>, vector<192x64xf32>,
    %104 = vector.extract_strided_slice %89 {offsets = [48, 0], sizes = [192, 64], strides = [1, 1]} : vector<240x64xbf16> to vector<192x64xbf16>
    %c0_91 = arith.constant 0 : index
    %c0_92 = arith.constant 0 : index
    %105 = vector.load %arg11[%c0_91, %c0_92] : memref<192x64xf32, #tpu.memory_space<vmem>>, vector<192x64xf32>
    %c8 = arith.constant 8 : index
    %c0_93 = arith.constant 0 : index
    %c0_94 = arith.constant 0 : index
    %106 = vector.load %arg7[%c8, %c0_93, %c0_94] : memref<9x64x64xbf16, #tpu.memory_space<vmem>>, vector<1x64x64xbf16>
    %107 = vector.shape_cast %106 : vector<1x64x64xbf16> to vector<64x64xbf16>
    %cst_95 = arith.constant dense<0.000000e+00> : vector<192x64xf32>
    %108 = tpu.matmul %104, %107, %cst_95 {dimension_numbers = #tpu.dot_dimension_numbers<[1], [0], [0], [1], [0, 0, 1, 1], [], []>} : vector<192x64xbf16>, vector<64x64xbf16>, vector<192x64xf32> -> vector<192x64xf32>
    %109 = arith.addf %105, %108 : vector<192x64xf32>
    %c0_96 = arith.constant 0 : index
    %c0_97 = arith.constant 0 : index
    %110 = vector.load %arg11[%c0_96, %c0_97] : memref<192x64xf32, #tpu.memory_space<vmem>>, vector<192x64xf32>
    tpu.vector_store %arg11[%c0_96, %c0_97], %109 {strides = array<i32>} : memref<192x64xf32, #tpu.memory_space<vmem>>, vector<192x64xf32>,
    %c0_98 = arith.constant 0 : index
    %c0_99 = arith.constant 0 : index
    %111 = vector.load %arg11[%c0_98, %c0_99] : memref<192x64xf32, #tpu.memory_space<vmem>>, vector<192x64xf32>
    %112 = vector.shape_cast %111 : vector<192x64xf32> to vector<8x24x64xf32>
    %113 = vector.extract_strided_slice %112 {offsets = [0, 0, 0], sizes = [8, 16, 64], strides = [1, 1, 1]} : vector<8x24x64xf32> to vector<8x16x64xf32>
    %c0_100 = arith.constant 0 : index
    %c0_101 = arith.constant 0 : index
    %114 = vector.load %arg8[%c0_100, %c0_101] : memref<1x64xf32, #tpu.memory_space<vmem>>, vector<1x64xf32>
    %115 = vector.shape_cast %114 : vector<1x64xf32> to vector<1x1x64xf32>
    %116 = vector.broadcast %115 : vector<1x1x64xf32> to vector<8x16x64xf32>
    %117 = arith.addf %113, %116 : vector<8x16x64xf32>
    %c0_102 = arith.constant 0 : index
    %c0_103 = arith.constant 0 : index
    %c0_104 = arith.constant 0 : index
    %c0_105 = arith.constant 0 : index
    %118 = vector.load %arg9[%c0_102, %c0_103, %c0_104, %c0_105] : memref<1x8x16x64xf32, #tpu.memory_space<vmem>>, vector<1x8x16x64xf32>
    %119 = vector.shape_cast %118 : vector<1x8x16x64xf32> to vector<8x16x64xf32>
    %120 = vector.shape_cast %117 : vector<8x16x64xf32> to vector<1x8x16x64xf32>
    tpu.vector_store %arg9[%c0_102, %c0_103, %c0_104, %c0_105], %120 {strides = array<i32>} : memref<1x8x16x64xf32, #tpu.memory_space<vmem>>, vector<1x8x16x64xf32>,
    return
  }
  func.func @transform_0(%arg0: i32, %arg1: i32) -> (i32, i32, i32, i32) {
    %c0_i32 = arith.constant 0 : i32
    %c0_i32_0 = arith.constant 0 : i32
    %c0_i32_1 = arith.constant 0 : i32
    return %arg0, %arg1, %c0_i32, %c0_i32_0 : i32, i32, i32, i32
  }
  func.func @transform_1(%arg0: i32, %arg1: i32) -> (i32, i32, i32, i32) {
    %c8_i32 = arith.constant 8 : i32
    %0 = arith.muli %arg1, %c8_i32 : i32
    %c1_i32 = arith.constant 1 : i32
    %1 = arith.subi %0, %c1_i32 : i32
    %c0_i32 = arith.constant 0 : i32
    %2 = arith.maxsi %1, %c0_i32 : i32
    %c0_i32_0 = arith.constant 0 : i32
    %c0_i32_1 = arith.constant 0 : i32
    %c0_i32_2 = arith.constant 0 : i32
    return %arg0, %2, %c0_i32_0, %c0_i32_1 : i32, i32, i32, i32
  }
  func.func @transform_2(%arg0: i32, %arg1: i32) -> (i32, i32, i32, i32) {
    %c8_i32 = arith.constant 8 : i32
    %0 = arith.muli %arg1, %c8_i32 : i32
    %c8_i32_0 = arith.constant 8 : i32
    %1 = arith.addi %0, %c8_i32_0 : i32
    %c15_i32 = arith.constant 15 : i32
    %2 = arith.minsi %1, %c15_i32 : i32
    %c0_i32 = arith.constant 0 : i32
    %c0_i32_1 = arith.constant 0 : i32
    %c0_i32_2 = arith.constant 0 : i32
    return %arg0, %2, %c0_i32, %c0_i32_1 : i32, i32, i32, i32
  }
  func.func @transform_3(%arg0: i32, %arg1: i32) -> (i32, i32, i32) {
    %c0_i32 = arith.constant 0 : i32
    %c0_i32_0 = arith.constant 0 : i32
    %c0_i32_1 = arith.constant 0 : i32
    return %arg0, %c0_i32, %c0_i32_0 : i32, i32, i32
  }
  func.func @transform_4(%arg0: i32, %arg1: i32) -> (i32, i32, i32) {
    %c0_i32 = arith.constant 0 : i32
    %c0_i32_0 = arith.constant 0 : i32
    %c0_i32_1 = arith.constant 0 : i32
    return %arg0, %c0_i32, %c0_i32_0 : i32, i32, i32
  }
  func.func @transform_5(%arg0: i32, %arg1: i32) -> (i32, i32, i32) {
    %c0_i32 = arith.constant 0 : i32
    %c0_i32_0 = arith.constant 0 : i32
    %c0_i32_1 = arith.constant 0 : i32
    %c0_i32_2 = arith.constant 0 : i32
    return %c0_i32, %c0_i32_0, %c0_i32_1 : i32, i32, i32
  }
  func.func @transform_6(%arg0: i32, %arg1: i32) -> (i32, i32) {
    %c0_i32 = arith.constant 0 : i32
    %c0_i32_0 = arith.constant 0 : i32
    %c0_i32_1 = arith.constant 0 : i32
    return %c0_i32, %c0_i32_0 : i32, i32
  }
  func.func @transform_7(%arg0: i32, %arg1: i32) -> (i32, i32, i32, i32) {
    %c0_i32 = arith.constant 0 : i32
    %c0_i32_0 = arith.constant 0 : i32
    %c0_i32_1 = arith.constant 0 : i32
    return %arg0, %arg1, %c0_i32, %c0_i32_0 : i32, i32, i32, i32
  }
}

module attributes {stable_mosaic.version = 11 : i64} {
  func.func @_gn_stats_kernel(%arg0: i32, %arg1: i32, %arg2: memref<1x8x16x64xf32, #tpu.memory_space<vmem>>, %arg3: memref<1x64xf32, #tpu.memory_space<vmem>>, %arg4: memref<1x64xf32, #tpu.memory_space<vmem>>, %arg5: memref<64x32xf32, #tpu.memory_space<vmem>>, %arg6: memref<1x1x64xf32, #tpu.memory_space<vmem>>, %arg7: memref<1x1x64xf32, #tpu.memory_space<vmem>>, %arg8: memref<2x64xf32, #tpu.memory_space<vmem>>) attributes {dimension_semantics = [#tpu.dimension_semantics<parallel>, #tpu.dimension_semantics<arbitrary>], iteration_bounds = array<i64: 2, 2>, scalar_prefetch = 0 : i64, scratch_operands = 1 : i64, tpu.core_type = #tpu.core_type<tc>, window_params = [{transform_indices = @transform_0, window_bounds = array<i64: 1, 8, 16, 64>}, {pipeline_mode = #tpu.pipeline_mode<synchronous>, transform_indices = @transform_1, window_bounds = array<i64: 1, 64>}, {pipeline_mode = #tpu.pipeline_mode<synchronous>, transform_indices = @transform_2, window_bounds = array<i64: 1, 64>}, {pipeline_mode = #tpu.pipeline_mode<synchronous>, transform_indices = @transform_3, window_bounds = array<i64: 64, 32>}, {transform_indices = @transform_4, window_bounds = array<i64: 1, 1, 64>}, {transform_indices = @transform_5, window_bounds = array<i64: 1, 1, 64>}]} {
    %c0_i32 = arith.constant 0 : i32
    %0 = arith.cmpi eq, %arg1, %c0_i32 : i32
    %1 = arith.extui %0 : i1 to i32
    %c0_i32_0 = arith.constant 0 : i32
    %2 = arith.cmpi ne, %1, %c0_i32_0 : i32
    scf.if %2 {
      %cst_13 = arith.constant 0.000000e+00 : f32
      %20 = vector.broadcast %cst_13 : f32 to vector<2x64xf32>
      %c0_14 = arith.constant 0 : index
      %c0_15 = arith.constant 0 : index
      %21 = vector.load %arg8[%c0_14, %c0_15] : memref<2x64xf32, #tpu.memory_space<vmem>>, vector<2x64xf32>
      tpu.vector_store %arg8[%c0_14, %c0_15], %20 {strides = array<i32>} : memref<2x64xf32, #tpu.memory_space<vmem>>, vector<2x64xf32>,
    } else {
    }
    %c0 = arith.constant 0 : index
    %c0_1 = arith.constant 0 : index
    %c0_2 = arith.constant 0 : index
    %c0_3 = arith.constant 0 : index
    %3 = vector.load %arg2[%c0, %c0_1, %c0_2, %c0_3] : memref<1x8x16x64xf32, #tpu.memory_space<vmem>>, vector<1x8x16x64xf32>
    %4 = vector.shape_cast %3 : vector<1x8x16x64xf32> to vector<8x16x64xf32>
    %5 = vector.shape_cast %4 : vector<8x16x64xf32> to vector<128x64xf32>
    %c0_4 = arith.constant 0 : index
    %c0_5 = arith.constant 0 : index
    %6 = vector.load %arg8[%c0_4, %c0_5] : memref<2x64xf32, #tpu.memory_space<vmem>>, vector<1x64xf32>
    %cst = arith.constant dense<0.000000e+00> : vector<64xf32>
    %7 = vector.multi_reduction <add>, %5, %cst [0] : vector<128x64xf32> to vector<64xf32>
    %8 = vector.shape_cast %7 : vector<64xf32> to vector<1x64xf32>
    %9 = arith.addf %6, %8 : vector<1x64xf32>
    %c0_6 = arith.constant 0 : index
    %c0_7 = arith.constant 0 : index
    %10 = vector.load %arg8[%c0_6, %c0_7] : memref<2x64xf32, #tpu.memory_space<vmem>>, vector<1x64xf32>
    tpu.vector_store %arg8[%c0_6, %c0_7], %9 {strides = array<i32>} : memref<2x64xf32, #tpu.memory_space<vmem>>, vector<1x64xf32>,
    %c1 = arith.constant 1 : index
    %c0_8 = arith.constant 0 : index
    %11 = vector.load %arg8[%c1, %c0_8] : memref<2x64xf32, #tpu.memory_space<vmem>>, vector<1x64xf32>
    %12 = arith.mulf %5, %5 : vector<128x64xf32>
    %cst_9 = arith.constant dense<0.000000e+00> : vector<64xf32>
    %13 = vector.multi_reduction <add>, %12, %cst_9 [0] : vector<128x64xf32> to vector<64xf32>
    %14 = vector.shape_cast %13 : vector<64xf32> to vector<1x64xf32>
    %15 = arith.addf %11, %14 : vector<1x64xf32>
    %c1_10 = arith.constant 1 : index
    %c0_11 = arith.constant 0 : index
    %16 = vector.load %arg8[%c1_10, %c0_11] : memref<2x64xf32, #tpu.memory_space<vmem>>, vector<1x64xf32>
    tpu.vector_store %arg8[%c1_10, %c0_11], %15 {strides = array<i32>} : memref<2x64xf32, #tpu.memory_space<vmem>>, vector<1x64xf32>,
    %c1_i32 = arith.constant 1 : i32
    %17 = arith.cmpi eq, %arg1, %c1_i32 : i32
    %18 = arith.extui %17 : i1 to i32
    %c0_i32_12 = arith.constant 0 : i32
    %19 = arith.cmpi ne, %18, %c0_i32_12 : i32
    scf.if %19 {
      %c0_13 = arith.constant 0 : index
      %c0_14 = arith.constant 0 : index
      %20 = vector.load %arg5[%c0_13, %c0_14] : memref<64x32xf32, #tpu.memory_space<vmem>>, vector<64x32xf32>
      %c0_15 = arith.constant 0 : index
      %c0_16 = arith.constant 0 : index
      %21 = vector.load %arg8[%c0_15, %c0_16] : memref<2x64xf32, #tpu.memory_space<vmem>>, vector<2x64xf32>
      %cst_17 = arith.constant dense<0.000000e+00> : vector<2x32xf32>
      %22 = tpu.matmul %21, %20, %cst_17 {dimension_numbers = #tpu.dot_dimension_numbers<[1], [0], [0], [1], [0, 0, 1, 1], [], []>} : vector<2x64xf32>, vector<64x32xf32>, vector<2x32xf32> -> vector<2x32xf32>
      %cst_18 = arith.constant 5.120000e+02 : f32
      %23 = vector.broadcast %cst_18 : f32 to vector<2x32xf32>
      %24 = arith.divf %22, %23 : vector<2x32xf32>
      %25 = vector.extract_strided_slice %24 {offsets = [0, 0], sizes = [1, 32], strides = [1, 1]} : vector<2x32xf32> to vector<1x32xf32>
      %26 = vector.extract_strided_slice %24 {offsets = [1, 0], sizes = [1, 32], strides = [1, 1]} : vector<2x32xf32> to vector<1x32xf32>
      %27 = arith.mulf %25, %25 : vector<1x32xf32>
      %28 = arith.subf %26, %27 : vector<1x32xf32>
      %cst_19 = arith.constant 9.99999974E-6 : f32
      %29 = vector.broadcast %cst_19 : f32 to vector<1x32xf32>
      %30 = arith.addf %28, %29 : vector<1x32xf32>
      %31 = math.rsqrt %30 : vector<1x32xf32>
      %32 = tpu.concatenate %25, %31 in 0 : vector<1x32xf32>, vector<1x32xf32> -> vector<2x32xf32>
      %33 = tpu.transpose %20, [1, 0] : vector<64x32xf32> -> vector<32x64xf32>
      %cst_20 = arith.constant dense<0.000000e+00> : vector<2x64xf32>
      %34 = tpu.matmul %32, %33, %cst_20 {dimension_numbers = #tpu.dot_dimension_numbers<[1], [0], [0], [1], [0, 0, 1, 1], [], []>} : vector<2x32xf32>, vector<32x64xf32>, vector<2x64xf32> -> vector<2x64xf32>
      %35 = vector.extract_strided_slice %34 {offsets = [1, 0], sizes = [1, 64], strides = [1, 1]} : vector<2x64xf32> to vector<1x64xf32>
      %c0_21 = arith.constant 0 : index
      %c0_22 = arith.constant 0 : index
      %36 = vector.load %arg3[%c0_21, %c0_22] : memref<1x64xf32, #tpu.memory_space<vmem>>, vector<1x64xf32>
      %37 = arith.mulf %35, %36 : vector<1x64xf32>
      %c0_23 = arith.constant 0 : index
      %c0_24 = arith.constant 0 : index
      %c0_25 = arith.constant 0 : index
      %38 = vector.load %arg6[%c0_23, %c0_24, %c0_25] : memref<1x1x64xf32, #tpu.memory_space<vmem>>, vector<1x1x64xf32>
      %39 = vector.shape_cast %38 : vector<1x1x64xf32> to vector<1x64xf32>
      %40 = vector.shape_cast %37 : vector<1x64xf32> to vector<1x1x64xf32>
      tpu.vector_store %arg6[%c0_23, %c0_24, %c0_25], %40 {strides = array<i32>} : memref<1x1x64xf32, #tpu.memory_space<vmem>>, vector<1x1x64xf32>,
      %c0_26 = arith.constant 0 : index
      %c0_27 = arith.constant 0 : index
      %41 = vector.load %arg4[%c0_26, %c0_27] : memref<1x64xf32, #tpu.memory_space<vmem>>, vector<1x64xf32>
      %42 = vector.extract_strided_slice %34 {offsets = [0, 0], sizes = [1, 64], strides = [1, 1]} : vector<2x64xf32> to vector<1x64xf32>
      %43 = arith.mulf %42, %37 : vector<1x64xf32>
      %44 = arith.subf %41, %43 : vector<1x64xf32>
      %c0_28 = arith.constant 0 : index
      %c0_29 = arith.constant 0 : index
      %c0_30 = arith.constant 0 : index
      %45 = vector.load %arg7[%c0_28, %c0_29, %c0_30] : memref<1x1x64xf32, #tpu.memory_space<vmem>>, vector<1x1x64xf32>
      %46 = vector.shape_cast %45 : vector<1x1x64xf32> to vector<1x64xf32>
      %47 = vector.shape_cast %44 : vector<1x64xf32> to vector<1x1x64xf32>
      tpu.vector_store %arg7[%c0_28, %c0_29, %c0_30], %47 {strides = array<i32>} : memref<1x1x64xf32, #tpu.memory_space<vmem>>, vector<1x1x64xf32>,
    } else {
    }
    return
  }
  func.func @transform_0(%arg0: i32, %arg1: i32) -> (i32, i32, i32, i32) {
    %c0_i32 = arith.constant 0 : i32
    %c0_i32_0 = arith.constant 0 : i32
    %c0_i32_1 = arith.constant 0 : i32
    return %arg0, %arg1, %c0_i32, %c0_i32_0 : i32, i32, i32, i32
  }
  func.func @transform_1(%arg0: i32, %arg1: i32) -> (i32, i32) {
    %c0_i32 = arith.constant 0 : i32
    %c0_i32_0 = arith.constant 0 : i32
    %c0_i32_1 = arith.constant 0 : i32
    return %c0_i32, %c0_i32_0 : i32, i32
  }
  func.func @transform_2(%arg0: i32, %arg1: i32) -> (i32, i32) {
    %c0_i32 = arith.constant 0 : i32
    %c0_i32_0 = arith.constant 0 : i32
    %c0_i32_1 = arith.constant 0 : i32
    return %c0_i32, %c0_i32_0 : i32, i32
  }
  func.func @transform_3(%arg0: i32, %arg1: i32) -> (i32, i32) {
    %c0_i32 = arith.constant 0 : i32
    %c0_i32_0 = arith.constant 0 : i32
    %c0_i32_1 = arith.constant 0 : i32
    return %c0_i32, %c0_i32_0 : i32, i32
  }
  func.func @transform_4(%arg0: i32, %arg1: i32) -> (i32, i32, i32) {
    %c0_i32 = arith.constant 0 : i32
    %c0_i32_0 = arith.constant 0 : i32
    %c0_i32_1 = arith.constant 0 : i32
    return %arg0, %c0_i32, %c0_i32_0 : i32, i32, i32
  }
  func.func @transform_5(%arg0: i32, %arg1: i32) -> (i32, i32, i32) {
    %c0_i32 = arith.constant 0 : i32
    %c0_i32_0 = arith.constant 0 : i32
    %c0_i32_1 = arith.constant 0 : i32
    return %arg0, %c0_i32, %c0_i32_0 : i32, i32, i32
  }
}

</mosaic_0001>

<llo_original>
// kernel: midblock_forward.4
$region0: #{midblock_forward.4}
  #allocation0 [shape = 'u32[]', space=smem, size = 0x4, offset = 0x4, fixed_abs, tag = 'smem constant byte address 0x4 - core index']
  #allocation1 [shape = 'u32[144,128]{1,0:T(1,128)}', space=vmem, size = 0x12000, scoped, tag = 'internal scratch']
  #allocation2 [shape = 'f32[2,64]{1,0:T(2,128)}', space=vmem, size = 0x400, scoped, tag = 'scratch operand']
  %s0 = inlined_call_operand.hbm [shape: f32[2,16,16,64], index: 0, kind: input, shape index: {}]
  %s1 = inlined_call_operand.vmem [shape: f32[1,64], index: 1, kind: input, shape index: {}]
  %s2 = inlined_call_operand.vmem [shape: f32[1,64], index: 2, kind: input, shape index: {}]
  %s3 = inlined_call_operand.vmem [shape: f32[64,32], index: 3, kind: input, shape index: {}]
  %s4 = inlined_call_operand.hbm [shape: f32[2,1,64], index: 4, kind: output, shape index: {0}]
  %s5 = inlined_call_operand.hbm [shape: f32[2,1,64], index: 5, kind: output, shape index: {1}]
  %6 = xla_tuple %s4, %s5
  %s7 = sld [smem:[#allocation0]]
  $region69: #{midblock_forward.4} parent=0
    _
  %s9 = ssub.s32 1, %s7
  %s10 = scalar_select 0, %s9, %s7
  $region1: #{midblock_forward.4} parent=0
    #allocation3 [shape = 'u8[131072]{0}', space=vmem, size = 0x20000, scoped, tag = 'input window, operand 0']
    #allocation4 [shape = 's32[2]{0}', space=sflag, size = 0x8, scoped, tag = 'scoped memory for midblock_forward.4']
    #allocation5 [shape = 's32[2]{0}', space=sflag, size = 0x8, scoped, tag = 'scoped memory for midblock_forward.4']
    #allocation6 [shape = 'u8[1024]{0}', space=vmem, size = 0x400, scoped, tag = 'output window, operand 0']
    #allocation7 [shape = 'u8[1024]{0}', space=vmem, size = 0x400, scoped, tag = 'output window, operand 1']
    #allocation8 [shape = 's32[2]{0}', space=sflag, size = 0x8, scoped, tag = 'scoped memory for midblock_forward.4']
    %11 = vsyncpa [#allocation4], 0
    %s12 = scalar_lea.sflag [#allocation4], 1
    %13 = vsyncpa %s12, 0
    %14 = vsyncpa [#allocation5], 0
    %s15 = scalar_lea.sflag [#allocation5], 1
    %16 = vsyncpa %s15, 0
    %17 = vsyncpa [#allocation8], 0
    %s18 = scalar_lea.sflag [#allocation8], 1
    %19 = vsyncpa %s18, 0
    loop: start=0, step=1, limit=6
    $region2: #{midblock_forward.4} parent=1 // loop_pre_header
      _
    $region3: #{midblock_forward.4} parent=1 // loop_header
      %s21 = sphi 0, %s25
      %p22 = scmp.ge.s32.totalorder %s21, 6
      %s28 = sphi 0, %s40
      %s29 = sphi 0, %s36
      %s30 = sphi 0, %s28
      %s31 = sphi 0, %s29
      %s32 = sphi 0, %s30
      %s33 = sphi 0, %s31
      %s45 = sphi 0, %s47
      %s48 = sphi 0, %s45
      %s49 = sphi 0, %s48
      %s65 = sphi 0, %s49
      %s69 = sphi 0, %s69
      %s71 = sphi 0, %s69
      %s72 = sphi 0, %s71
      %s86 = sphi 0, %s72
      %s90 = sphi 0, %s90
      %s92 = sphi 0, %s90
      %s93 = sphi 0, %s92
      %s107 = sphi 0, %s93
      %s111 = sphi 0, %s111
      %s113 = sphi 0, %s111
      %s114 = sphi 0, %s113
      %s128 = sphi 0, %s114
      %s134 = sphi 0, %s136
      %s137 = sphi 0, %s134
      %s138 = sphi 0, %s137
      %s154 = sphi 0, %s138
      %s160 = sphi 0, %s162
      %s163 = sphi 0, %s160
      %s164 = sphi 0, %s163
      %s180 = sphi 0, %s164
    $region4: #{midblock_forward.4} parent=1 // loop_header_branch
      %24 = sbr.rel (%p22) target = $region8
    $region5: #{midblock_forward.4} parent=1 // loop_body
      %s26 = ssub.s32 %s21, 1
      %s27 = ssub.s32 %s21, 2
      %s34 = sadd.s32 1, %s29
      %p35 = scmp.ge.s32.totalorder %s34, 2
      %s36 = scalar_select %p35, 0, %s34
      %s37 = sadd.s32 1, %s28
      %s38 = scalar_select %p35, %s37, %s28
      %p39 = scmp.ge.s32.totalorder %s38, 2
      %s40 = scalar_select %p39, 0, %s38
      %s41 = ssub.s32 %s28, %s40
      %s42 = ssub.s32 %s29, %s36
      %s43 = sor.u32 %s41, %s42
      %p44 = scmp.eq.s32.totalorder %s43, 0
      %s46 = sadd.s32 %s45, 1
      %s47 = scalar_select %p44, %s45, %s46
      %p50 = pneg %p44
      %p51 = scmp.eq.s32.totalorder %s21, 3
      %p52 = por %p50, %p51
      %p53 = scmp.ne.s32.totalorder %s45, %s48
      %p54 = scmp.eq.s32.totalorder %s21, 0
      %p55 = por %p53, %p54
      %p56 = scmp.ne.s32.totalorder %s45, %s48
      %p57 = scmp.eq.s32.totalorder %s26, 3
      %p58 = por %p56, %p57
      %p59 = scmp.ne.s32.totalorder %s48, %s49
      %p60 = scmp.eq.s32.totalorder %s26, 0
      %p61 = por %p59, %p60
      %p62 = scmp.ne.s32.totalorder %s48, %s49
      %p63 = scmp.eq.s32.totalorder %s27, 3
      %p64 = por %p62, %p63
      %p66 = scmp.ne.s32.totalorder %s49, %s65
      %p67 = scmp.eq.s32.totalorder %s27, 0
      %p68 = por %p66, %p67
      %s70 = sadd.s32 %s69, 1
      %p73 = scmp.eq.s32.totalorder %s21, 3
      %p74 = scmp.ne.s32.totalorder %s69, %s71
      %p75 = scmp.eq.s32.totalorder %s21, 0
      %p76 = por %p74, %p75
      %p77 = scmp.ne.s32.totalorder %s69, %s71
      %p78 = scmp.eq.s32.totalorder %s26, 3
      %p79 = por %p77, %p78
      %p80 = scmp.ne.s32.totalorder %s71, %s72
      %p81 = scmp.eq.s32.totalorder %s26, 0
      %p82 = por %p80, %p81
      %p83 = scmp.ne.s32.totalorder %s71, %s72
      %p84 = scmp.eq.s32.totalorder %s27, 3
      %p85 = por %p83, %p84
      %p87 = scmp.ne.s32.totalorder %s72, %s86
      %p88 = scmp.eq.s32.totalorder %s27, 0
      %p89 = por %p87, %p88
      %s91 = sadd.s32 %s90, 1
      %p94 = scmp.eq.s32.totalorder %s21, 3
      %p95 = scmp.ne.s32.totalorder %s90, %s92
      %p96 = scmp.eq.s32.totalorder %s21, 0
      %p97 = por %p95, %p96
      %p98 = scmp.ne.s32.totalorder %s90, %s92
      %p99 = scmp.eq.s32.totalorder %s26, 3
      %p100 = por %p98, %p99
      %p101 = scmp.ne.s32.totalorder %s92, %s93
      %p102 = scmp.eq.s32.totalorder %s26, 0
      %p103 = por %p101, %p102
      %p104 = scmp.ne.s32.totalorder %s92, %s93
      %p105 = scmp.eq.s32.totalorder %s27, 3
      %p106 = por %p104, %p105
      %p108 = scmp.ne.s32.totalorder %s93, %s107
      %p109 = scmp.eq.s32.totalorder %s27, 0
      %p110 = por %p108, %p109
      %s112 = sadd.s32 %s111, 1
      %p115 = scmp.eq.s32.totalorder %s21, 3
      %p116 = scmp.ne.s32.totalorder %s111, %s113
      %p117 = scmp.eq.s32.totalorder %s21, 0
      %p118 = por %p116, %p117
      %p119 = scmp.ne.s32.totalorder %s111, %s113
      %p120 = scmp.eq.s32.totalorder %s26, 3
      %p121 = por %p119, %p120
      %p122 = scmp.ne.s32.totalorder %s113, %s114
      %p123 = scmp.eq.s32.totalorder %s26, 0
      %p124 = por %p122, %p123
      %p125 = scmp.ne.s32.totalorder %s113, %s114
      %p126 = scmp.eq.s32.totalorder %s27, 3
      %p127 = por %p125, %p126
      %p129 = scmp.ne.s32.totalorder %s114, %s128
      %p130 = scmp.eq.s32.totalorder %s27, 0
      %p131 = por %p129, %p130
      %s132 = ssub.s32 %s28, %s40
      %p133 = scmp.eq.s32.totalorder %s132, 0
      %s135 = sadd.s32 %s134, 1
      %s136 = scalar_select %p133, %s134, %s135
      %p139 = pneg %p133
      %p140 = scmp.eq.s32.totalorder %s21, 3
      %p141 = por %p139, %p140
      %p142 = scmp.ne.s32.totalorder %s134, %s137
      %p143 = scmp.eq.s32.totalorder %s21, 0
      %p144 = por %p142, %p143
      %p145 = scmp.ne.s32.totalorder %s134, %s137
      %p146 = scmp.eq.s32.totalorder %s26, 3
      %p147 = por %p145, %p146
      %p148 = scmp.ne.s32.totalorder %s137, %s138
      %p149 = scmp.eq.s32.totalorder %s26, 0
      %p150 = por %p148, %p149
      %p151 = scmp.ne.s32.totalorder %s137, %s138
      %p152 = scmp.eq.s32.totalorder %s27, 3
      %p153 = por %p151, %p152
      %p155 = scmp.ne.s32.totalorder %s138, %s154
      %p156 = scmp.eq.s32.totalorder %s27, 0
      %p157 = por %p155, %p156
      %s158 = ssub.s32 %s28, %s40
      %p159 = scmp.eq.s32.totalorder %s158, 0
      %s161 = sadd.s32 %s160, 1
      %s162 = scalar_select %p159, %s160, %s161
      %p165 = pneg %p159
      %p166 = scmp.eq.s32.totalorder %s21, 3
      %p167 = por %p165, %p166
      %p168 = scmp.ne.s32.totalorder %s160, %s163
      %p169 = scmp.eq.s32.totalorder %s21, 0
      %p170 = por %p168, %p169
      %p171 = scmp.ne.s32.totalorder %s160, %s163
      %p172 = scmp.eq.s32.totalorder %s26, 3
      %p173 = por %p171, %p172
      %p174 = scmp.ne.s32.totalorder %s163, %s164
      %p175 = scmp.eq.s32.totalorder %s26, 0
      %p176 = por %p174, %p175
      %p177 = scmp.ne.s32.totalorder %s163, %s164
      %p178 = scmp.eq.s32.totalorder %s27, 3
      %p179 = por %p177, %p178
      %p181 = scmp.ne.s32.totalorder %s164, %s180
      %p182 = scmp.eq.s32.totalorder %s27, 0
      %p183 = por %p181, %p182
      %p184 = scmp.le.s32.totalorder 1, %s21
      %p185 = scmp.lt.s32.totalorder %s21, 5
      %p186 = pnand %p184, %p185
      %p187 = pneg %p186
      // Predicated region
      $region9: #{midblock_forward.4} parent=5 // pred_check
        _
      $region10: #{midblock_forward.4} parent=5 // pred_check_branch
        %189 = sbr.rel (%p186) target = $region12
      $region11: #{midblock_forward.4} parent=5 // pred_region
        %s190 = ssub.s32 %s21, 1
        // Predicated region
        $region13: #{midblock_forward.4} parent=11 // pred_check
          %p191 = pneg %p82
        $region14: #{midblock_forward.4} parent=11 // pred_check_branch
          %193 = sbr.rel (%p191) target = $region16
        $region15: #{midblock_forward.4} parent=11 // pred_region
          _
        $region16: #{midblock_forward.4} parent=11 // pred_fallthru
          _
        // Predicated region
        $region17: #{midblock_forward.4} parent=11 // pred_check
          %p194 = pneg %p103
        $region18: #{midblock_forward.4} parent=11 // pred_check_branch
          %196 = sbr.rel (%p194) target = $region20
        $region19: #{midblock_forward.4} parent=11 // pred_region
          _
        $region20: #{midblock_forward.4} parent=11 // pred_fallthru
          _
        // Predicated region
        $region21: #{midblock_forward.4} parent=11 // pred_check
          %p197 = pneg %p124
        $region22: #{midblock_forward.4} parent=11 // pred_check_branch
          %199 = sbr.rel (%p197) target = $region24
        $region23: #{midblock_forward.4} parent=11 // pred_region
          _
        $region24: #{midblock_forward.4} parent=11 // pred_fallthru
          _
      $region12: #{midblock_forward.4} parent=5 // pred_fallthru
        _
      %p200 = scmp.lt.s32.totalorder %s21, 4
      // Predicated region
      $region25: #{midblock_forward.4} parent=5 // pred_check
        %p201 = pneg %p200
      $region26: #{midblock_forward.4} parent=5 // pred_check_branch
        %203 = sbr.rel (%p201) target = $region28
      $region27: #{midblock_forward.4} parent=5 // pred_region
        // Predicated region
        $region29: #{midblock_forward.4} parent=27 // pred_check
          %p204 = pneg %p55
        $region30: #{midblock_forward.4} parent=27 // pred_check_branch
          %206 = sbr.rel (%p204) target = $region32
        $region31: #{midblock_forward.4} parent=27 // pred_region
          %s207 = sand.u32 %s45, 1
          %s208 = scalar_lea.sflag [#allocation4], %s207
          %s209 = sand.u32 %s45, 1
          %s210 = smul.addr %s209, 128
          %s211 = scalar_lea.vmem [#allocation3], %s210
          %s212 = smul.u32 8, %s29
          %s214 = ssub.s32 2048, 2048
          %215 = vsyncadd %s208, %s214
          %s216 = smul.addr %s212, 2
          %s217 = smul.addr %s28, 32
          %s218 = sadd.s32 %s216, %s217
          %s219 = smul.addr %s218, 128
          %s220 = scalar_lea.hbm %s0, %s219
          %s221 = sshll.u32 %s211, 4
          %s222 = int_to_ptr.vmem [resolvable:$true] %s221
          %227 = dma.hbm_to_vmem [thread:$0]  %s220, 2048, %s222, %s208, 128, 128, 8
        $region32: #{midblock_forward.4} parent=27 // pred_fallthru
          _
      $region28: #{midblock_forward.4} parent=5 // pred_fallthru
        _
      %p228 = scmp.le.s32.totalorder 1, %s21
      %p229 = scmp.lt.s32.totalorder %s21, 5
      %p230 = pnand %p228, %p229
      %p231 = pneg %p230
      // Predicated region
      $region33: #{midblock_forward.4} parent=5 // pred_check
        _
      $region34: #{midblock_forward.4} parent=5 // pred_check_branch
        %233 = sbr.rel (%p230) target = $region36
      $region35: #{midblock_forward.4} parent=5 // pred_region
        %s234 = ssub.s32 %s21, 1
        %s235 = sand.u32 %s48, 1
        %s236 = scalar_lea.sflag [#allocation4], %s235
        %s237 = sand.u32 %s48, 1
        %s238 = smul.addr %s237, 128
        %s239 = scalar_lea.vmem [#allocation3], %s238
        // Predicated region
        $region37: #{midblock_forward.4} parent=35 // pred_check
          %p240 = pneg %p61
        $region38: #{midblock_forward.4} parent=35 // pred_check_branch
          %242 = sbr.rel (%p240) target = $region40
        $region39: #{midblock_forward.4} parent=35 // pred_region
          %243 = dma.done %s236, 2048
        $region40: #{midblock_forward.4} parent=35 // pred_fallthru
          _
        %s244 = sand.u32 %s48, 1
        %s245 = scalar_lea.sflag [#allocation4], %s244
        %s246 = sand.u32 %s48, 1
        %s247 = smul.addr %s246, 128
        %s248 = scalar_lea.vmem [#allocation3], %s247
        %p249 = pneg %p61
        %p250 = pneg %p58
        %p251 = pneg %p82
        %p252 = pneg %p79
        %p253 = pneg %p103
        %p254 = pneg %p100
        %p255 = pneg %p124
        %p256 = pneg %p121
        %p257 = pneg %p150
        %p258 = pneg %p147
        %s259 = sand.u32 %s137, 1
        %s260 = scalar_lea.sflag [#allocation5], %s259
        %s261 = sand.u32 %s137, 1
        %s262 = scalar_lea.vmem [#allocation6], %s261
        %p263 = pneg %p176
        %p264 = pneg %p173
        %s265 = sand.u32 %s163, 1
        %s266 = scalar_lea.sflag [#allocation8], %s265
        %s267 = sand.u32 %s163, 1
        %s268 = scalar_lea.vmem [#allocation7], %s267
        %s269 = smul.u32 8, %s31
        %p270 = scmp.eq.s32.totalorder %s31, 0
        // Predicated region
        $region41: #{midblock_forward.4} parent=35 // pred_check
          %p271 = pneg %p270
        $region42: #{midblock_forward.4} parent=35 // pred_check_branch
          %273 = sbr.rel (%p271) target = $region44
        $region43: #{midblock_forward.4} parent=35 // pred_region
          %vm274 = vcmask 517120
          %275 = vst.msk [vmem:[#allocation2] sm:$0x3] %vm274, 0.0
        $region44: #{midblock_forward.4} parent=35 // pred_fallthru
          _
        %v276 = vld [vmem:[%s239] sm:$0xff]
        %v277 = vld [vmem:[%s239 + $0x8] sm:$0xff]
        %v278 = vld [vmem:[%s239 + $0x10] sm:$0xff]
        %v279 = vld [vmem:[%s239 + $0x18] sm:$0xff]
        %v280 = vld [vmem:[%s239 + $0x20] sm:$0xff]
        %v281 = vld [vmem:[%s239 + $0x28] sm:$0xff]
        %v282 = vld [vmem:[%s239 + $0x30] sm:$0xff]
        %v283 = vld [vmem:[%s239 + $0x38] sm:$0xff]
        %v284 = vld [vmem:[%s239 + $0x40] sm:$0xff]
        %v285 = vld [vmem:[%s239 + $0x48] sm:$0xff]
        %v286 = vld [vmem:[%s239 + $0x50] sm:$0xff]
        %v287 = vld [vmem:[%s239 + $0x58] sm:$0xff]
        %v288 = vld [vmem:[%s239 + $0x60] sm:$0xff]
        %v289 = vld [vmem:[%s239 + $0x68] sm:$0xff]
        %v290 = vld [vmem:[%s239 + $0x70] sm:$0xff]
        %v291 = vld [vmem:[%s239 + $0x78] sm:$0xff]
        %v292 = vld [vmem:[#allocation2] sm:$0x1]
        %vm293 = vcmask 523264
        %v294 = vsel %vm293, %v276, 0.0
        %v295 = vsel %vm293, %v277, 0.0
        %v296 = vadd.f32 %v294, %v295
        %v297 = vsel %vm293, %v278, 0.0
        %v298 = vadd.f32 %v296, %v297
        %v299 = vsel %vm293, %v279, 0.0
        %v300 = vadd.f32 %v298, %v299
        %v301 = vsel %vm293, %v280, 0.0
        %v302 = vadd.f32 %v300, %v301
        %v303 = vsel %vm293, %v281, 0.0
        %v304 = vadd.f32 %v302, %v303
        %v305 = vsel %vm293, %v282, 0.0
        %v306 = vadd.f32 %v304, %v305
        %v307 = vsel %vm293, %v283, 0.0
        %v308 = vadd.f32 %v306, %v307
        %v309 = vsel %vm293, %v284, 0.0
        %v310 = vadd.f32 %v308, %v309
        %v311 = vsel %vm293, %v285, 0.0
        %v312 = vadd.f32 %v310, %v311
        %v313 = vsel %vm293, %v286, 0.0
        %v314 = vadd.f32 %v312, %v313
        %v315 = vsel %vm293, %v287, 0.0
        %v316 = vadd.f32 %v314, %v315
        %v317 = vsel %vm293, %v288, 0.0
        %v318 = vadd.f32 %v316, %v317
        %v319 = vsel %vm293, %v289, 0.0
        %v320 = vadd.f32 %v318, %v319
        %v321 = vsel %vm293, %v290, 0.0
        %v322 = vadd.f32 %v320, %v321
        %v323 = vsel %vm293, %v291, 0.0
        %v324 = vadd.f32 %v322, %v323
        %v325 = vrot.slane %v324, 4
        %v326 = vadd.f32 %v324, %v325
        %v327 = vrot.slane %v326, 2
        %v328 = vadd.f32 %v326, %v327
        %v329 = vrot.slane %v328, 1
        %v330 = vadd.f32 %v328, %v329
        %v331 = vadd.f32 %v292, %v330
        %vm332 = vcmask 516096
        %333 = vst.msk [vmem:[#allocation2] sm:$0x1] %vm332, %v331
        %v334 = vld [vmem:[#allocation2 + $0x1] sm:$0x1]
        %v335 = vmul.f32 %v276, %v276
        %v336 = vmul.f32 %v277, %v277
        %v337 = vmul.f32 %v278, %v278
        %v338 = vmul.f32 %v279, %v279
        %v339 = vmul.f32 %v280, %v280
        %v340 = vmul.f32 %v281, %v281
        %v341 = vmul.f32 %v282, %v282
        %v342 = vmul.f32 %v283, %v283
        %v343 = vmul.f32 %v284, %v284
        %v344 = vmul.f32 %v285, %v285
        %v345 = vmul.f32 %v286, %v286
        %v346 = vmul.f32 %v287, %v287
        %v347 = vmul.f32 %v288, %v288
        %v348 = vmul.f32 %v289, %v289
        %v349 = vmul.f32 %v290, %v290
        %v350 = vmul.f32 %v291, %v291
        %v351 = vsel %vm293, %v335, 0.0
        %v352 = vsel %vm293, %v336, 0.0
        %v353 = vadd.f32 %v351, %v352
        %v354 = vsel %vm293, %v337, 0.0
        %v355 = vadd.f32 %v353, %v354
        %v356 = vsel %vm293, %v338, 0.0
        %v357 = vadd.f32 %v355, %v356
        %v358 = vsel %vm293, %v339, 0.0
        %v359 = vadd.f32 %v357, %v358
        %v360 = vsel %vm293, %v340, 0.0
        %v361 = vadd.f32 %v359, %v360
        %v362 = vsel %vm293, %v341, 0.0
        %v363 = vadd.f32 %v361, %v362
        %v364 = vsel %vm293, %v342, 0.0
        %v365 = vadd.f32 %v363, %v364
        %v366 = vsel %vm293, %v343, 0.0
        %v367 = vadd.f32 %v365, %v366
        %v368 = vsel %vm293, %v344, 0.0
        %v369 = vadd.f32 %v367, %v368
        %v370 = vsel %vm293, %v345, 0.0
        %v371 = vadd.f32 %v369, %v370
        %v372 = vsel %vm293, %v346, 0.0
        %v373 = vadd.f32 %v371, %v372
        %v374 = vsel %vm293, %v347, 0.0
        %v375 = vadd.f32 %v373, %v374
        %v376 = vsel %vm293, %v348, 0.0
        %v377 = vadd.f32 %v375, %v376
        %v378 = vsel %vm293, %v349, 0.0
        %v379 = vadd.f32 %v377, %v378
        %v380 = vsel %vm293, %v350, 0.0
        %v381 = vadd.f32 %v379, %v380
        %v382 = vrot.slane %v381, 4
        %v383 = vadd.f32 %v381, %v382
        %v384 = vrot.slane %v383, 2
        %v385 = vadd.f32 %v383, %v384
        %v386 = vrot.slane %v385, 1
        %v387 = vadd.f32 %v385, %v386
        %v388 = vadd.f32 %v334, %v387
        %389 = vst.msk [vmem:[#allocation2 + $0x1] sm:$0x1] %vm332, %v388
        %p390 = scmp.eq.s32.totalorder %s31, 1
        // Predicated region
        $region45: #{midblock_forward.4} parent=35 // pred_check
          %p391 = pneg %p390
        $region46: #{midblock_forward.4} parent=35 // pred_check_branch
          %393 = sbr.rel (%p391) target = $region48
        $region47: #{midblock_forward.4} parent=35 // pred_region
          %v394 = vld [vmem:[%s3] sm:$0xff]
          %v395 = vld [vmem:[%s3 + $0x8] sm:$0xff]
          %v396 = vld [vmem:[%s3 + $0x10] sm:$0xff]
          %v397 = vld [vmem:[%s3 + $0x18] sm:$0xff]
          %v398 = vld [vmem:[%s3 + $0x20] sm:$0xff]
          %v399 = vld [vmem:[%s3 + $0x28] sm:$0xff]
          %v400 = vld [vmem:[%s3 + $0x30] sm:$0xff]
          %v401 = vld [vmem:[%s3 + $0x38] sm:$0xff]
          %v402 = vld [vmem:[#allocation2] sm:$0x3]
          %v404 = vsel %vm293, %v402, 0
          %406 = vmatprep.subr.mxu0 0.0
          %407 = vmatpush1.msra.mxu0 %v394
          %408 = vmatprep.subr.mxu0 0.0
          %409 = vmatpush1.msra.mxu0 %v395
          %410 = vmatprep.subr.mxu0 0.0
          %411 = vmatpush1.msra.mxu0 %v396
          %412 = vmatprep.subr.mxu0 0.0
          %413 = vmatpush1.msra.mxu0 %v397
          %414 = vmatprep.subr.mxu0 0.0
          %415 = vmatpush1.msra.mxu0 %v398
          %416 = vmatprep.subr.mxu0 0.0
          %417 = vmatpush1.msra.mxu0 %v399
          %418 = vmatprep.subr.mxu0 0.0
          %419 = vmatpush1.msra.mxu0 %v400
          %420 = vmatprep.subr.mxu0 0.0
          %421 = vmatpush1.msra.mxu0 %v401
          %422 = vmatprep.subr.mxu0 0.0
          %423 = vmatpush1.msra.mxu0 0.0
          %424 = vmatprep.subr.mxu0 0.0
          %425 = vmatpush1.msra.mxu0 0.0
          %426 = vmatprep.subr.mxu0 0.0
          %427 = vmatpush1.msra.mxu0 0.0
          %428 = vmatprep.subr.mxu0 0.0
          %429 = vmatpush1.msra.mxu0 0.0
          %430 = vmatprep.subr.mxu0 0.0
          %431 = vmatpush1.msra.mxu0 0.0
          %432 = vmatprep.subr.mxu0 0.0
          %433 = vmatpush1.msra.mxu0 0.0
          %434 = vmatprep.subr.mxu0 0.0
          %435 = vmatpush1.msra.mxu0 0.0
          %436 = vmatprep.subr.mxu0 0.0
          %437 = vmatpush1.msra.mxu0 0.0
          %438 = vmatprep.subr.mxu0 0.0
          %439 = vmatpush1.msra.mxu0 0.0
          %440 = vmatprep.subr.mxu0 0.0
          %441 = vmatpush1.msra.mxu0 0.0
          %442 = vmatprep.subr.mxu0 0.0
          %443 = vmatpush1.msra.mxu0 0.0
          %444 = vmatprep.subr.mxu0 0.0
          %445 = vmatpush1.msra.mxu0 0.0
          %446 = vmatprep.subr.mxu0 0.0
          %447 = vmatpush1.msra.mxu0 0.0
          %448 = vmatprep.subr.mxu0 0.0
          %449 = vmatpush1.msra.mxu0 0.0
          %450 = vmatprep.subr.mxu0 0.0
          %451 = vmatpush1.msra.mxu0 0.0
          %452 = vmatprep.subr.mxu0 0.0
          %453 = vmatpush1.msra.mxu0 0.0
          %454 = vmatprep.subr.mxu0 0.0
          %455 = vmatpush1.msra.mxu0 0.0
          %456 = vmatprep.subr.mxu0 0.0
          %457 = vmatpush1.msra.mxu0 0.0
          %458 = vmatprep.subr.mxu0 0.0
          %459 = vmatpush1.msra.mxu0 0.0
          %460 = vmatprep.subr.mxu0 0.0
          %461 = vmatpush1.msra.mxu0 0.0
          %462 = vmatprep.subr.mxu0 0.0
          %463 = vmatpush1.msra.mxu0 0.0
          %464 = vmatprep.subr.mxu0 0.0
          %465 = vmatpush1.msra.mxu0 0.0
          %466 = vmatprep.subr.mxu0 0.0
          %467 = vmatpush1.msra.mxu0 0.0
          %468 = vmatprep.subr.mxu0 0.0
          %469 = vmatpush1.msra.mxu0 0.0
          %470 = vmatprep.mubr.f32.mxu0 0.0
          %471 = vmatmul.mubr.f32.gmra.mrb[0].mxu0 %v404
          %v472 = vpop.f32.mrb[0].mxu0
          %v473 = vadd.f32 0.0, %v472
          %v474 = vpop.f32.mrb[0].mxu0
          %475 = vdwg.mxu0
          %v476 = vrcp.pop 512.0
          %v477 = vmul.f32 %v473, %v476
          %v478 = vmul.f32 %v477, %v477
          %v480 = vrot.slane %v478, 7
          %v482 = vsub.f32 %v477, %v480
          %v483 = vadd.f32 %v482, 1e-05
          %v484 = vrsqrt.pop %v483
          %vm485 = vcmask 1040384
          %v486 = vsel %vm485, %v477, %v484
          %vm487 = vcmask 261120
          %v489 = vsel %vm487, %v486, 0
          %v492 = vsel %vm487, %v394, 0
          %v495 = vsel %vm487, %v395, 0
          %v498 = vsel %vm487, %v396, 0
          %v501 = vsel %vm487, %v397, 0
          %v504 = vsel %vm487, %v398, 0
          %v507 = vsel %vm487, %v399, 0
          %v510 = vsel %vm487, %v400, 0
          %v513 = vsel %vm487, %v401, 0
          %515 = vmatprep.subr.mxu0 0.0
          %516 = vmatpush1.xpose.msra.mxu0 %v492
          %517 = vmatprep.subr.mxu0 0.0
          %518 = vmatpush1.xpose.msra.mxu0 %v495
          %519 = vmatprep.subr.mxu0 0.0
          %520 = vmatpush1.xpose.msra.mxu0 %v498
          %521 = vmatprep.subr.mxu0 0.0
          %522 = vmatpush1.xpose.msra.mxu0 %v501
          %523 = vmatprep.subr.mxu0 0.0
          %524 = vmatpush1.xpose.msra.mxu0 %v504
          %525 = vmatprep.subr.mxu0 0.0
          %526 = vmatpush1.xpose.msra.mxu0 %v507
          %527 = vmatprep.subr.mxu0 0.0
          %528 = vmatpush1.xpose.msra.mxu0 %v510
          %529 = vmatprep.subr.mxu0 0.0
          %530 = vmatpush1.xpose.msra.mxu0 %v513
          %531 = vmatprep.subr.mxu0 0.0
          %532 = vmatpush1.xpose.msra.mxu0 0.0
          %533 = vmatprep.subr.mxu0 0.0
          %534 = vmatpush1.xpose.msra.mxu0 0.0
          %535 = vmatprep.subr.mxu0 0.0
          %536 = vmatpush1.xpose.msra.mxu0 0.0
          %537 = vmatprep.subr.mxu0 0.0
          %538 = vmatpush1.xpose.msra.mxu0 0.0
          %539 = vmatprep.subr.mxu0 0.0
          %540 = vmatpush1.xpose.msra.mxu0 0.0
          %541 = vmatprep.subr.mxu0 0.0
          %542 = vmatpush1.xpose.msra.mxu0 0.0
          %543 = vmatprep.subr.mxu0 0.0
          %544 = vmatpush1.xpose.msra.mxu0 0.0
          %545 = vmatprep.subr.mxu0 0.0
          %546 = vmatpush1.xpose.msra.mxu0 0.0
          %547 = vmatprep.subr.mxu0 0.0
          %548 = vmatpush1.xpose.msra.mxu0 0.0
          %549 = vmatprep.subr.mxu0 0.0
          %550 = vmatpush1.xpose.msra.mxu0 0.0
          %551 = vmatprep.subr.mxu0 0.0
          %552 = vmatpush1.xpose.msra.mxu0 0.0
          %553 = vmatprep.subr.mxu0 0.0
          %554 = vmatpush1.xpose.msra.mxu0 0.0
          %555 = vmatprep.subr.mxu0 0.0
          %556 = vmatpush1.xpose.msra.mxu0 0.0
          %557 = vmatprep.subr.mxu0 0.0
          %558 = vmatpush1.xpose.msra.mxu0 0.0
          %559 = vmatprep.subr.mxu0 0.0
          %560 = vmatpush1.xpose.msra.mxu0 0.0
          %561 = vmatprep.subr.mxu0 0.0
          %562 = vmatpush1.xpose.msra.mxu0 0.0
          %563 = vmatprep.subr.mxu0 0.0
          %564 = vmatpush1.xpose.msra.mxu0 0.0
          %565 = vmatprep.subr.mxu0 0.0
          %566 = vmatpush1.xpose.msra.mxu0 0.0
          %567 = vmatprep.subr.mxu0 0.0
          %568 = vmatpush1.xpose.msra.mxu0 0.0
          %569 = vmatprep.subr.mxu0 0.0
          %570 = vmatpush1.xpose.msra.mxu0 0.0
          %571 = vmatprep.subr.mxu0 0.0
          %572 = vmatpush1.xpose.msra.mxu0 0.0
          %573 = vmatprep.subr.mxu0 0.0
          %574 = vmatpush1.xpose.msra.mxu0 0.0
          %575 = vmatprep.subr.mxu0 0.0
          %576 = vmatpush1.xpose.msra.mxu0 0.0
          %577 = vmatprep.subr.mxu0 0.0
          %578 = vmatpush1.xpose.msra.mxu0 0.0
          %579 = vmatprep.mubr.f32.mxu0 0.0
          %580 = vmatmul.mubr.f32.gmra.mrb[0].mxu0 %v489
          %v581 = vpop.f32.mrb[0].mxu0
          %v582 = vadd.f32 0.0, %v581
          %v583 = vpop.f32.mrb[0].mxu0
          %584 = vdwg.mxu0
          %v585 = vld [vmem:[%s1] sm:$0x1]
          %v587 = vlaneseq
          %v588 = vshrl.u32 %v587, 7
          %v589 = vsub.s32 0, %v588
          %v590 = vrot.slane %v585, %v589
          %v592 = vmul.f32 %v582, %v590
          %vm593 = vcmask 517121
          %594 = vst.msk [vmem:[%s262 - $0x1] sm:$0x2] %vm593, %v592
          %v595 = vld [vmem:[%s2] sm:$0x1]
          %v597 = vrot.slane %v592, 1
          %v599 = vmul.f32 %v582, %v597
          %v600 = vsub.f32 %v595, %v599
          %601 = vst.msk [vmem:[%s268] sm:$0x1] %vm332, %v600
        $region48: #{midblock_forward.4} parent=35 // pred_fallthru
          _
        %s602 = sand.u32 %s137, 1
        %s603 = scalar_lea.sflag [#allocation5], %s602
        %s604 = sand.u32 %s137, 1
        %s605 = scalar_lea.vmem [#allocation6], %s604
        %s606 = sand.u32 %s163, 1
        %s607 = scalar_lea.sflag [#allocation8], %s606
        %s608 = sand.u32 %s163, 1
        %s609 = scalar_lea.vmem [#allocation7], %s608
        // Predicated region
        $region49: #{midblock_forward.4} parent=35 // pred_check
          %p610 = pneg %p147
        $region50: #{midblock_forward.4} parent=35 // pred_check_branch
          %612 = sbr.rel (%p610) target = $region52
        $region51: #{midblock_forward.4} parent=35 // pred_region
          %s614 = ssub.s32 16, 16
          %615 = vsyncadd %s603, %s614
          %s616 = smul.addr %s30, 16
          %s617 = scalar_lea.hbm %s4, %s616
          %s619 = sshll.u32 %s605, 4
          %s620 = int_to_ptr.vmem [resolvable:$true] %s619
          %622 = dma.vmem_to_hbm [thread:$0]  %s620, 16, %s617, %s603
        $region52: #{midblock_forward.4} parent=35 // pred_fallthru
          _
        // Predicated region
        $region53: #{midblock_forward.4} parent=35 // pred_check
          %p623 = pneg %p173
        $region54: #{midblock_forward.4} parent=35 // pred_check_branch
          %625 = sbr.rel (%p623) target = $region56
        $region55: #{midblock_forward.4} parent=35 // pred_region
          %s627 = ssub.s32 16, 16
          %628 = vsyncadd %s607, %s627
          %s629 = smul.addr %s30, 16
          %s630 = scalar_lea.hbm %s5, %s629
          %s632 = sshll.u32 %s609, 4
          %s633 = int_to_ptr.vmem [resolvable:$true] %s632
          %635 = dma.vmem_to_hbm [thread:$0]  %s633, 16, %s630, %s607
        $region56: #{midblock_forward.4} parent=35 // pred_fallthru
          _
      $region36: #{midblock_forward.4} parent=5 // pred_fallthru
        _
      %p636 = scmp.le.s32.totalorder 2, %s21
      // Predicated region
      $region57: #{midblock_forward.4} parent=5 // pred_check
        %p637 = pneg %p636
      $region58: #{midblock_forward.4} parent=5 // pred_check_branch
        %639 = sbr.rel (%p637) target = $region60
      $region59: #{midblock_forward.4} parent=5 // pred_region
        %s640 = ssub.s32 %s21, 2
        // Predicated region
        $region61: #{midblock_forward.4} parent=59 // pred_check
          %p641 = pneg %p153
        $region62: #{midblock_forward.4} parent=59 // pred_check_branch
          %643 = sbr.rel (%p641) target = $region64
        $region63: #{midblock_forward.4} parent=59 // pred_region
          %s644 = sand.u32 %s138, 1
          %s645 = scalar_lea.sflag [#allocation5], %s644
          %s646 = sand.u32 %s138, 1
          %s647 = scalar_lea.vmem [#allocation6], %s646
          %648 = dma.done %s645, 16
        $region64: #{midblock_forward.4} parent=59 // pred_fallthru
          _
        // Predicated region
        $region65: #{midblock_forward.4} parent=59 // pred_check
          %p649 = pneg %p179
        $region66: #{midblock_forward.4} parent=59 // pred_check_branch
          %651 = sbr.rel (%p649) target = $region68
        $region67: #{midblock_forward.4} parent=59 // pred_region
          %s652 = sand.u32 %s164, 1
          %s653 = scalar_lea.sflag [#allocation8], %s652
          %s654 = sand.u32 %s164, 1
          %s655 = scalar_lea.vmem [#allocation7], %s654
          %656 = dma.done %s653, 16
        $region68: #{midblock_forward.4} parent=59 // pred_fallthru
          _
      $region60: #{midblock_forward.4} parent=5 // pred_fallthru
        _
    $region6: #{midblock_forward.4} parent=1 // loop_footer
      %s25 = sadd.s32 1, %s21
    $region7: #{midblock_forward.4} parent=1 // loop_footer_branch
      %20 = sbr.rel target = $region3
    $region8: #{midblock_forward.4} parent=1 // loop_exit
      _
    %657 = vsyncpa [#allocation4], 1
    %s658 = scalar_lea.sflag [#allocation4], 1
    %659 = vsyncpa %s658, 1
    %660 = vsyncpa [#allocation5], 1
    %s661 = scalar_lea.sflag [#allocation5], 1
    %662 = vsyncpa %s661, 1
    %663 = vsyncpa [#allocation8], 1
    %s664 = scalar_lea.sflag [#allocation8], 1
    %665 = vsyncpa %s664, 1

// kernel: midblock_forward.6
$region0: #{midblock_forward.6}
  #allocation0 [shape = 'u32[]', space=smem, size = 0x4, offset = 0x4, fixed_abs, tag = 'smem constant byte address 0x4 - core index']
  #allocation1 [shape = 'u32[144,128]{1,0:T(1,128)}', space=vmem, size = 0x12000, scoped, tag = 'internal scratch']
  #allocation2 [shape = 'f32[2,64]{1,0:T(2,128)}', space=vmem, size = 0x400, scoped, tag = 'scratch operand']
  %s0 = inlined_call_operand.hbm [shape: f32[2,16,16,64], index: 0, kind: input, shape index: {}]
  %s1 = inlined_call_operand.hbm [shape: f32[1,64], index: 1, kind: input, shape index: {}]
  %s2 = inlined_call_operand.hbm [shape: f32[1,64], index: 2, kind: input, shape index: {}]
  %s3 = inlined_call_operand.hbm [shape: f32[64,32], index: 3, kind: input, shape index: {}]
  %s4 = inlined_call_operand.hbm [shape: f32[2,1,64], index: 4, kind: output, shape index: {0}]
  %s5 = inlined_call_operand.hbm [shape: f32[2,1,64], index: 5, kind: output, shape index: {1}]
  %6 = xla_tuple %s4, %s5
  %s7 = sld [smem:[#allocation0]]
  $region81: #{midblock_forward.6} parent=0
    _
  %s9 = ssub.s32 1, %s7
  %s10 = scalar_select 0, %s9, %s7
  $region1: #{midblock_forward.6} parent=0
    #allocation3 [shape = 'u8[131072]{0}', space=vmem, size = 0x20000, scoped, tag = 'input window, operand 0']
    #allocation4 [shape = 's32[2]{0}', space=sflag, size = 0x8, scoped, tag = 'scoped memory for midblock_forward.6']
    #allocation5 [shape = 's32[2]{0}', space=sflag, size = 0x8, scoped, tag = 'scoped memory for midblock_forward.6']
    #allocation6 [shape = 'u8[512]{0}', space=vmem, size = 0x400, scoped, tag = 'input window, operand 1, single buffered']
    #allocation7 [shape = 's32[1]{0}', space=sflag, size = 0x4, scoped, tag = 'scoped memory for midblock_forward.6']
    #allocation8 [shape = 'u8[512]{0}', space=vmem, size = 0x400, scoped, tag = 'input window, operand 2, single buffered']
    #allocation9 [shape = 'u8[32768]{0}', space=vmem, size = 0x8000, scoped, tag = 'input window, operand 3, single buffered']
    #allocation10 [shape = 's32[1]{0}', space=sflag, size = 0x4, scoped, tag = 'scoped memory for midblock_forward.6']
    #allocation11 [shape = 'u8[1024]{0}', space=vmem, size = 0x400, scoped, tag = 'output window, operand 0']
    #allocation12 [shape = 'u8[1024]{0}', space=vmem, size = 0x400, scoped, tag = 'output window, operand 1']
    #allocation13 [shape = 's32[2]{0}', space=sflag, size = 0x8, scoped, tag = 'scoped memory for midblock_forward.6']
    %11 = vsyncpa [#allocation4], 0
    %s12 = scalar_lea.sflag [#allocation4], 1
    %13 = vsyncpa %s12, 0
    %14 = vsyncpa [#allocation7], 0
    %15 = vsyncpa [#allocation10], 0
    %16 = vsyncpa [#allocation5], 0
    %s17 = scalar_lea.sflag [#allocation5], 1
    %18 = vsyncpa %s17, 0
    %19 = vsyncpa [#allocation13], 0
    %s20 = scalar_lea.sflag [#allocation13], 1
    %21 = vsyncpa %s20, 0
    loop: start=0, step=1, limit=6
    $region2: #{midblock_forward.6} parent=1 // loop_pre_header
      _
    $region3: #{midblock_forward.6} parent=1 // loop_header
      %s23 = sphi 0, %s27
      %p24 = scmp.ge.s32.totalorder %s23, 6
      %s30 = sphi 0, %s42
      %s31 = sphi 0, %s38
      %s32 = sphi 0, %s30
      %s33 = sphi 0, %s31
      %s34 = sphi 0, %s32
      %s35 = sphi 0, %s33
      %s47 = sphi 0, %s49
      %s50 = sphi 0, %s47
      %s51 = sphi 0, %s50
      %s67 = sphi 0, %s51
      %s71 = sphi 0, %s71
      %s73 = sphi 0, %s71
      %s74 = sphi 0, %s73
      %s88 = sphi 0, %s74
      %s92 = sphi 0, %s92
      %s94 = sphi 0, %s92
      %s95 = sphi 0, %s94
      %s109 = sphi 0, %s95
      %s113 = sphi 0, %s113
      %s115 = sphi 0, %s113
      %s116 = sphi 0, %s115
      %s130 = sphi 0, %s116
      %s136 = sphi 0, %s138
      %s139 = sphi 0, %s136
      %s140 = sphi 0, %s139
      %s156 = sphi 0, %s140
      %s162 = sphi 0, %s164
      %s165 = sphi 0, %s162
      %s166 = sphi 0, %s165
      %s182 = sphi 0, %s166
    $region4: #{midblock_forward.6} parent=1 // loop_header_branch
      %26 = sbr.rel (%p24) target = $region8
    $region5: #{midblock_forward.6} parent=1 // loop_body
      %s28 = ssub.s32 %s23, 1
      %s29 = ssub.s32 %s23, 2
      %s36 = sadd.s32 1, %s31
      %p37 = scmp.ge.s32.totalorder %s36, 2
      %s38 = scalar_select %p37, 0, %s36
      %s39 = sadd.s32 1, %s30
      %s40 = scalar_select %p37, %s39, %s30
      %p41 = scmp.ge.s32.totalorder %s40, 2
      %s42 = scalar_select %p41, 0, %s40
      %s43 = ssub.s32 %s30, %s42
      %s44 = ssub.s32 %s31, %s38
      %s45 = sor.u32 %s43, %s44
      %p46 = scmp.eq.s32.totalorder %s45, 0
      %s48 = sadd.s32 %s47, 1
      %s49 = scalar_select %p46, %s47, %s48
      %p52 = pneg %p46
      %p53 = scmp.eq.s32.totalorder %s23, 3
      %p54 = por %p52, %p53
      %p55 = scmp.ne.s32.totalorder %s47, %s50
      %p56 = scmp.eq.s32.totalorder %s23, 0
      %p57 = por %p55, %p56
      %p58 = scmp.ne.s32.totalorder %s47, %s50
      %p59 = scmp.eq.s32.totalorder %s28, 3
      %p60 = por %p58, %p59
      %p61 = scmp.ne.s32.totalorder %s50, %s51
      %p62 = scmp.eq.s32.totalorder %s28, 0
      %p63 = por %p61, %p62
      %p64 = scmp.ne.s32.totalorder %s50, %s51
      %p65 = scmp.eq.s32.totalorder %s29, 3
      %p66 = por %p64, %p65
      %p68 = scmp.ne.s32.totalorder %s51, %s67
      %p69 = scmp.eq.s32.totalorder %s29, 0
      %p70 = por %p68, %p69
      %s72 = sadd.s32 %s71, 1
      %p75 = scmp.eq.s32.totalorder %s23, 3
      %p76 = scmp.ne.s32.totalorder %s71, %s73
      %p77 = scmp.eq.s32.totalorder %s23, 0
      %p78 = por %p76, %p77
      %p79 = scmp.ne.s32.totalorder %s71, %s73
      %p80 = scmp.eq.s32.totalorder %s28, 3
      %p81 = por %p79, %p80
      %p82 = scmp.ne.s32.totalorder %s73, %s74
      %p83 = scmp.eq.s32.totalorder %s28, 0
      %p84 = por %p82, %p83
      %p85 = scmp.ne.s32.totalorder %s73, %s74
      %p86 = scmp.eq.s32.totalorder %s29, 3
      %p87 = por %p85, %p86
      %p89 = scmp.ne.s32.totalorder %s74, %s88
      %p90 = scmp.eq.s32.totalorder %s29, 0
      %p91 = por %p89, %p90
      %s93 = sadd.s32 %s92, 1
      %p96 = scmp.eq.s32.totalorder %s23, 3
      %p97 = scmp.ne.s32.totalorder %s92, %s94
      %p98 = scmp.eq.s32.totalorder %s23, 0
      %p99 = por %p97, %p98
      %p100 = scmp.ne.s32.totalorder %s92, %s94
      %p101 = scmp.eq.s32.totalorder %s28, 3
      %p102 = por %p100, %p101
      %p103 = scmp.ne.s32.totalorder %s94, %s95
      %p104 = scmp.eq.s32.totalorder %s28, 0
      %p105 = por %p103, %p104
      %p106 = scmp.ne.s32.totalorder %s94, %s95
      %p107 = scmp.eq.s32.totalorder %s29, 3
      %p108 = por %p106, %p107
      %p110 = scmp.ne.s32.totalorder %s95, %s109
      %p111 = scmp.eq.s32.totalorder %s29, 0
      %p112 = por %p110, %p111
      %s114 = sadd.s32 %s113, 1
      %p117 = scmp.eq.s32.totalorder %s23, 3
      %p118 = scmp.ne.s32.totalorder %s113, %s115
      %p119 = scmp.eq.s32.totalorder %s23, 0
      %p120 = por %p118, %p119
      %p121 = scmp.ne.s32.totalorder %s113, %s115
      %p122 = scmp.eq.s32.totalorder %s28, 3
      %p123 = por %p121, %p122
      %p124 = scmp.ne.s32.totalorder %s115, %s116
      %p125 = scmp.eq.s32.totalorder %s28, 0
      %p126 = por %p124, %p125
      %p127 = scmp.ne.s32.totalorder %s115, %s116
      %p128 = scmp.eq.s32.totalorder %s29, 3
      %p129 = por %p127, %p128
      %p131 = scmp.ne.s32.totalorder %s116, %s130
      %p132 = scmp.eq.s32.totalorder %s29, 0
      %p133 = por %p131, %p132
      %s134 = ssub.s32 %s30, %s42
      %p135 = scmp.eq.s32.totalorder %s134, 0
      %s137 = sadd.s32 %s136, 1
      %s138 = scalar_select %p135, %s136, %s137
      %p141 = pneg %p135
      %p142 = scmp.eq.s32.totalorder %s23, 3
      %p143 = por %p141, %p142
      %p144 = scmp.ne.s32.totalorder %s136, %s139
      %p145 = scmp.eq.s32.totalorder %s23, 0
      %p146 = por %p144, %p145
      %p147 = scmp.ne.s32.totalorder %s136, %s139
      %p148 = scmp.eq.s32.totalorder %s28, 3
      %p149 = por %p147, %p148
      %p150 = scmp.ne.s32.totalorder %s139, %s140
      %p151 = scmp.eq.s32.totalorder %s28, 0
      %p152 = por %p150, %p151
      %p153 = scmp.ne.s32.totalorder %s139, %s140
      %p154 = scmp.eq.s32.totalorder %s29, 3
      %p155 = por %p153, %p154
      %p157 = scmp.ne.s32.totalorder %s140, %s156
      %p158 = scmp.eq.s32.totalorder %s29, 0
      %p159 = por %p157, %p158
      %s160 = ssub.s32 %s30, %s42
      %p161 = scmp.eq.s32.totalorder %s160, 0
      %s163 = sadd.s32 %s162, 1
      %s164 = scalar_select %p161, %s162, %s163
      %p167 = pneg %p161
      %p168 = scmp.eq.s32.totalorder %s23, 3
      %p169 = por %p167, %p168
      %p170 = scmp.ne.s32.totalorder %s162, %s165
      %p171 = scmp.eq.s32.totalorder %s23, 0
      %p172 = por %p170, %p171
      %p173 = scmp.ne.s32.totalorder %s162, %s165
      %p174 = scmp.eq.s32.totalorder %s28, 3
      %p175 = por %p173, %p174
      %p176 = scmp.ne.s32.totalorder %s165, %s166
      %p177 = scmp.eq.s32.totalorder %s28, 0
      %p178 = por %p176, %p177
      %p179 = scmp.ne.s32.totalorder %s165, %s166
      %p180 = scmp.eq.s32.totalorder %s29, 3
      %p181 = por %p179, %p180
      %p183 = scmp.ne.s32.totalorder %s166, %s182
      %p184 = scmp.eq.s32.totalorder %s29, 0
      %p185 = por %p183, %p184
      %p186 = scmp.le.s32.totalorder 1, %s23
      %p187 = scmp.lt.s32.totalorder %s23, 5
      %p188 = pnand %p186, %p187
      %p189 = pneg %p188
      // Predicated region
      $region9: #{midblock_forward.6} parent=5 // pred_check
        _
      $region10: #{midblock_forward.6} parent=5 // pred_check_branch
        %191 = sbr.rel (%p188) target = $region12
      $region11: #{midblock_forward.6} parent=5 // pred_region
        %s192 = ssub.s32 %s23, 1
        // Predicated region
        $region13: #{midblock_forward.6} parent=11 // pred_check
          %p193 = pneg %p84
        $region14: #{midblock_forward.6} parent=11 // pred_check_branch
          %195 = sbr.rel (%p193) target = $region16
        $region15: #{midblock_forward.6} parent=11 // pred_region
          %s197 = ssub.s32 16, 16
          %198 = vsyncadd [#allocation7], %s197
          %s200 = sshll.u32 [#allocation6], 4
          %s201 = int_to_ptr.vmem [resolvable:$true] %s200
          %203 = dma.hbm_to_vmem [thread:$0]  %s1, 16, %s201, [#allocation7]
        $region16: #{midblock_forward.6} parent=11 // pred_fallthru
          _
        // Predicated region
        $region17: #{midblock_forward.6} parent=11 // pred_check
          %p204 = pneg %p105
        $region18: #{midblock_forward.6} parent=11 // pred_check_branch
          %206 = sbr.rel (%p204) target = $region20
        $region19: #{midblock_forward.6} parent=11 // pred_region
          %s208 = ssub.s32 16, 16
          %209 = vsyncadd [#allocation7], %s208
          %s211 = sshll.u32 [#allocation8], 4
          %s212 = int_to_ptr.vmem [resolvable:$true] %s211
          %214 = dma.hbm_to_vmem [thread:$0]  %s2, 16, %s212, [#allocation7]
        $region20: #{midblock_forward.6} parent=11 // pred_fallthru
          _
        // Predicated region
        $region21: #{midblock_forward.6} parent=11 // pred_check
          %p215 = pneg %p126
        $region22: #{midblock_forward.6} parent=11 // pred_check_branch
          %217 = sbr.rel (%p215) target = $region24
        $region23: #{midblock_forward.6} parent=11 // pred_region
          %s219 = ssub.s32 1024, 1024
          %220 = vsyncadd [#allocation10], %s219
          %s221 = sshll.u32 [#allocation9], 4
          %s222 = int_to_ptr.vmem [resolvable:$true] %s221
          %227 = dma.hbm_to_vmem [thread:$0]  %s3, 1024, %s222, [#allocation10], 128, 128, 8
        $region24: #{midblock_forward.6} parent=11 // pred_fallthru
          _
      $region12: #{midblock_forward.6} parent=5 // pred_fallthru
        _
      %p228 = scmp.lt.s32.totalorder %s23, 4
      // Predicated region
      $region25: #{midblock_forward.6} parent=5 // pred_check
        %p229 = pneg %p228
      $region26: #{midblock_forward.6} parent=5 // pred_check_branch
        %231 = sbr.rel (%p229) target = $region28
      $region27: #{midblock_forward.6} parent=5 // pred_region
        // Predicated region
        $region29: #{midblock_forward.6} parent=27 // pred_check
          %p232 = pneg %p57
        $region30: #{midblock_forward.6} parent=27 // pred_check_branch
          %234 = sbr.rel (%p232) target = $region32
        $region31: #{midblock_forward.6} parent=27 // pred_region
          %s235 = sand.u32 %s47, 1
          %s236 = scalar_lea.sflag [#allocation4], %s235
          %s237 = sand.u32 %s47, 1
          %s238 = smul.addr %s237, 128
          %s239 = scalar_lea.vmem [#allocation3], %s238
          %s240 = smul.u32 8, %s31
          %s242 = ssub.s32 2048, 2048
          %243 = vsyncadd %s236, %s242
          %s244 = smul.addr %s240, 2
          %s245 = smul.addr %s30, 32
          %s246 = sadd.s32 %s244, %s245
          %s247 = smul.addr %s246, 128
          %s248 = scalar_lea.hbm %s0, %s247
          %s249 = sshll.u32 %s239, 4
          %s250 = int_to_ptr.vmem [resolvable:$true] %s249
          %255 = dma.hbm_to_vmem [thread:$0]  %s248, 2048, %s250, %s236, 128, 128, 8
        $region32: #{midblock_forward.6} parent=27 // pred_fallthru
          _
      $region28: #{midblock_forward.6} parent=5 // pred_fallthru
        _
      %p256 = scmp.le.s32.totalorder 1, %s23
      %p257 = scmp.lt.s32.totalorder %s23, 5
      %p258 = pnand %p256, %p257
      %p259 = pneg %p258
      // Predicated region
      $region33: #{midblock_forward.6} parent=5 // pred_check
        _
      $region34: #{midblock_forward.6} parent=5 // pred_check_branch
        %261 = sbr.rel (%p258) target = $region36
      $region35: #{midblock_forward.6} parent=5 // pred_region
        %s262 = ssub.s32 %s23, 1
        %s263 = sand.u32 %s50, 1
        %s264 = scalar_lea.sflag [#allocation4], %s263
        %s265 = sand.u32 %s50, 1
        %s266 = smul.addr %s265, 128
        %s267 = scalar_lea.vmem [#allocation3], %s266
        // Predicated region
        $region37: #{midblock_forward.6} parent=35 // pred_check
          %p268 = pneg %p63
        $region38: #{midblock_forward.6} parent=35 // pred_check_branch
          %270 = sbr.rel (%p268) target = $region40
        $region39: #{midblock_forward.6} parent=35 // pred_region
          %271 = dma.done %s264, 2048
        $region40: #{midblock_forward.6} parent=35 // pred_fallthru
          _
        // Predicated region
        $region41: #{midblock_forward.6} parent=35 // pred_check
          %p272 = pneg %p84
        $region42: #{midblock_forward.6} parent=35 // pred_check_branch
          %274 = sbr.rel (%p272) target = $region44
        $region43: #{midblock_forward.6} parent=35 // pred_region
          %275 = dma.done [#allocation7], 16
        $region44: #{midblock_forward.6} parent=35 // pred_fallthru
          _
        // Predicated region
        $region45: #{midblock_forward.6} parent=35 // pred_check
          %p276 = pneg %p105
        $region46: #{midblock_forward.6} parent=35 // pred_check_branch
          %278 = sbr.rel (%p276) target = $region48
        $region47: #{midblock_forward.6} parent=35 // pred_region
          %279 = dma.done [#allocation7], 16
        $region48: #{midblock_forward.6} parent=35 // pred_fallthru
          _
        // Predicated region
        $region49: #{midblock_forward.6} parent=35 // pred_check
          %p280 = pneg %p126
        $region50: #{midblock_forward.6} parent=35 // pred_check_branch
          %282 = sbr.rel (%p280) target = $region52
        $region51: #{midblock_forward.6} parent=35 // pred_region
          %283 = dma.done [#allocation10], 1024
        $region52: #{midblock_forward.6} parent=35 // pred_fallthru
          _
        %s284 = sand.u32 %s50, 1
        %s285 = scalar_lea.sflag [#allocation4], %s284
        %s286 = sand.u32 %s50, 1
        %s287 = smul.addr %s286, 128
        %s288 = scalar_lea.vmem [#allocation3], %s287
        %p289 = pneg %p63
        %p290 = pneg %p60
        %p291 = pneg %p84
        %p292 = pneg %p81
        %p293 = pneg %p105
        %p294 = pneg %p102
        %p295 = pneg %p126
        %p296 = pneg %p123
        %p297 = pneg %p152
        %p298 = pneg %p149
        %s299 = sand.u32 %s139, 1
        %s300 = scalar_lea.sflag [#allocation5], %s299
        %s301 = sand.u32 %s139, 1
        %s302 = scalar_lea.vmem [#allocation11], %s301
        %p303 = pneg %p178
        %p304 = pneg %p175
        %s305 = sand.u32 %s165, 1
        %s306 = scalar_lea.sflag [#allocation13], %s305
        %s307 = sand.u32 %s165, 1
        %s308 = scalar_lea.vmem [#allocation12], %s307
        %s309 = smul.u32 8, %s33
        %p310 = scmp.eq.s32.totalorder %s33, 0
        // Predicated region
        $region53: #{midblock_forward.6} parent=35 // pred_check
          %p311 = pneg %p310
        $region54: #{midblock_forward.6} parent=35 // pred_check_branch
          %313 = sbr.rel (%p311) target = $region56
        $region55: #{midblock_forward.6} parent=35 // pred_region
          %vm314 = vcmask 517120
          %315 = vst.msk [vmem:[#allocation2] sm:$0x3] %vm314, 0.0
        $region56: #{midblock_forward.6} parent=35 // pred_fallthru
          _
        %v316 = vld [vmem:[%s267] sm:$0xff]
        %v317 = vld [vmem:[%s267 + $0x8] sm:$0xff]
        %v318 = vld [vmem:[%s267 + $0x10] sm:$0xff]
        %v319 = vld [vmem:[%s267 + $0x18] sm:$0xff]
        %v320 = vld [vmem:[%s267 + $0x20] sm:$0xff]
        %v321 = vld [vmem:[%s267 + $0x28] sm:$0xff]
        %v322 = vld [vmem:[%s267 + $0x30] sm:$0xff]
        %v323 = vld [vmem:[%s267 + $0x38] sm:$0xff]
        %v324 = vld [vmem:[%s267 + $0x40] sm:$0xff]
        %v325 = vld [vmem:[%s267 + $0x48] sm:$0xff]
        %v326 = vld [vmem:[%s267 + $0x50] sm:$0xff]
        %v327 = vld [vmem:[%s267 + $0x58] sm:$0xff]
        %v328 = vld [vmem:[%s267 + $0x60] sm:$0xff]
        %v329 = vld [vmem:[%s267 + $0x68] sm:$0xff]
        %v330 = vld [vmem:[%s267 + $0x70] sm:$0xff]
        %v331 = vld [vmem:[%s267 + $0x78] sm:$0xff]
        %v332 = vld [vmem:[#allocation2] sm:$0x1]
        %vm333 = vcmask 523264
        %v334 = vsel %vm333, %v316, 0.0
        %v335 = vsel %vm333, %v317, 0.0
        %v336 = vadd.f32 %v334, %v335
        %v337 = vsel %vm333, %v318, 0.0
        %v338 = vadd.f32 %v336, %v337
        %v339 = vsel %vm333, %v319, 0.0
        %v340 = vadd.f32 %v338, %v339
        %v341 = vsel %vm333, %v320, 0.0
        %v342 = vadd.f32 %v340, %v341
        %v343 = vsel %vm333, %v321, 0.0
        %v344 = vadd.f32 %v342, %v343
        %v345 = vsel %vm333, %v322, 0.0
        %v346 = vadd.f32 %v344, %v345
        %v347 = vsel %vm333, %v323, 0.0
        %v348 = vadd.f32 %v346, %v347
        %v349 = vsel %vm333, %v324, 0.0
        %v350 = vadd.f32 %v348, %v349
        %v351 = vsel %vm333, %v325, 0.0
        %v352 = vadd.f32 %v350, %v351
        %v353 = vsel %vm333, %v326, 0.0
        %v354 = vadd.f32 %v352, %v353
        %v355 = vsel %vm333, %v327, 0.0
        %v356 = vadd.f32 %v354, %v355
        %v357 = vsel %vm333, %v328, 0.0
        %v358 = vadd.f32 %v356, %v357
        %v359 = vsel %vm333, %v329, 0.0
        %v360 = vadd.f32 %v358, %v359
        %v361 = vsel %vm333, %v330, 0.0
        %v362 = vadd.f32 %v360, %v361
        %v363 = vsel %vm333, %v331, 0.0
        %v364 = vadd.f32 %v362, %v363
        %v365 = vrot.slane %v364, 4
        %v366 = vadd.f32 %v364, %v365
        %v367 = vrot.slane %v366, 2
        %v368 = vadd.f32 %v366, %v367
        %v369 = vrot.slane %v368, 1
        %v370 = vadd.f32 %v368, %v369
        %v371 = vadd.f32 %v332, %v370
        %vm372 = vcmask 516096
        %373 = vst.msk [vmem:[#allocation2] sm:$0x1] %vm372, %v371
        %v374 = vld [vmem:[#allocation2 + $0x1] sm:$0x1]
        %v375 = vmul.f32 %v316, %v316
        %v376 = vmul.f32 %v317, %v317
        %v377 = vmul.f32 %v318, %v318
        %v378 = vmul.f32 %v319, %v319
        %v379 = vmul.f32 %v320, %v320
        %v380 = vmul.f32 %v321, %v321
        %v381 = vmul.f32 %v322, %v322
        %v382 = vmul.f32 %v323, %v323
        %v383 = vmul.f32 %v324, %v324
        %v384 = vmul.f32 %v325, %v325
        %v385 = vmul.f32 %v326, %v326
        %v386 = vmul.f32 %v327, %v327
        %v387 = vmul.f32 %v328, %v328
        %v388 = vmul.f32 %v329, %v329
        %v389 = vmul.f32 %v330, %v330
        %v390 = vmul.f32 %v331, %v331
        %v391 = vsel %vm333, %v375, 0.0
        %v392 = vsel %vm333, %v376, 0.0
        %v393 = vadd.f32 %v391, %v392
        %v394 = vsel %vm333, %v377, 0.0
        %v395 = vadd.f32 %v393, %v394
        %v396 = vsel %vm333, %v378, 0.0
        %v397 = vadd.f32 %v395, %v396
        %v398 = vsel %vm333, %v379, 0.0
        %v399 = vadd.f32 %v397, %v398
        %v400 = vsel %vm333, %v380, 0.0
        %v401 = vadd.f32 %v399, %v400
        %v402 = vsel %vm333, %v381, 0.0
        %v403 = vadd.f32 %v401, %v402
        %v404 = vsel %vm333, %v382, 0.0
        %v405 = vadd.f32 %v403, %v404
        %v406 = vsel %vm333, %v383, 0.0
        %v407 = vadd.f32 %v405, %v406
        %v408 = vsel %vm333, %v384, 0.0
        %v409 = vadd.f32 %v407, %v408
        %v410 = vsel %vm333, %v385, 0.0
        %v411 = vadd.f32 %v409, %v410
        %v412 = vsel %vm333, %v386, 0.0
        %v413 = vadd.f32 %v411, %v412
        %v414 = vsel %vm333, %v387, 0.0
        %v415 = vadd.f32 %v413, %v414
        %v416 = vsel %vm333, %v388, 0.0
        %v417 = vadd.f32 %v415, %v416
        %v418 = vsel %vm333, %v389, 0.0
        %v419 = vadd.f32 %v417, %v418
        %v420 = vsel %vm333, %v390, 0.0
        %v421 = vadd.f32 %v419, %v420
        %v422 = vrot.slane %v421, 4
        %v423 = vadd.f32 %v421, %v422
        %v424 = vrot.slane %v423, 2
        %v425 = vadd.f32 %v423, %v424
        %v426 = vrot.slane %v425, 1
        %v427 = vadd.f32 %v425, %v426
        %v428 = vadd.f32 %v374, %v427
        %429 = vst.msk [vmem:[#allocation2 + $0x1] sm:$0x1] %vm372, %v428
        %p430 = scmp.eq.s32.totalorder %s33, 1
        // Predicated region
        $region57: #{midblock_forward.6} parent=35 // pred_check
          %p431 = pneg %p430
        $region58: #{midblock_forward.6} parent=35 // pred_check_branch
          %433 = sbr.rel (%p431) target = $region60
        $region59: #{midblock_forward.6} parent=35 // pred_region
          %v434 = vld [vmem:[#allocation9] sm:$0xff]
          %v435 = vld [vmem:[#allocation9 + $0x8] sm:$0xff]
          %v436 = vld [vmem:[#allocation9 + $0x10] sm:$0xff]
          %v437 = vld [vmem:[#allocation9 + $0x18] sm:$0xff]
          %v438 = vld [vmem:[#allocation9 + $0x20] sm:$0xff]
          %v439 = vld [vmem:[#allocation9 + $0x28] sm:$0xff]
          %v440 = vld [vmem:[#allocation9 + $0x30] sm:$0xff]
          %v441 = vld [vmem:[#allocation9 + $0x38] sm:$0xff]
          %v442 = vld [vmem:[#allocation2] sm:$0x3]
          %v444 = vsel %vm333, %v442, 0
          %446 = vmatprep.subr.mxu0 0.0
          %447 = vmatpush1.msra.mxu0 %v434
          %448 = vmatprep.subr.mxu0 0.0
          %449 = vmatpush1.msra.mxu0 %v435
          %450 = vmatprep.subr.mxu0 0.0
          %451 = vmatpush1.msra.mxu0 %v436
          %452 = vmatprep.subr.mxu0 0.0
          %453 = vmatpush1.msra.mxu0 %v437
          %454 = vmatprep.subr.mxu0 0.0
          %455 = vmatpush1.msra.mxu0 %v438
          %456 = vmatprep.subr.mxu0 0.0
          %457 = vmatpush1.msra.mxu0 %v439
          %458 = vmatprep.subr.mxu0 0.0
          %459 = vmatpush1.msra.mxu0 %v440
          %460 = vmatprep.subr.mxu0 0.0
          %461 = vmatpush1.msra.mxu0 %v441
          %462 = vmatprep.subr.mxu0 0.0
          %463 = vmatpush1.msra.mxu0 0.0
          %464 = vmatprep.subr.mxu0 0.0
          %465 = vmatpush1.msra.mxu0 0.0
          %466 = vmatprep.subr.mxu0 0.0
          %467 = vmatpush1.msra.mxu0 0.0
          %468 = vmatprep.subr.mxu0 0.0
          %469 = vmatpush1.msra.mxu0 0.0
          %470 = vmatprep.subr.mxu0 0.0
          %471 = vmatpush1.msra.mxu0 0.0
          %472 = vmatprep.subr.mxu0 0.0
          %473 = vmatpush1.msra.mxu0 0.0
          %474 = vmatprep.subr.mxu0 0.0
          %475 = vmatpush1.msra.mxu0 0.0
          %476 = vmatprep.subr.mxu0 0.0
          %477 = vmatpush1.msra.mxu0 0.0
          %478 = vmatprep.subr.mxu0 0.0
          %479 = vmatpush1.msra.mxu0 0.0
          %480 = vmatprep.subr.mxu0 0.0
          %481 = vmatpush1.msra.mxu0 0.0
          %482 = vmatprep.subr.mxu0 0.0
          %483 = vmatpush1.msra.mxu0 0.0
          %484 = vmatprep.subr.mxu0 0.0
          %485 = vmatpush1.msra.mxu0 0.0
          %486 = vmatprep.subr.mxu0 0.0
          %487 = vmatpush1.msra.mxu0 0.0
          %488 = vmatprep.subr.mxu0 0.0
          %489 = vmatpush1.msra.mxu0 0.0
          %490 = vmatprep.subr.mxu0 0.0
          %491 = vmatpush1.msra.mxu0 0.0
          %492 = vmatprep.subr.mxu0 0.0
          %493 = vmatpush1.msra.mxu0 0.0
          %494 = vmatprep.subr.mxu0 0.0
          %495 = vmatpush1.msra.mxu0 0.0
          %496 = vmatprep.subr.mxu0 0.0
          %497 = vmatpush1.msra.mxu0 0.0
          %498 = vmatprep.subr.mxu0 0.0
          %499 = vmatpush1.msra.mxu0 0.0
          %500 = vmatprep.subr.mxu0 0.0
          %501 = vmatpush1.msra.mxu0 0.0
          %502 = vmatprep.subr.mxu0 0.0
          %503 = vmatpush1.msra.mxu0 0.0
          %504 = vmatprep.subr.mxu0 0.0
          %505 = vmatpush1.msra.mxu0 0.0
          %506 = vmatprep.subr.mxu0 0.0
          %507 = vmatpush1.msra.mxu0 0.0
          %508 = vmatprep.subr.mxu0 0.0
          %509 = vmatpush1.msra.mxu0 0.0
          %510 = vmatprep.mubr.f32.mxu0 0.0
          %511 = vmatmul.mubr.f32.gmra.mrb[0].mxu0 %v444
          %v512 = vpop.f32.mrb[0].mxu0
          %v513 = vadd.f32 0.0, %v512
          %v514 = vpop.f32.mrb[0].mxu0
          %515 = vdwg.mxu0
          %v516 = vrcp.pop 512.0
          %v517 = vmul.f32 %v513, %v516
          %v518 = vmul.f32 %v517, %v517
          %v520 = vrot.slane %v518, 7
          %v522 = vsub.f32 %v517, %v520
          %v523 = vadd.f32 %v522, 1e-05
          %v524 = vrsqrt.pop %v523
          %vm525 = vcmask 1040384
          %v526 = vsel %vm525, %v517, %v524
          %vm527 = vcmask 261120
          %v529 = vsel %vm527, %v526, 0
          %v532 = vsel %vm527, %v434, 0
          %v535 = vsel %vm527, %v435, 0
          %v538 = vsel %vm527, %v436, 0
          %v541 = vsel %vm527, %v437, 0
          %v544 = vsel %vm527, %v438, 0
          %v547 = vsel %vm527, %v439, 0
          %v550 = vsel %vm527, %v440, 0
          %v553 = vsel %vm527, %v441, 0
          %555 = vmatprep.subr.mxu0 0.0
          %556 = vmatpush1.xpose.msra.mxu0 %v532
          %557 = vmatprep.subr.mxu0 0.0
          %558 = vmatpush1.xpose.msra.mxu0 %v535
          %559 = vmatprep.subr.mxu0 0.0
          %560 = vmatpush1.xpose.msra.mxu0 %v538
          %561 = vmatprep.subr.mxu0 0.0
          %562 = vmatpush1.xpose.msra.mxu0 %v541
          %563 = vmatprep.subr.mxu0 0.0
          %564 = vmatpush1.xpose.msra.mxu0 %v544
          %565 = vmatprep.subr.mxu0 0.0
          %566 = vmatpush1.xpose.msra.mxu0 %v547
          %567 = vmatprep.subr.mxu0 0.0
          %568 = vmatpush1.xpose.msra.mxu0 %v550
          %569 = vmatprep.subr.mxu0 0.0
          %570 = vmatpush1.xpose.msra.mxu0 %v553
          %571 = vmatprep.subr.mxu0 0.0
          %572 = vmatpush1.xpose.msra.mxu0 0.0
          %573 = vmatprep.subr.mxu0 0.0
          %574 = vmatpush1.xpose.msra.mxu0 0.0
          %575 = vmatprep.subr.mxu0 0.0
          %576 = vmatpush1.xpose.msra.mxu0 0.0
          %577 = vmatprep.subr.mxu0 0.0
          %578 = vmatpush1.xpose.msra.mxu0 0.0
          %579 = vmatprep.subr.mxu0 0.0
          %580 = vmatpush1.xpose.msra.mxu0 0.0
          %581 = vmatprep.subr.mxu0 0.0
          %582 = vmatpush1.xpose.msra.mxu0 0.0
          %583 = vmatprep.subr.mxu0 0.0
          %584 = vmatpush1.xpose.msra.mxu0 0.0
          %585 = vmatprep.subr.mxu0 0.0
          %586 = vmatpush1.xpose.msra.mxu0 0.0
          %587 = vmatprep.subr.mxu0 0.0
          %588 = vmatpush1.xpose.msra.mxu0 0.0
          %589 = vmatprep.subr.mxu0 0.0
          %590 = vmatpush1.xpose.msra.mxu0 0.0
          %591 = vmatprep.subr.mxu0 0.0
          %592 = vmatpush1.xpose.msra.mxu0 0.0
          %593 = vmatprep.subr.mxu0 0.0
          %594 = vmatpush1.xpose.msra.mxu0 0.0
          %595 = vmatprep.subr.mxu0 0.0
          %596 = vmatpush1.xpose.msra.mxu0 0.0
          %597 = vmatprep.subr.mxu0 0.0
          %598 = vmatpush1.xpose.msra.mxu0 0.0
          %599 = vmatprep.subr.mxu0 0.0
          %600 = vmatpush1.xpose.msra.mxu0 0.0
          %601 = vmatprep.subr.mxu0 0.0
          %602 = vmatpush1.xpose.msra.mxu0 0.0
          %603 = vmatprep.subr.mxu0 0.0
          %604 = vmatpush1.xpose.msra.mxu0 0.0
          %605 = vmatprep.subr.mxu0 0.0
          %606 = vmatpush1.xpose.msra.mxu0 0.0
          %607 = vmatprep.subr.mxu0 0.0
          %608 = vmatpush1.xpose.msra.mxu0 0.0
          %609 = vmatprep.subr.mxu0 0.0
          %610 = vmatpush1.xpose.msra.mxu0 0.0
          %611 = vmatprep.subr.mxu0 0.0
          %612 = vmatpush1.xpose.msra.mxu0 0.0
          %613 = vmatprep.subr.mxu0 0.0
          %614 = vmatpush1.xpose.msra.mxu0 0.0
          %615 = vmatprep.subr.mxu0 0.0
          %616 = vmatpush1.xpose.msra.mxu0 0.0
          %617 = vmatprep.subr.mxu0 0.0
          %618 = vmatpush1.xpose.msra.mxu0 0.0
          %619 = vmatprep.mubr.f32.mxu0 0.0
          %620 = vmatmul.mubr.f32.gmra.mrb[0].mxu0 %v529
          %v621 = vpop.f32.mrb[0].mxu0
          %v622 = vadd.f32 0.0, %v621
          %v623 = vpop.f32.mrb[0].mxu0
          %624 = vdwg.mxu0
          %v625 = vld [vmem:[#allocation6] sm:$0x1]
          %v627 = vlaneseq
          %v628 = vshrl.u32 %v627, 7
          %v629 = vsub.s32 0, %v628
          %v630 = vrot.slane %v625, %v629
          %v632 = vmul.f32 %v622, %v630
          %vm633 = vcmask 517121
          %634 = vst.msk [vmem:[%s302 - $0x1] sm:$0x2] %vm633, %v632
          %v635 = vld [vmem:[#allocation8] sm:$0x1]
          %v637 = vrot.slane %v632, 1
          %v639 = vmul.f32 %v622, %v637
          %v640 = vsub.f32 %v635, %v639
          %641 = vst.msk [vmem:[%s308] sm:$0x1] %vm372, %v640
        $region60: #{midblock_forward.6} parent=35 // pred_fallthru
          _
        %s642 = sand.u32 %s139, 1
        %s643 = scalar_lea.sflag [#allocation5], %s642
        %s644 = sand.u32 %s139, 1
        %s645 = scalar_lea.vmem [#allocation11], %s644
        %s646 = sand.u32 %s165, 1
        %s647 = scalar_lea.sflag [#allocation13], %s646
        %s648 = sand.u32 %s165, 1
        %s649 = scalar_lea.vmem [#allocation12], %s648
        // Predicated region
        $region61: #{midblock_forward.6} parent=35 // pred_check
          %p650 = pneg %p149
        $region62: #{midblock_forward.6} parent=35 // pred_check_branch
          %652 = sbr.rel (%p650) target = $region64
        $region63: #{midblock_forward.6} parent=35 // pred_region
          %s654 = ssub.s32 16, 16
          %655 = vsyncadd %s643, %s654
          %s656 = smul.addr %s32, 16
          %s657 = scalar_lea.hbm %s4, %s656
          %s659 = sshll.u32 %s645, 4
          %s660 = int_to_ptr.vmem [resolvable:$true] %s659
          %662 = dma.vmem_to_hbm [thread:$0]  %s660, 16, %s657, %s643
        $region64: #{midblock_forward.6} parent=35 // pred_fallthru
          _
        // Predicated region
        $region65: #{midblock_forward.6} parent=35 // pred_check
          %p663 = pneg %p175
        $region66: #{midblock_forward.6} parent=35 // pred_check_branch
          %665 = sbr.rel (%p663) target = $region68
        $region67: #{midblock_forward.6} parent=35 // pred_region
          %s667 = ssub.s32 16, 16
          %668 = vsyncadd %s647, %s667
          %s669 = smul.addr %s32, 16
          %s670 = scalar_lea.hbm %s5, %s669
          %s672 = sshll.u32 %s649, 4
          %s673 = int_to_ptr.vmem [resolvable:$true] %s672
          %675 = dma.vmem_to_hbm [thread:$0]  %s673, 16, %s670, %s647
        $region68: #{midblock_forward.6} parent=35 // pred_fallthru
          _
      $region36: #{midblock_forward.6} parent=5 // pred_fallthru
        _
      %p676 = scmp.le.s32.totalorder 2, %s23
      // Predicated region
      $region69: #{midblock_forward.6} parent=5 // pred_check
        %p677 = pneg %p676
      $region70: #{midblock_forward.6} parent=5 // pred_check_branch
        %679 = sbr.rel (%p677) target = $region72
      $region71: #{midblock_forward.6} parent=5 // pred_region
        %s680 = ssub.s32 %s23, 2
        // Predicated region
        $region73: #{midblock_forward.6} parent=71 // pred_check
          %p681 = pneg %p155
        $region74: #{midblock_forward.6} parent=71 // pred_check_branch
          %683 = sbr.rel (%p681) target = $region76
        $region75: #{midblock_forward.6} parent=71 // pred_region
          %s684 = sand.u32 %s140, 1
          %s685 = scalar_lea.sflag [#allocation5], %s684
          %s686 = sand.u32 %s140, 1
          %s687 = scalar_lea.vmem [#allocation11], %s686
          %688 = dma.done %s685, 16
        $region76: #{midblock_forward.6} parent=71 // pred_fallthru
          _
        // Predicated region
        $region77: #{midblock_forward.6} parent=71 // pred_check
          %p689 = pneg %p181
        $region78: #{midblock_forward.6} parent=71 // pred_check_branch
          %691 = sbr.rel (%p689) target = $region80
        $region79: #{midblock_forward.6} parent=71 // pred_region
          %s692 = sand.u32 %s166, 1
          %s693 = scalar_lea.sflag [#allocation13], %s692
          %s694 = sand.u32 %s166, 1
          %s695 = scalar_lea.vmem [#allocation12], %s694
          %696 = dma.done %s693, 16
        $region80: #{midblock_forward.6} parent=71 // pred_fallthru
          _
      $region72: #{midblock_forward.6} parent=5 // pred_fallthru
        _
    $region6: #{midblock_forward.6} parent=1 // loop_footer
      %s27 = sadd.s32 1, %s23
    $region7: #{midblock_forward.6} parent=1 // loop_footer_branch
      %22 = sbr.rel target = $region3
    $region8: #{midblock_forward.6} parent=1 // loop_exit
      _
    %697 = vsyncpa [#allocation4], 1
    %s698 = scalar_lea.sflag [#allocation4], 1
    %699 = vsyncpa %s698, 1
    %700 = vsyncpa [#allocation7], 1
    %701 = vsyncpa [#allocation10], 1
    %702 = vsyncpa [#allocation5], 1
    %s703 = scalar_lea.sflag [#allocation5], 1
    %704 = vsyncpa %s703, 1
    %705 = vsyncpa [#allocation13], 1
    %s706 = scalar_lea.sflag [#allocation13], 1
    %707 = vsyncpa %s706, 1

// kernel: midblock_forward.5
$region0: #{midblock_forward.5}
  #allocation0 [shape = 'u32[]', space=smem, size = 0x4, offset = 0x4, fixed_abs, tag = 'smem constant byte address 0x4 - core index']
  #allocation1 [shape = 'u32[144,128]{1,0:T(1,128)}', space=vmem, size = 0x12000, scoped, tag = 'internal scratch']
  #allocation2 [shape = 'f32[11,24,64]{2,1,0:T(8,128)}', space=vmem, size = 0x21000, scoped, tag = 'scratch operand']
  #allocation3 [shape = 'f32[192,64]{1,0:T(8,128)}', space=vmem, size = 0x18000, scoped, tag = 'scratch operand']
  %s0 = inlined_call_operand.hbm [shape: f32[2,16,16,64], index: 0, kind: input, shape index: {}, may-alias: {0,1,2}]
  %s1 = inlined_call_operand.hbm [shape: f32[2,16,16,64], index: 1, kind: input, shape index: {}, may-alias: {0,1,2}]
  %s2 = inlined_call_operand.hbm [shape: f32[2,16,16,64], index: 2, kind: input, shape index: {}, may-alias: {0,1,2}]
  %s3 = inlined_call_operand.hbm [shape: f32[2,1,64], index: 3, kind: input, shape index: {}]
  %s4 = inlined_call_operand.hbm [shape: f32[2,1,64], index: 4, kind: input, shape index: {}]
  %s5 = inlined_call_operand.hbm [shape: bf16[9,64,64], index: 5, kind: input, shape index: {}]
  %s6 = inlined_call_operand.hbm [shape: f32[1,64], index: 6, kind: input, shape index: {}]
  %s7 = inlined_call_operand.hbm [shape: f32[2,16,16,64], index: 7, kind: output, shape index: {}]
  %s8 = sld [smem:[#allocation0]]
  $region89: #{midblock_forward.5} parent=0
    _
  %s10 = ssub.s32 1, %s8
  %s11 = scalar_select 0, %s10, %s8
  $region1: #{midblock_forward.5} parent=0
    #allocation4 [shape = 'u8[131072]{0}', space=vmem, size = 0x20000, scoped, tag = 'input window, operand 0']
    #allocation5 [shape = 's32[2]{0}', space=sflag, size = 0x8, scoped, tag = 'scoped memory for midblock_forward.5']
    #allocation6 [shape = 's32[2]{0}', space=sflag, size = 0x8, scoped, tag = 'scoped memory for midblock_forward.5']
    #allocation7 [shape = 'u8[16384]{0}', space=vmem, size = 0x4000, scoped, tag = 'input window, operand 1']
    #allocation8 [shape = 's32[2]{0}', space=sflag, size = 0x8, scoped, tag = 'scoped memory for midblock_forward.5']
    #allocation9 [shape = 'u8[16384]{0}', space=vmem, size = 0x4000, scoped, tag = 'input window, operand 2']
    #allocation10 [shape = 'u8[1024]{0}', space=vmem, size = 0x400, scoped, tag = 'input window, operand 3']
    #allocation11 [shape = 's32[2]{0}', space=sflag, size = 0x8, scoped, tag = 'scoped memory for midblock_forward.5']
    #allocation12 [shape = 'u8[1024]{0}', space=vmem, size = 0x400, scoped, tag = 'input window, operand 4']
    #allocation13 [shape = 'u8[147456]{0}', space=vmem, size = 0x24000, scoped, tag = 'input window, operand 5, single buffered']
    #allocation14 [shape = 's32[1]{0}', space=sflag, size = 0x4, scoped, tag = 'scoped memory for midblock_forward.5']
    #allocation15 [shape = 'u8[512]{0}', space=vmem, size = 0x400, scoped, tag = 'input window, operand 6, single buffered']
    #allocation16 [shape = 'u8[131072]{0}', space=vmem, size = 0x20000, scoped, tag = 'output window, operand 0']
    %12 = vsyncpa [#allocation5], 0
    %s13 = scalar_lea.sflag [#allocation5], 1
    %14 = vsyncpa %s13, 0
    %15 = vsyncpa [#allocation8], 0
    %s16 = scalar_lea.sflag [#allocation8], 1
    %17 = vsyncpa %s16, 0
    %18 = vsyncpa [#allocation11], 0
    %s19 = scalar_lea.sflag [#allocation11], 1
    %20 = vsyncpa %s19, 0
    %21 = vsyncpa [#allocation14], 0
    %22 = vsyncpa [#allocation6], 0
    %s23 = scalar_lea.sflag [#allocation6], 1
    %24 = vsyncpa %s23, 0
    loop: start=0, step=1, limit=6
    $region2: #{midblock_forward.5} parent=1 // loop_pre_header
      _
    $region3: #{midblock_forward.5} parent=1 // loop_header
      %s26 = sphi 0, %s30
      %p27 = scmp.ge.s32.totalorder %s26, 6
      %s33 = sphi 0, %s45
      %s34 = sphi 0, %s41
      %s35 = sphi 0, %s33
      %s36 = sphi 0, %s34
      %s37 = sphi 0, %s35
      %s38 = sphi 0, %s36
      %s50 = sphi 0, %s52
      %s53 = sphi 0, %s50
      %s54 = sphi 0, %s53
      %s70 = sphi 0, %s54
      %s86 = sphi 0, %s88
      %s89 = sphi 0, %s86
      %s90 = sphi 0, %s89
      %s106 = sphi 0, %s90
      %s122 = sphi 0, %s124
      %s125 = sphi 0, %s122
      %s126 = sphi 0, %s125
      %s142 = sphi 0, %s126
      %s148 = sphi 0, %s150
      %s151 = sphi 0, %s148
      %s152 = sphi 0, %s151
      %s168 = sphi 0, %s152
      %s174 = sphi 0, %s176
      %s177 = sphi 0, %s174
      %s178 = sphi 0, %s177
      %s194 = sphi 0, %s178
      %s198 = sphi 0, %s198
      %s200 = sphi 0, %s198
      %s201 = sphi 0, %s200
      %s215 = sphi 0, %s201
      %s219 = sphi 0, %s219
      %s221 = sphi 0, %s219
      %s222 = sphi 0, %s221
      %s236 = sphi 0, %s222
      %s244 = sphi 0, %s246
      %s247 = sphi 0, %s244
      %s248 = sphi 0, %s247
      %s264 = sphi 0, %s248
    $region4: #{midblock_forward.5} parent=1 // loop_header_branch
      %29 = sbr.rel (%p27) target = $region8
    $region5: #{midblock_forward.5} parent=1 // loop_body
      %s31 = ssub.s32 %s26, 1
      %s32 = ssub.s32 %s26, 2
      %s39 = sadd.s32 1, %s34
      %p40 = scmp.ge.s32.totalorder %s39, 2
      %s41 = scalar_select %p40, 0, %s39
      %s42 = sadd.s32 1, %s33
      %s43 = scalar_select %p40, %s42, %s33
      %p44 = scmp.ge.s32.totalorder %s43, 2
      %s45 = scalar_select %p44, 0, %s43
      %s46 = ssub.s32 %s33, %s45
      %s47 = ssub.s32 %s34, %s41
      %s48 = sor.u32 %s46, %s47
      %p49 = scmp.eq.s32.totalorder %s48, 0
      %s51 = sadd.s32 %s50, 1
      %s52 = scalar_select %p49, %s50, %s51
      %p55 = pneg %p49
      %p56 = scmp.eq.s32.totalorder %s26, 3
      %p57 = por %p55, %p56
      %p58 = scmp.ne.s32.totalorder %s50, %s53
      %p59 = scmp.eq.s32.totalorder %s26, 0
      %p60 = por %p58, %p59
      %p61 = scmp.ne.s32.totalorder %s50, %s53
      %p62 = scmp.eq.s32.totalorder %s31, 3
      %p63 = por %p61, %p62
      %p64 = scmp.ne.s32.totalorder %s53, %s54
      %p65 = scmp.eq.s32.totalorder %s31, 0
      %p66 = por %p64, %p65
      %p67 = scmp.ne.s32.totalorder %s53, %s54
      %p68 = scmp.eq.s32.totalorder %s32, 3
      %p69 = por %p67, %p68
      %p71 = scmp.ne.s32.totalorder %s54, %s70
      %p72 = scmp.eq.s32.totalorder %s32, 0
      %p73 = por %p71, %p72
      %s74 = smul.u32 %s34, 8
      %s75 = ssub.s32 %s74, 1
      %p76 = scmp.gt.s32.totalorder %s75, 0
      %s77 = scalar_select %p76, %s75, 0
      %s78 = smul.u32 %s41, 8
      %s79 = ssub.s32 %s78, 1
      %p80 = scmp.gt.s32.totalorder %s79, 0
      %s81 = scalar_select %p80, %s79, 0
      %s82 = ssub.s32 %s33, %s45
      %s83 = ssub.s32 %s77, %s81
      %s84 = sor.u32 %s82, %s83
      %p85 = scmp.eq.s32.totalorder %s84, 0
      %s87 = sadd.s32 %s86, 1
      %s88 = scalar_select %p85, %s86, %s87
      %p91 = pneg %p85
      %p92 = scmp.eq.s32.totalorder %s26, 3
      %p93 = por %p91, %p92
      %p94 = scmp.ne.s32.totalorder %s86, %s89
      %p95 = scmp.eq.s32.totalorder %s26, 0
      %p96 = por %p94, %p95
      %p97 = scmp.ne.s32.totalorder %s86, %s89
      %p98 = scmp.eq.s32.totalorder %s31, 3
      %p99 = por %p97, %p98
      %p100 = scmp.ne.s32.totalorder %s89, %s90
      %p101 = scmp.eq.s32.totalorder %s31, 0
      %p102 = por %p100, %p101
      %p103 = scmp.ne.s32.totalorder %s89, %s90
      %p104 = scmp.eq.s32.totalorder %s32, 3
      %p105 = por %p103, %p104
      %p107 = scmp.ne.s32.totalorder %s90, %s106
      %p108 = scmp.eq.s32.totalorder %s32, 0
      %p109 = por %p107, %p108
      %s110 = smul.u32 %s34, 8
      %s111 = sadd.s32 %s110, 8
      %p112 = scmp.lt.s32.totalorder %s111, 15
      %s113 = scalar_select %p112, %s111, 15
      %s114 = smul.u32 %s41, 8
      %s115 = sadd.s32 %s114, 8
      %p116 = scmp.lt.s32.totalorder %s115, 15
      %s117 = scalar_select %p116, %s115, 15
      %s118 = ssub.s32 %s33, %s45
      %s119 = ssub.s32 %s113, %s117
      %s120 = sor.u32 %s118, %s119
      %p121 = scmp.eq.s32.totalorder %s120, 0
      %s123 = sadd.s32 %s122, 1
      %s124 = scalar_select %p121, %s122, %s123
      %p127 = pneg %p121
      %p128 = scmp.eq.s32.totalorder %s26, 3
      %p129 = por %p127, %p128
      %p130 = scmp.ne.s32.totalorder %s122, %s125
      %p131 = scmp.eq.s32.totalorder %s26, 0
      %p132 = por %p130, %p131
      %p133 = scmp.ne.s32.totalorder %s122, %s125
      %p134 = scmp.eq.s32.totalorder %s31, 3
      %p135 = por %p133, %p134
      %p136 = scmp.ne.s32.totalorder %s125, %s126
      %p137 = scmp.eq.s32.totalorder %s31, 0
      %p138 = por %p136, %p137
      %p139 = scmp.ne.s32.totalorder %s125, %s126
      %p140 = scmp.eq.s32.totalorder %s32, 3
      %p141 = por %p139, %p140
      %p143 = scmp.ne.s32.totalorder %s126, %s142
      %p144 = scmp.eq.s32.totalorder %s32, 0
      %p145 = por %p143, %p144
      %s146 = ssub.s32 %s33, %s45
      %p147 = scmp.eq.s32.totalorder %s146, 0
      %s149 = sadd.s32 %s148, 1
      %s150 = scalar_select %p147, %s148, %s149
      %p153 = pneg %p147
      %p154 = scmp.eq.s32.totalorder %s26, 3
      %p155 = por %p153, %p154
      %p156 = scmp.ne.s32.totalorder %s148, %s151
      %p157 = scmp.eq.s32.totalorder %s26, 0
      %p158 = por %p156, %p157
      %p159 = scmp.ne.s32.totalorder %s148, %s151
      %p160 = scmp.eq.s32.totalorder %s31, 3
      %p161 = por %p159, %p160
      %p162 = scmp.ne.s32.totalorder %s151, %s152
      %p163 = scmp.eq.s32.totalorder %s31, 0
      %p164 = por %p162, %p163
      %p165 = scmp.ne.s32.totalorder %s151, %s152
      %p166 = scmp.eq.s32.totalorder %s32, 3
      %p167 = por %p165, %p166
      %p169 = scmp.ne.s32.totalorder %s152, %s168
      %p170 = scmp.eq.s32.totalorder %s32, 0
      %p171 = por %p169, %p170
      %s172 = ssub.s32 %s33, %s45
      %p173 = scmp.eq.s32.totalorder %s172, 0
      %s175 = sadd.s32 %s174, 1
      %s176 = scalar_select %p173, %s174, %s175
      %p179 = pneg %p173
      %p180 = scmp.eq.s32.totalorder %s26, 3
      %p181 = por %p179, %p180
      %p182 = scmp.ne.s32.totalorder %s174, %s177
      %p183 = scmp.eq.s32.totalorder %s26, 0
      %p184 = por %p182, %p183
      %p185 = scmp.ne.s32.totalorder %s174, %s177
      %p186 = scmp.eq.s32.totalorder %s31, 3
      %p187 = por %p185, %p186
      %p188 = scmp.ne.s32.totalorder %s177, %s178
      %p189 = scmp.eq.s32.totalorder %s31, 0
      %p190 = por %p188, %p189
      %p191 = scmp.ne.s32.totalorder %s177, %s178
      %p192 = scmp.eq.s32.totalorder %s32, 3
      %p193 = por %p191, %p192
      %p195 = scmp.ne.s32.totalorder %s178, %s194
      %p196 = scmp.eq.s32.totalorder %s32, 0
      %p197 = por %p195, %p196
      %s199 = sadd.s32 %s198, 1
      %p202 = scmp.eq.s32.totalorder %s26, 3
      %p203 = scmp.ne.s32.totalorder %s198, %s200
      %p204 = scmp.eq.s32.totalorder %s26, 0
      %p205 = por %p203, %p204
      %p206 = scmp.ne.s32.totalorder %s198, %s200
      %p207 = scmp.eq.s32.totalorder %s31, 3
      %p208 = por %p206, %p207
      %p209 = scmp.ne.s32.totalorder %s200, %s201
      %p210 = scmp.eq.s32.totalorder %s31, 0
      %p211 = por %p209, %p210
      %p212 = scmp.ne.s32.totalorder %s200, %s201
      %p213 = scmp.eq.s32.totalorder %s32, 3
      %p214 = por %p212, %p213
      %p216 = scmp.ne.s32.totalorder %s201, %s215
      %p217 = scmp.eq.s32.totalorder %s32, 0
      %p218 = por %p216, %p217
      %s220 = sadd.s32 %s219, 1
      %p223 = scmp.eq.s32.totalorder %s26, 3
      %p224 = scmp.ne.s32.totalorder %s219, %s221
      %p225 = scmp.eq.s32.totalorder %s26, 0
      %p226 = por %p224, %p225
      %p227 = scmp.ne.s32.totalorder %s219, %s221
      %p228 = scmp.eq.s32.totalorder %s31, 3
      %p229 = por %p227, %p228
      %p230 = scmp.ne.s32.totalorder %s221, %s222
      %p231 = scmp.eq.s32.totalorder %s31, 0
      %p232 = por %p230, %p231
      %p233 = scmp.ne.s32.totalorder %s221, %s222
      %p234 = scmp.eq.s32.totalorder %s32, 3
      %p235 = por %p233, %p234
      %p237 = scmp.ne.s32.totalorder %s222, %s236
      %p238 = scmp.eq.s32.totalorder %s32, 0
      %p239 = por %p237, %p238
      %s240 = ssub.s32 %s33, %s45
      %s241 = ssub.s32 %s34, %s41
      %s242 = sor.u32 %s240, %s241
      %p243 = scmp.eq.s32.totalorder %s242, 0
      %s245 = sadd.s32 %s244, 1
      %s246 = scalar_select %p243, %s244, %s245
      %p249 = pneg %p243
      %p250 = scmp.eq.s32.totalorder %s26, 3
      %p251 = por %p249, %p250
      %p252 = scmp.ne.s32.totalorder %s244, %s247
      %p253 = scmp.eq.s32.totalorder %s26, 0
      %p254 = por %p252, %p253
      %p255 = scmp.ne.s32.totalorder %s244, %s247
      %p256 = scmp.eq.s32.totalorder %s31, 3
      %p257 = por %p255, %p256
      %p258 = scmp.ne.s32.totalorder %s247, %s248
      %p259 = scmp.eq.s32.totalorder %s31, 0
      %p260 = por %p258, %p259
      %p261 = scmp.ne.s32.totalorder %s247, %s248
      %p262 = scmp.eq.s32.totalorder %s32, 3
      %p263 = por %p261, %p262
      %p265 = scmp.ne.s32.totalorder %s248, %s264
      %p266 = scmp.eq.s32.totalorder %s32, 0
      %p267 = por %p265, %p266
      %p268 = scmp.le.s32.totalorder 1, %s26
      %p269 = scmp.lt.s32.totalorder %s26, 5
      %p270 = pnand %p268, %p269
      %p271 = pneg %p270
      // Predicated region
      $region9: #{midblock_forward.5} parent=5 // pred_check
        _
      $region10: #{midblock_forward.5} parent=5 // pred_check_branch
        %273 = sbr.rel (%p270) target = $region12
      $region11: #{midblock_forward.5} parent=5 // pred_region
        %s274 = ssub.s32 %s26, 1
        // Predicated region
        $region13: #{midblock_forward.5} parent=11 // pred_check
          %p275 = pneg %p211
        $region14: #{midblock_forward.5} parent=11 // pred_check_branch
          %277 = sbr.rel (%p275) target = $region16
        $region15: #{midblock_forward.5} parent=11 // pred_region
          %s279 = ssub.s32 4608, 4608
          %280 = vsyncadd [#allocation14], %s279
          %s281 = sshll.u32 [#allocation13], 4
          %s282 = int_to_ptr.vmem [resolvable:$true] %s281
          %287 = dma.hbm_to_vmem [thread:$0]  %s5, 4608, %s282, [#allocation14], 64, 64, 4
        $region16: #{midblock_forward.5} parent=11 // pred_fallthru
          _
        // Predicated region
        $region17: #{midblock_forward.5} parent=11 // pred_check
          %p288 = pneg %p232
        $region18: #{midblock_forward.5} parent=11 // pred_check_branch
          %290 = sbr.rel (%p288) target = $region20
        $region19: #{midblock_forward.5} parent=11 // pred_region
          %s292 = ssub.s32 16, 16
          %293 = vsyncadd [#allocation14], %s292
          %s295 = sshll.u32 [#allocation15], 4
          %s296 = int_to_ptr.vmem [resolvable:$true] %s295
          %298 = dma.hbm_to_vmem [thread:$0]  %s6, 16, %s296, [#allocation14]
        $region20: #{midblock_forward.5} parent=11 // pred_fallthru
          _
      $region12: #{midblock_forward.5} parent=5 // pred_fallthru
        _
      %p299 = scmp.lt.s32.totalorder %s26, 4
      // Predicated region
      $region21: #{midblock_forward.5} parent=5 // pred_check
        %p300 = pneg %p299
      $region22: #{midblock_forward.5} parent=5 // pred_check_branch
        %302 = sbr.rel (%p300) target = $region24
      $region23: #{midblock_forward.5} parent=5 // pred_region
        // Predicated region
        $region25: #{midblock_forward.5} parent=23 // pred_check
          %p303 = pneg %p60
        $region26: #{midblock_forward.5} parent=23 // pred_check_branch
          %305 = sbr.rel (%p303) target = $region28
        $region27: #{midblock_forward.5} parent=23 // pred_region
          %s306 = sand.u32 %s50, 1
          %s307 = scalar_lea.sflag [#allocation5], %s306
          %s308 = sand.u32 %s50, 1
          %s309 = smul.addr %s308, 128
          %s310 = scalar_lea.vmem [#allocation4], %s309
          %s311 = smul.u32 8, %s34
          %s313 = ssub.s32 2048, 2048
          %314 = vsyncadd %s307, %s313
          %s315 = smul.addr %s311, 2
          %s316 = smul.addr %s33, 32
          %s317 = sadd.s32 %s315, %s316
          %s318 = smul.addr %s317, 128
          %s319 = scalar_lea.hbm %s0, %s318
          %s320 = sshll.u32 %s310, 4
          %s321 = int_to_ptr.vmem [resolvable:$true] %s320
          %326 = dma.hbm_to_vmem [thread:$0]  %s319, 2048, %s321, %s307, 128, 128, 8
        $region28: #{midblock_forward.5} parent=23 // pred_fallthru
          _
        // Predicated region
        $region29: #{midblock_forward.5} parent=23 // pred_check
          %p327 = pneg %p96
        $region30: #{midblock_forward.5} parent=23 // pred_check_branch
          %329 = sbr.rel (%p327) target = $region32
        $region31: #{midblock_forward.5} parent=23 // pred_region
          %s330 = sand.u32 %s26, 1
          %s331 = scalar_lea.sflag [#allocation8], %s330
          %s332 = sand.u32 %s86, 1
          %s333 = smul.addr %s332, 16
          %s334 = scalar_lea.vmem [#allocation7], %s333
          %s335 = smul.u32 %s34, 8
          %s336 = ssub.s32 %s335, 1
          %p337 = scmp.gt.s32.totalorder %s336, 0
          %s338 = scalar_select %p337, %s336, 0
          %s340 = ssub.s32 256, 256
          %341 = vsyncadd %s331, %s340
          %s342 = smul.addr %s338, 2
          %s343 = smul.addr %s33, 32
          %s344 = sadd.s32 %s342, %s343
          %s345 = smul.addr %s344, 128
          %s346 = scalar_lea.hbm %s1, %s345
          %s347 = sshll.u32 %s334, 4
          %s348 = int_to_ptr.vmem [resolvable:$true] %s347
          %353 = dma.hbm_to_vmem [thread:$0]  %s346, 256, %s348, %s331, 128, 128, 8
        $region32: #{midblock_forward.5} parent=23 // pred_fallthru
          _
        // Predicated region
        $region33: #{midblock_forward.5} parent=23 // pred_check
          %p354 = pneg %p132
        $region34: #{midblock_forward.5} parent=23 // pred_check_branch
          %356 = sbr.rel (%p354) target = $region36
        $region35: #{midblock_forward.5} parent=23 // pred_region
          %s357 = sand.u32 %s26, 1
          %s358 = scalar_lea.sflag [#allocation8], %s357
          %s359 = sand.u32 %s122, 1
          %s360 = smul.addr %s359, 16
          %s361 = scalar_lea.vmem [#allocation9], %s360
          %s362 = smul.u32 %s34, 8
          %s363 = sadd.s32 %s362, 8
          %p364 = scmp.lt.s32.totalorder %s363, 15
          %s365 = scalar_select %p364, %s363, 15
          %s367 = ssub.s32 256, 256
          %368 = vsyncadd %s358, %s367
          %s369 = smul.addr %s365, 2
          %s370 = smul.addr %s33, 32
          %s371 = sadd.s32 %s369, %s370
          %s372 = smul.addr %s371, 128
          %s373 = scalar_lea.hbm %s2, %s372
          %s374 = sshll.u32 %s361, 4
          %s375 = int_to_ptr.vmem [resolvable:$true] %s374
          %380 = dma.hbm_to_vmem [thread:$0]  %s373, 256, %s375, %s358, 128, 128, 8
        $region36: #{midblock_forward.5} parent=23 // pred_fallthru
          _
        // Predicated region
        $region37: #{midblock_forward.5} parent=23 // pred_check
          %p381 = pneg %p158
        $region38: #{midblock_forward.5} parent=23 // pred_check_branch
          %383 = sbr.rel (%p381) target = $region40
        $region39: #{midblock_forward.5} parent=23 // pred_region
          %s384 = sand.u32 %s26, 1
          %s385 = scalar_lea.sflag [#allocation11], %s384
          %s386 = sand.u32 %s148, 1
          %s387 = scalar_lea.vmem [#allocation10], %s386
          %s389 = ssub.s32 16, 16
          %390 = vsyncadd %s385, %s389
          %s391 = smul.addr %s33, 16
          %s392 = scalar_lea.hbm %s3, %s391
          %s394 = sshll.u32 %s387, 4
          %s395 = int_to_ptr.vmem [resolvable:$true] %s394
          %397 = dma.hbm_to_vmem [thread:$0]  %s392, 16, %s395, %s385
        $region40: #{midblock_forward.5} parent=23 // pred_fallthru
          _
        // Predicated region
        $region41: #{midblock_forward.5} parent=23 // pred_check
          %p398 = pneg %p184
        $region42: #{midblock_forward.5} parent=23 // pred_check_branch
          %400 = sbr.rel (%p398) target = $region44
        $region43: #{midblock_forward.5} parent=23 // pred_region
          %s401 = sand.u32 %s26, 1
          %s402 = scalar_lea.sflag [#allocation11], %s401
          %s403 = sand.u32 %s174, 1
          %s404 = scalar_lea.vmem [#allocation12], %s403
          %s406 = ssub.s32 16, 16
          %407 = vsyncadd %s402, %s406
          %s408 = smul.addr %s33, 16
          %s409 = scalar_lea.hbm %s4, %s408
          %s411 = sshll.u32 %s404, 4
          %s412 = int_to_ptr.vmem [resolvable:$true] %s411
          %414 = dma.hbm_to_vmem [thread:$0]  %s409, 16, %s412, %s402
        $region44: #{midblock_forward.5} parent=23 // pred_fallthru
          _
      $region24: #{midblock_forward.5} parent=5 // pred_fallthru
        _
      %p415 = scmp.le.s32.totalorder 1, %s26
      %p416 = scmp.lt.s32.totalorder %s26, 5
      %p417 = pnand %p415, %p416
      %p418 = pneg %p417
      // Predicated region
      $region45: #{midblock_forward.5} parent=5 // pred_check
        _
      $region46: #{midblock_forward.5} parent=5 // pred_check_branch
        %420 = sbr.rel (%p417) target = $region48
      $region47: #{midblock_forward.5} parent=5 // pred_region
        %s421 = ssub.s32 %s26, 1
        %s422 = sand.u32 %s53, 1
        %s423 = scalar_lea.sflag [#allocation5], %s422
        %s424 = sand.u32 %s53, 1
        %s425 = smul.addr %s424, 128
        %s426 = scalar_lea.vmem [#allocation4], %s425
        // Predicated region
        $region49: #{midblock_forward.5} parent=47 // pred_check
          %p427 = pneg %p66
        $region50: #{midblock_forward.5} parent=47 // pred_check_branch
          %429 = sbr.rel (%p427) target = $region52
        $region51: #{midblock_forward.5} parent=47 // pred_region
          %430 = dma.done %s423, 2048
        $region52: #{midblock_forward.5} parent=47 // pred_fallthru
          _
        %s431 = sand.u32 %s31, 1
        %s432 = scalar_lea.sflag [#allocation8], %s431
        %s433 = sand.u32 %s89, 1
        %s434 = smul.addr %s433, 16
        %s435 = scalar_lea.vmem [#allocation7], %s434
        // Predicated region
        $region53: #{midblock_forward.5} parent=47 // pred_check
          %p436 = pneg %p102
        $region54: #{midblock_forward.5} parent=47 // pred_check_branch
          %438 = sbr.rel (%p436) target = $region56
        $region55: #{midblock_forward.5} parent=47 // pred_region
          %439 = dma.done %s432, 256
        $region56: #{midblock_forward.5} parent=47 // pred_fallthru
          _
        %s440 = sand.u32 %s31, 1
        %s441 = scalar_lea.sflag [#allocation8], %s440
        %s442 = sand.u32 %s125, 1
        %s443 = smul.addr %s442, 16
        %s444 = scalar_lea.vmem [#allocation9], %s443
        // Predicated region
        $region57: #{midblock_forward.5} parent=47 // pred_check
          %p445 = pneg %p138
        $region58: #{midblock_forward.5} parent=47 // pred_check_branch
          %447 = sbr.rel (%p445) target = $region60
        $region59: #{midblock_forward.5} parent=47 // pred_region
          %448 = dma.done %s441, 256
        $region60: #{midblock_forward.5} parent=47 // pred_fallthru
          _
        %s449 = sand.u32 %s31, 1
        %s450 = scalar_lea.sflag [#allocation11], %s449
        %s451 = sand.u32 %s151, 1
        %s452 = scalar_lea.vmem [#allocation10], %s451
        // Predicated region
        $region61: #{midblock_forward.5} parent=47 // pred_check
          %p453 = pneg %p164
        $region62: #{midblock_forward.5} parent=47 // pred_check_branch
          %455 = sbr.rel (%p453) target = $region64
        $region63: #{midblock_forward.5} parent=47 // pred_region
          %456 = dma.done %s450, 16
        $region64: #{midblock_forward.5} parent=47 // pred_fallthru
          _
        %s457 = sand.u32 %s31, 1
        %s458 = scalar_lea.sflag [#allocation11], %s457
        %s459 = sand.u32 %s177, 1
        %s460 = scalar_lea.vmem [#allocation12], %s459
        // Predicated region
        $region65: #{midblock_forward.5} parent=47 // pred_check
          %p461 = pneg %p190
        $region66: #{midblock_forward.5} parent=47 // pred_check_branch
          %463 = sbr.rel (%p461) target = $region68
        $region67: #{midblock_forward.5} parent=47 // pred_region
          %464 = dma.done %s458, 16
        $region68: #{midblock_forward.5} parent=47 // pred_fallthru
          _
        // Predicated region
        $region69: #{midblock_forward.5} parent=47 // pred_check
          %p465 = pneg %p211
        $region70: #{midblock_forward.5} parent=47 // pred_check_branch
          %467 = sbr.rel (%p465) target = $region72
        $region71: #{midblock_forward.5} parent=47 // pred_region
          %468 = dma.done [#allocation14], 4608
        $region72: #{midblock_forward.5} parent=47 // pred_fallthru
          _
        // Predicated region
        $region73: #{midblock_forward.5} parent=47 // pred_check
          %p469 = pneg %p232
        $region74: #{midblock_forward.5} parent=47 // pred_check_branch
          %471 = sbr.rel (%p469) target = $region76
        $region75: #{midblock_forward.5} parent=47 // pred_region
          %472 = dma.done [#allocation14], 16
        $region76: #{midblock_forward.5} parent=47 // pred_fallthru
          _
        %s473 = sand.u32 %s53, 1
        %s474 = scalar_lea.sflag [#allocation5], %s473
        %s475 = sand.u32 %s53, 1
        %s476 = smul.addr %s475, 128
        %s477 = scalar_lea.vmem [#allocation4], %s476
        %p478 = pneg %p66
        %p479 = pneg %p63
        %s480 = sand.u32 %s31, 1
        %s481 = scalar_lea.sflag [#allocation8], %s480
        %s482 = sand.u32 %s89, 1
        %s483 = smul.addr %s482, 16
        %s484 = scalar_lea.vmem [#allocation7], %s483
        %p485 = pneg %p102
        %p486 = pneg %p99
        %s487 = sand.u32 %s31, 1
        %s488 = scalar_lea.sflag [#allocation8], %s487
        %s489 = sand.u32 %s125, 1
        %s490 = smul.addr %s489, 16
        %s491 = scalar_lea.vmem [#allocation9], %s490
        %p492 = pneg %p138
        %p493 = pneg %p135
        %s494 = sand.u32 %s31, 1
        %s495 = scalar_lea.sflag [#allocation11], %s494
        %s496 = sand.u32 %s151, 1
        %s497 = scalar_lea.vmem [#allocation10], %s496
        %p498 = pneg %p164
        %p499 = pneg %p161
        %s500 = sand.u32 %s31, 1
        %s501 = scalar_lea.sflag [#allocation11], %s500
        %s502 = sand.u32 %s177, 1
        %s503 = scalar_lea.vmem [#allocation12], %s502
        %p504 = pneg %p190
        %p505 = pneg %p187
        %p506 = pneg %p211
        %p507 = pneg %p208
        %p508 = pneg %p232
        %p509 = pneg %p229
        %p510 = pneg %p260
        %p511 = pneg %p257
        %s512 = sand.u32 %s247, 1
        %s513 = scalar_lea.sflag [#allocation6], %s512
        %s514 = sand.u32 %s247, 1
        %s515 = smul.addr %s514, 128
        %s516 = scalar_lea.vmem [#allocation16], %s515
        %s517 = smul.u32 8, %s36
        %s518 = smul.u32 %s36, 8
        %s519 = ssub.s32 %s518, 1
        %p520 = scmp.gt.s32.totalorder %s519, 0
        %s521 = scalar_select %p520, %s519, 0
        %s522 = smul.u32 %s36, 8
        %s523 = sadd.s32 %s522, 8
        %p524 = scmp.lt.s32.totalorder %s523, 15
        %s525 = scalar_select %p524, %s523, 15
        %s526 = smul.u32 8, %s36
        %v528 = vld [vmem:[%s435] sm:$0xff]
        %v529 = vld [vmem:[%s435 + $0x8] sm:$0xff]
        %v530 = vld [vmem:[%s426] sm:$0xff]
        %v531 = vld [vmem:[%s426 + $0x8] sm:$0xff]
        %v532 = vld [vmem:[%s426 + $0x10] sm:$0xff]
        %v533 = vld [vmem:[%s426 + $0x18] sm:$0xff]
        %v534 = vld [vmem:[%s426 + $0x20] sm:$0xff]
        %v535 = vld [vmem:[%s426 + $0x28] sm:$0xff]
        %v536 = vld [vmem:[%s426 + $0x30] sm:$0xff]
        %v537 = vld [vmem:[%s426 + $0x38] sm:$0xff]
        %v538 = vld [vmem:[%s426 + $0x40] sm:$0xff]
        %v539 = vld [vmem:[%s426 + $0x48] sm:$0xff]
        %v540 = vld [vmem:[%s426 + $0x50] sm:$0xff]
        %v541 = vld [vmem:[%s426 + $0x58] sm:$0xff]
        %v542 = vld [vmem:[%s426 + $0x60] sm:$0xff]
        %v543 = vld [vmem:[%s426 + $0x68] sm:$0xff]
        %v544 = vld [vmem:[%s426 + $0x70] sm:$0xff]
        %v545 = vld [vmem:[%s426 + $0x78] sm:$0xff]
        %v546 = vld [vmem:[%s444] sm:$0xff]
        %v547 = vld [vmem:[%s444 + $0x8] sm:$0xff]
        %v548 = vld [vmem:[%s452] sm:$0x1]
        %v550 = vlaneseq
        %v551 = vshrl.u32 %v550, 7
        %v552 = vsub.s32 0, %v551
        %v553 = vrot.slane %v548, %v552
        %v555 = vmul.f32 %v528, %v553
        %v556 = vmul.f32 %v529, %v553
        %v557 = vmul.f32 %v530, %v553
        %v558 = vmul.f32 %v531, %v553
        %v559 = vmul.f32 %v532, %v553
        %v560 = vmul.f32 %v533, %v553
        %v561 = vmul.f32 %v534, %v553
        %v562 = vmul.f32 %v535, %v553
        %v563 = vmul.f32 %v536, %v553
        %v564 = vmul.f32 %v537, %v553
        %v565 = vmul.f32 %v538, %v553
        %v566 = vmul.f32 %v539, %v553
        %v567 = vmul.f32 %v540, %v553
        %v568 = vmul.f32 %v541, %v553
        %v569 = vmul.f32 %v542, %v553
        %v570 = vmul.f32 %v543, %v553
        %v571 = vmul.f32 %v544, %v553
        %v572 = vmul.f32 %v545, %v553
        %v573 = vmul.f32 %v546, %v553
        %v574 = vmul.f32 %v547, %v553
        %v575 = vld [vmem:[%s460] sm:$0x1]
        %v577 = vlaneseq
        %v578 = vshrl.u32 %v577, 7
        %v579 = vsub.s32 0, %v578
        %v580 = vrot.slane %v575, %v579
        %v582 = vadd.f32 %v555, %v580
        %v583 = vadd.f32 %v556, %v580
        %v584 = vadd.f32 %v557, %v580
        %v585 = vadd.f32 %v558, %v580
        %v586 = vadd.f32 %v559, %v580
        %v587 = vadd.f32 %v560, %v580
        %v588 = vadd.f32 %v561, %v580
        %v589 = vadd.f32 %v562, %v580
        %v590 = vadd.f32 %v563, %v580
        %v591 = vadd.f32 %v564, %v580
        %v592 = vadd.f32 %v565, %v580
        %v593 = vadd.f32 %v566, %v580
        %v594 = vadd.f32 %v567, %v580
        %v595 = vadd.f32 %v568, %v580
        %v596 = vadd.f32 %v569, %v580
        %v597 = vadd.f32 %v570, %v580
        %v598 = vadd.f32 %v571, %v580
        %v599 = vadd.f32 %v572, %v580
        %v600 = vadd.f32 %v573, %v580
        %v601 = vadd.f32 %v574, %v580
        %v602 = vxor.u32 %v582, 2147483648
        %v603 = vxor.u32 %v583, 2147483648
        %v604 = vxor.u32 %v584, 2147483648
        %v605 = vxor.u32 %v585, 2147483648
        %v606 = vxor.u32 %v586, 2147483648
        %v607 = vxor.u32 %v587, 2147483648
        %v608 = vxor.u32 %v588, 2147483648
        %v609 = vxor.u32 %v589, 2147483648
        %v610 = vxor.u32 %v590, 2147483648
        %v611 = vxor.u32 %v591, 2147483648
        %v612 = vxor.u32 %v592, 2147483648
        %v613 = vxor.u32 %v593, 2147483648
        %v614 = vxor.u32 %v594, 2147483648
        %v615 = vxor.u32 %v595, 2147483648
        %v616 = vxor.u32 %v596, 2147483648
        %v617 = vxor.u32 %v597, 2147483648
        %v618 = vxor.u32 %v598, 2147483648
        %v619 = vxor.u32 %v599, 2147483648
        %v620 = vxor.u32 %v600, 2147483648
        %v621 = vxor.u32 %v601, 2147483648
        %v622 = vmul.f32 %v602, 1.442695
        %v623 = vpow.pop %v622
        %v624 = vmul.f32 %v603, 1.442695
        %v625 = vpow.pop %v624
        %v626 = vmul.f32 %v604, 1.442695
        %v627 = vpow.pop %v626
        %v628 = vmul.f32 %v605, 1.442695
        %v629 = vpow.pop %v628
        %v630 = vmul.f32 %v606, 1.442695
        %v631 = vpow.pop %v630
        %v632 = vmul.f32 %v607, 1.442695
        %v633 = vpow.pop %v632
        %v634 = vmul.f32 %v608, 1.442695
        %v635 = vpow.pop %v634
        %v636 = vmul.f32 %v609, 1.442695
        %v637 = vpow.pop %v636
        %v638 = vmul.f32 %v610, 1.442695
        %v639 = vpow.pop %v638
        %v640 = vmul.f32 %v611, 1.442695
        %v641 = vpow.pop %v640
        %v642 = vmul.f32 %v612, 1.442695
        %v643 = vpow.pop %v642
        %v644 = vmul.f32 %v613, 1.442695
        %v645 = vpow.pop %v644
        %v646 = vmul.f32 %v614, 1.442695
        %v647 = vpow.pop %v646
        %v648 = vmul.f32 %v615, 1.442695
        %v649 = vpow.pop %v648
        %v650 = vmul.f32 %v616, 1.442695
        %v651 = vpow.pop %v650
        %v652 = vmul.f32 %v617, 1.442695
        %v653 = vpow.pop %v652
        %v654 = vmul.f32 %v618, 1.442695
        %v655 = vpow.pop %v654
        %v656 = vmul.f32 %v619, 1.442695
        %v657 = vpow.pop %v656
        %v658 = vmul.f32 %v620, 1.442695
        %v659 = vpow.pop %v658
        %v660 = vmul.f32 %v621, 1.442695
        %v661 = vpow.pop %v660
        %v662 = vadd.f32 %v623, 1.0
        %v663 = vadd.f32 %v625, 1.0
        %v664 = vadd.f32 %v627, 1.0
        %v665 = vadd.f32 %v629, 1.0
        %v666 = vadd.f32 %v631, 1.0
        %v667 = vadd.f32 %v633, 1.0
        %v668 = vadd.f32 %v635, 1.0
        %v669 = vadd.f32 %v637, 1.0
        %v670 = vadd.f32 %v639, 1.0
        %v671 = vadd.f32 %v641, 1.0
        %v672 = vadd.f32 %v643, 1.0
        %v673 = vadd.f32 %v645, 1.0
        %v674 = vadd.f32 %v647, 1.0
        %v675 = vadd.f32 %v649, 1.0
        %v676 = vadd.f32 %v651, 1.0
        %v677 = vadd.f32 %v653, 1.0
        %v678 = vadd.f32 %v655, 1.0
        %v679 = vadd.f32 %v657, 1.0
        %v680 = vadd.f32 %v659, 1.0
        %v681 = vadd.f32 %v661, 1.0
        %v682 = vrcp.pop %v662
        %v683 = vmul.f32 1.0, %v682
        %v684 = vrcp.pop %v663
        %v685 = vmul.f32 1.0, %v684
        %v686 = vrcp.pop %v664
        %v687 = vmul.f32 1.0, %v686
        %v688 = vrcp.pop %v665
        %v689 = vmul.f32 1.0, %v688
        %v690 = vrcp.pop %v666
        %v691 = vmul.f32 1.0, %v690
        %v692 = vrcp.pop %v667
        %v693 = vmul.f32 1.0, %v692
        %v694 = vrcp.pop %v668
        %v695 = vmul.f32 1.0, %v694
        %v696 = vrcp.pop %v669
        %v697 = vmul.f32 1.0, %v696
        %v698 = vrcp.pop %v670
        %v699 = vmul.f32 1.0, %v698
        %v700 = vrcp.pop %v671
        %v701 = vmul.f32 1.0, %v700
        %v702 = vrcp.pop %v672
        %v703 = vmul.f32 1.0, %v702
        %v704 = vrcp.pop %v673
        %v705 = vmul.f32 1.0, %v704
        %v706 = vrcp.pop %v674
        %v707 = vmul.f32 1.0, %v706
        %v708 = vrcp.pop %v675
        %v709 = vmul.f32 1.0, %v708
        %v710 = vrcp.pop %v676
        %v711 = vmul.f32 1.0, %v710
        %v712 = vrcp.pop %v677
        %v713 = vmul.f32 1.0, %v712
        %v714 = vrcp.pop %v678
        %v715 = vmul.f32 1.0, %v714
        %v716 = vrcp.pop %v679
        %v717 = vmul.f32 1.0, %v716
        %v718 = vrcp.pop %v680
        %v719 = vmul.f32 1.0, %v718
        %v720 = vrcp.pop %v681
        %v721 = vmul.f32 1.0, %v720
        %v722 = vmul.f32 %v582, %v683
        %v723 = vmul.f32 %v583, %v685
        %v724 = vmul.f32 %v584, %v687
        %v725 = vmul.f32 %v585, %v689
        %v726 = vmul.f32 %v586, %v691
        %v727 = vmul.f32 %v587, %v693
        %v728 = vmul.f32 %v588, %v695
        %v729 = vmul.f32 %v589, %v697
        %v730 = vmul.f32 %v590, %v699
        %v731 = vmul.f32 %v591, %v701
        %v732 = vmul.f32 %v592, %v703
        %v733 = vmul.f32 %v593, %v705
        %v734 = vmul.f32 %v594, %v707
        %v735 = vmul.f32 %v595, %v709
        %v736 = vmul.f32 %v596, %v711
        %v737 = vmul.f32 %v597, %v713
        %v738 = vmul.f32 %v598, %v715
        %v739 = vmul.f32 %v599, %v717
        %v740 = vmul.f32 %v600, %v719
        %v741 = vmul.f32 %v601, %v721
        %s742 = smul.u32 %s36, 8
        %s743 = ssub.s32 %s742, 1
        %v744 = vstv %s743
        %v745 = vadd.s32 %v744, 1
        %v746 = vadd.s32 %v744, 2
        %v747 = vadd.s32 %v744, 3
        %v748 = vadd.s32 %v744, 4
        %v749 = vadd.s32 %v744, 5
        %v750 = vadd.s32 %v744, 6
        %v751 = vadd.s32 %v744, 7
        %v752 = vadd.s32 %v744, 8
        %v753 = vadd.s32 %v744, 9
        %vm754 = vcmp.ge.s32.totalorder %v744, 0
        %vm755 = vcmp.ge.s32.totalorder %v745, 0
        %vm756 = vcmp.ge.s32.totalorder %v746, 0
        %vm757 = vcmp.ge.s32.totalorder %v747, 0
        %vm758 = vcmp.ge.s32.totalorder %v748, 0
        %vm759 = vcmp.ge.s32.totalorder %v749, 0
        %vm760 = vcmp.ge.s32.totalorder %v750, 0
        %vm761 = vcmp.ge.s32.totalorder %v751, 0
        %vm762 = vcmp.ge.s32.totalorder %v752, 0
        %vm763 = vcmp.ge.s32.totalorder %v753, 0
        %vm764 = vcmp.lt.s32.totalorder %v744, 16
        %vm765 = vcmp.lt.s32.totalorder %v745, 16
        %vm766 = vcmp.lt.s32.totalorder %v746, 16
        %vm767 = vcmp.lt.s32.totalorder %v747, 16
        %vm768 = vcmp.lt.s32.totalorder %v748, 16
        %vm769 = vcmp.lt.s32.totalorder %v749, 16
        %vm770 = vcmp.lt.s32.totalorder %v750, 16
        %vm771 = vcmp.lt.s32.totalorder %v751, 16
        %vm772 = vcmp.lt.s32.totalorder %v752, 16
        %vm773 = vcmp.lt.s32.totalorder %v753, 16
        %vm774 = vmand %vm754, %vm764
        %vm775 = vmand %vm755, %vm765
        %vm776 = vmand %vm756, %vm766
        %vm777 = vmand %vm757, %vm767
        %vm778 = vmand %vm758, %vm768
        %vm779 = vmand %vm759, %vm769
        %vm780 = vmand %vm760, %vm770
        %vm781 = vmand %vm761, %vm771
        %vm782 = vmand %vm762, %vm772
        %vm783 = vmand %vm763, %vm773
        %v784 = vsel %vm774, 1, 0
        %v785 = vsel %vm775, 1, 0
        %v786 = vsel %vm776, 1, 0
        %v787 = vsel %vm777, 1, 0
        %v788 = vsel %vm778, 1, 0
        %v789 = vsel %vm779, 1, 0
        %v790 = vsel %vm780, 1, 0
        %v791 = vsel %vm781, 1, 0
        %v792 = vsel %vm782, 1, 0
        %v793 = vsel %vm783, 1, 0
        %vm794 = vcmp.eq.s32.totalorder %v784, 1
        %vm795 = vcmp.eq.s32.totalorder %v785, 1
        %vm796 = vcmp.eq.s32.totalorder %v786, 1
        %vm797 = vcmp.eq.s32.totalorder %v787, 1
        %vm798 = vcmp.eq.s32.totalorder %v788, 1
        %vm799 = vcmp.eq.s32.totalorder %v789, 1
        %vm800 = vcmp.eq.s32.totalorder %v790, 1
        %vm801 = vcmp.eq.s32.totalorder %v791, 1
        %vm802 = vcmp.eq.s32.totalorder %v792, 1
        %vm803 = vcmp.eq.s32.totalorder %v793, 1
        %v804 = vsel %vm794, %v722, 0.0
        %v805 = vsel %vm794, %v723, 0.0
        %v806 = vsel %vm795, %v724, 0.0
        %v807 = vsel %vm795, %v725, 0.0
        %v808 = vsel %vm796, %v726, 0.0
        %v809 = vsel %vm796, %v727, 0.0
        %v810 = vsel %vm797, %v728, 0.0
        %v811 = vsel %vm797, %v729, 0.0
        %v812 = vsel %vm798, %v730, 0.0
        %v813 = vsel %vm798, %v731, 0.0
        %v814 = vsel %vm799, %v732, 0.0
        %v815 = vsel %vm799, %v733, 0.0
        %v816 = vsel %vm800, %v734, 0.0
        %v817 = vsel %vm800, %v735, 0.0
        %v818 = vsel %vm801, %v736, 0.0
        %v819 = vsel %vm801, %v737, 0.0
        %v820 = vsel %vm802, %v738, 0.0
        %v821 = vsel %vm802, %v739, 0.0
        %v822 = vsel %vm803, %v740, 0.0
        %v823 = vsel %vm803, %v741, 0.0
        %vm824 = vcmask 523264
        %825 = vst.msk [vmem:[#allocation2 + $0x1] sm:$0xff] %vm824, %v804
        %826 = vst.msk [vmem:[#allocation2 + $0x9] sm:$0xff] %vm824, %v805
        %827 = vst.msk [vmem:[#allocation2 + $0x19] sm:$0xff] %vm824, %v806
        %828 = vst.msk [vmem:[#allocation2 + $0x21] sm:$0xff] %vm824, %v807
        %829 = vst.msk [vmem:[#allocation2 + $0x31] sm:$0xff] %vm824, %v808
        %830 = vst.msk [vmem:[#allocation2 + $0x39] sm:$0xff] %vm824, %v809
        %831 = vst.msk [vmem:[#allocation2 + $0x49] sm:$0xff] %vm824, %v810
        %832 = vst.msk [vmem:[#allocation2 + $0x51] sm:$0xff] %vm824, %v811
        %833 = vst.msk [vmem:[#allocation2 + $0x61] sm:$0xff] %vm824, %v812
        %834 = vst.msk [vmem:[#allocation2 + $0x69] sm:$0xff] %vm824, %v813
        %835 = vst.msk [vmem:[#allocation2 + $0x79] sm:$0xff] %vm824, %v814
        %836 = vst.msk [vmem:[#allocation2 + $0x81] sm:$0xff] %vm824, %v815
        %837 = vst.msk [vmem:[#allocation2 + $0x91] sm:$0xff] %vm824, %v816
        %838 = vst.msk [vmem:[#allocation2 + $0x99] sm:$0xff] %vm824, %v817
        %839 = vst.msk [vmem:[#allocation2 + $0xa9] sm:$0xff] %vm824, %v818
        %840 = vst.msk [vmem:[#allocation2 + $0xb1] sm:$0xff] %vm824, %v819
        %841 = vst.msk [vmem:[#allocation2 + $0xc1] sm:$0xff] %vm824, %v820
        %842 = vst.msk [vmem:[#allocation2 + $0xc9] sm:$0xff] %vm824, %v821
        %843 = vst.msk [vmem:[#allocation2 + $0xd9] sm:$0xff] %vm824, %v822
        %844 = vst.msk [vmem:[#allocation2 + $0xe1] sm:$0xff] %vm824, %v823
        %vm845 = vcmask 516096
        %846 = vst.msk [vmem:[#allocation2] sm:$0x1] %vm845, 0.0
        %847 = vst.msk [vmem:[#allocation2 + $0x18] sm:$0x1] %vm845, 0.0
        %848 = vst.msk [vmem:[#allocation2 + $0x30] sm:$0x1] %vm845, 0.0
        %849 = vst.msk [vmem:[#allocation2 + $0x48] sm:$0x1] %vm845, 0.0
        %850 = vst.msk [vmem:[#allocation2 + $0x60] sm:$0x1] %vm845, 0.0
        %851 = vst.msk [vmem:[#allocation2 + $0x78] sm:$0x1] %vm845, 0.0
        %852 = vst.msk [vmem:[#allocation2 + $0x90] sm:$0x1] %vm845, 0.0
        %853 = vst.msk [vmem:[#allocation2 + $0xa8] sm:$0x1] %vm845, 0.0
        %854 = vst.msk [vmem:[#allocation2 + $0xc0] sm:$0x1] %vm845, 0.0
        %855 = vst.msk [vmem:[#allocation2 + $0xd8] sm:$0x1] %vm845, 0.0
        %vm856 = vcmask 522240
        %857 = vst.msk [vmem:[#allocation2 + $0x11] sm:$0x7f] %vm856, 0.0
        %858 = vst.msk [vmem:[#allocation2 + $0x29] sm:$0x7f] %vm856, 0.0
        %859 = vst.msk [vmem:[#allocation2 + $0x41] sm:$0x7f] %vm856, 0.0
        %860 = vst.msk [vmem:[#allocation2 + $0x59] sm:$0x7f] %vm856, 0.0
        %861 = vst.msk [vmem:[#allocation2 + $0x71] sm:$0x7f] %vm856, 0.0
        %862 = vst.msk [vmem:[#allocation2 + $0x89] sm:$0x7f] %vm856, 0.0
        %863 = vst.msk [vmem:[#allocation2 + $0xa1] sm:$0x7f] %vm856, 0.0
        %864 = vst.msk [vmem:[#allocation2 + $0xb9] sm:$0x7f] %vm856, 0.0
        %865 = vst.msk [vmem:[#allocation2 + $0xd1] sm:$0x7f] %vm856, 0.0
        %866 = vst.msk [vmem:[#allocation2 + $0xe9] sm:$0x7f] %vm856, 0.0
        %v867 = vld [vmem:[#allocation2] sm:$0xff]
        %v868 = vld [vmem:[#allocation2 + $0x8] sm:$0xff]
        %v869 = vld [vmem:[#allocation2 + $0x10] sm:$0xff]
        %v870 = vld [vmem:[#allocation2 + $0x18] sm:$0xff]
        %v871 = vld [vmem:[#allocation2 + $0x20] sm:$0xff]
        %v872 = vld [vmem:[#allocation2 + $0x28] sm:$0xff]
        %v873 = vld [vmem:[#allocation2 + $0x30] sm:$0xff]
        %v874 = vld [vmem:[#allocation2 + $0x38] sm:$0xff]
        %v875 = vld [vmem:[#allocation2 + $0x40] sm:$0xff]
        %v876 = vld [vmem:[#allocation2 + $0x48] sm:$0xff]
        %v877 = vld [vmem:[#allocation2 + $0x50] sm:$0xff]
        %v878 = vld [vmem:[#allocation2 + $0x58] sm:$0xff]
        %v879 = vld [vmem:[#allocation2 + $0x60] sm:$0xff]
        %v880 = vld [vmem:[#allocation2 + $0x68] sm:$0xff]
        %v881 = vld [vmem:[#allocation2 + $0x70] sm:$0xff]
        %v882 = vld [vmem:[#allocation2 + $0x78] sm:$0xff]
        %v883 = vld [vmem:[#allocation2 + $0x80] sm:$0xff]
        %v884 = vld [vmem:[#allocation2 + $0x88] sm:$0xff]
        %v885 = vld [vmem:[#allocation2 + $0x90] sm:$0xff]
        %v886 = vld [vmem:[#allocation2 + $0x98] sm:$0xff]
        %v887 = vld [vmem:[#allocation2 + $0xa0] sm:$0xff]
        %v888 = vld [vmem:[#allocation2 + $0xa8] sm:$0xff]
        %v889 = vld [vmem:[#allocation2 + $0xb0] sm:$0xff]
        %v890 = vld [vmem:[#allocation2 + $0xb8] sm:$0xff]
        %v891 = vld [vmem:[#allocation2 + $0xc0] sm:$0xff]
        %v892 = vld [vmem:[#allocation2 + $0xc8] sm:$0xff]
        %v893 = vld [vmem:[#allocation2 + $0xd0] sm:$0xff]
        %v894 = vld [vmem:[#allocation2 + $0xd8] sm:$0xff]
        %v895 = vld [vmem:[#allocation2 + $0xe0] sm:$0xff]
        %v896 = vld [vmem:[#allocation2 + $0xe8] sm:$0xff]
        %v897 = vld [vmem:[#allocation2 + $0xf0] sm:$0xff]
        %898 = vst.msk [vmem:[#allocation3] sm:$0xff] %vm824, 0.0
        %899 = vst.msk [vmem:[#allocation3 + $0x8] sm:$0xff] %vm824, 0.0
        %900 = vst.msk [vmem:[#allocation3 + $0x10] sm:$0xff] %vm824, 0.0
        %901 = vst.msk [vmem:[#allocation3 + $0x18] sm:$0xff] %vm824, 0.0
        %902 = vst.msk [vmem:[#allocation3 + $0x20] sm:$0xff] %vm824, 0.0
        %903 = vst.msk [vmem:[#allocation3 + $0x28] sm:$0xff] %vm824, 0.0
        %904 = vst.msk [vmem:[#allocation3 + $0x30] sm:$0xff] %vm824, 0.0
        %905 = vst.msk [vmem:[#allocation3 + $0x38] sm:$0xff] %vm824, 0.0
        %906 = vst.msk [vmem:[#allocation3 + $0x40] sm:$0xff] %vm824, 0.0
        %907 = vst.msk [vmem:[#allocation3 + $0x48] sm:$0xff] %vm824, 0.0
        %908 = vst.msk [vmem:[#allocation3 + $0x50] sm:$0xff] %vm824, 0.0
        %909 = vst.msk [vmem:[#allocation3 + $0x58] sm:$0xff] %vm824, 0.0
        %910 = vst.msk [vmem:[#allocation3 + $0x60] sm:$0xff] %vm824, 0.0
        %911 = vst.msk [vmem:[#allocation3 + $0x68] sm:$0xff] %vm824, 0.0
        %912 = vst.msk [vmem:[#allocation3 + $0x70] sm:$0xff] %vm824, 0.0
        %913 = vst.msk [vmem:[#allocation3 + $0x78] sm:$0xff] %vm824, 0.0
        %914 = vst.msk [vmem:[#allocation3 + $0x80] sm:$0xff] %vm824, 0.0
        %915 = vst.msk [vmem:[#allocation3 + $0x88] sm:$0xff] %vm824, 0.0
        %916 = vst.msk [vmem:[#allocation3 + $0x90] sm:$0xff] %vm824, 0.0
        %917 = vst.msk [vmem:[#allocation3 + $0x98] sm:$0xff] %vm824, 0.0
        %918 = vst.msk [vmem:[#allocation3 + $0xa0] sm:$0xff] %vm824, 0.0
        %919 = vst.msk [vmem:[#allocation3 + $0xa8] sm:$0xff] %vm824, 0.0
        %920 = vst.msk [vmem:[#allocation3 + $0xb0] sm:$0xff] %vm824, 0.0
        %921 = vst.msk [vmem:[#allocation3 + $0xb8] sm:$0xff] %vm824, 0.0
        %v922 = vpack.c.bf16 %v868, %v867
        %v923 = vpack.c.bf16 %v870, %v869
        %v924 = vpack.c.bf16 %v872, %v871
        %v925 = vpack.c.bf16 %v874, %v873
        %v926 = vpack.c.bf16 %v876, %v875
        %v927 = vpack.c.bf16 %v878, %v877
        %v928 = vpack.c.bf16 %v880, %v879
        %v929 = vpack.c.bf16 %v882, %v881
        %v930 = vpack.c.bf16 %v884, %v883
        %v931 = vpack.c.bf16 %v886, %v885
        %v932 = vpack.c.bf16 %v888, %v887
        %v933 = vpack.c.bf16 %v890, %v889
        %v934 = vpack.c.bf16 %v892, %v891
        %v935 = vpack.c.bf16 %v894, %v893
        %v936 = vpack.c.bf16 %v896, %v895
        %v937 = vld [vmem:[#allocation3] sm:$0xff]
        %v938 = vld [vmem:[#allocation3 + $0x8] sm:$0xff]
        %v939 = vld [vmem:[#allocation3 + $0x10] sm:$0xff]
        %v940 = vld [vmem:[#allocation3 + $0x18] sm:$0xff]
        %v941 = vld [vmem:[#allocation3 + $0x20] sm:$0xff]
        %v942 = vld [vmem:[#allocation3 + $0x28] sm:$0xff]
        %v943 = vld [vmem:[#allocation3 + $0x30] sm:$0xff]
        %v944 = vld [vmem:[#allocation3 + $0x38] sm:$0xff]
        %v945 = vld [vmem:[#allocation3 + $0x40] sm:$0xff]
        %v946 = vld [vmem:[#allocation3 + $0x48] sm:$0xff]
        %v947 = vld [vmem:[#allocation3 + $0x50] sm:$0xff]
        %v948 = vld [vmem:[#allocation3 + $0x58] sm:$0xff]
        %v949 = vld [vmem:[#allocation3 + $0x60] sm:$0xff]
        %v950 = vld [vmem:[#allocation3 + $0x68] sm:$0xff]
        %v951 = vld [vmem:[#allocation3 + $0x70] sm:$0xff]
        %v952 = vld [vmem:[#allocation3 + $0x78] sm:$0xff]
        %v953 = vld [vmem:[#allocation3 + $0x80] sm:$0xff]
        %v954 = vld [vmem:[#allocation3 + $0x88] sm:$0xff]
        %v955 = vld [vmem:[#allocation3 + $0x90] sm:$0xff]
        %v956 = vld [vmem:[#allocation3 + $0x98] sm:$0xff]
        %v957 = vld [vmem:[#allocation3 + $0xa0] sm:$0xff]
        %v958 = vld [vmem:[#allocation3 + $0xa8] sm:$0xff]
        %v959 = vld [vmem:[#allocation3 + $0xb0] sm:$0xff]
        %v960 = vld [vmem:[#allocation3 + $0xb8] sm:$0xff]
        %v961 = vld [vmem:[#allocation13] sm:$0xf]
        %v962 = vld [vmem:[#allocation13 + $0x4] sm:$0xf]
        %v963 = vld [vmem:[#allocation13 + $0x8] sm:$0xf]
        %v964 = vld [vmem:[#allocation13 + $0xc] sm:$0xf]
        %v965 = vld [vmem:[#allocation13 + $0x10] sm:$0xf]
        %v966 = vld [vmem:[#allocation13 + $0x14] sm:$0xf]
        %v967 = vld [vmem:[#allocation13 + $0x18] sm:$0xf]
        %v968 = vld [vmem:[#allocation13 + $0x1c] sm:$0xf]
        %v977 = vunpack.c.l.b16 %v961
        %v978 = vunpack.c.l.b16 %v962
        %v979 = vunpack.c.l.b16 %v963
        %v980 = vunpack.c.l.b16 %v964
        %v981 = vunpack.c.l.b16 %v965
        %v982 = vunpack.c.l.b16 %v966
        %v983 = vunpack.c.l.b16 %v967
        %v984 = vunpack.c.l.b16 %v968
        %v985 = vpack.c.b16 %v978, %v977
        %v986 = vpack.c.b16 %v980, %v979
        %v987 = vpack.c.b16 %v982, %v981
        %v988 = vpack.c.b16 %v984, %v983
        %v994 = vsel %vm824, %v922, 0
        %v997 = vsel %vm824, %v923, 0
        %v1000 = vsel %vm824, %v924, 0
        %v1003 = vsel %vm824, %v925, 0
        %v1006 = vsel %vm824, %v926, 0
        %v1009 = vsel %vm824, %v927, 0
        %v1012 = vsel %vm824, %v928, 0
        %v1015 = vsel %vm824, %v929, 0
        %v1018 = vsel %vm824, %v930, 0
        %v1021 = vsel %vm824, %v931, 0
        %v1024 = vsel %vm824, %v932, 0
        %v1027 = vsel %vm824, %v933, 0
        %1029 = vmatprep.subr.bf16.mxu0 0
        %1030 = vmatpush1.bf16.msra.mxu0 %v985
        %1031 = vmatprep.subr.bf16.mxu0 0
        %1032 = vmatpush1.bf16.msra.mxu0 %v986
        %1033 = vmatprep.subr.bf16.mxu0 0
        %1034 = vmatpush1.bf16.msra.mxu0 %v987
        %1035 = vmatprep.subr.bf16.mxu0 0
        %1036 = vmatpush1.bf16.msra.mxu0 %v988
        %1037 = vmatprep.subr.bf16.mxu0 0
        %1038 = vmatpush1.bf16.msra.mxu0 0
        %1039 = vmatprep.subr.bf16.mxu0 0
        %1040 = vmatpush1.bf16.msra.mxu0 0
        %1041 = vmatprep.subr.bf16.mxu0 0
        %1042 = vmatpush1.bf16.msra.mxu0 0
        %1043 = vmatprep.subr.bf16.mxu0 0
        %1044 = vmatpush1.bf16.msra.mxu0 0
        %1045 = vmatprep.subr.bf16.mxu0 0
        %1046 = vmatpush1.bf16.msra.mxu0 0
        %1047 = vmatprep.subr.bf16.mxu0 0
        %1048 = vmatpush1.bf16.msra.mxu0 0
        %1049 = vmatprep.subr.bf16.mxu0 0
        %1050 = vmatpush1.bf16.msra.mxu0 0
        %1051 = vmatprep.subr.bf16.mxu0 0
        %1052 = vmatpush1.bf16.msra.mxu0 0
        %1053 = vmatprep.subr.bf16.mxu0 0
        %1054 = vmatpush1.bf16.msra.mxu0 0
        %1055 = vmatprep.subr.bf16.mxu0 0
        %1056 = vmatpush1.bf16.msra.mxu0 0
        %1057 = vmatprep.subr.bf16.mxu0 0
        %1058 = vmatpush1.bf16.msra.mxu0 0
        %1059 = vmatprep.subr.bf16.mxu0 0
        %1060 = vmatpush1.bf16.msra.mxu0 0
        %1061 = vmatprep.mubr.bf16.mxu0 0
        %1062 = vmatmul.mubr.bf16.gmra.mrb[0].mxu0 %v994
        %v1063 = vpop.f32.mrb[0].mxu0
        %v1064 = vadd.f32 0.0, %v1063
        %v1065 = vpop.f32.mrb[0].mxu0
        %v1066 = vpop.f32.mrb[0].mxu0
        %v1067 = vadd.f32 0.0, %v1066
        %v1068 = vpop.f32.mrb[0].mxu0
        %1069 = vmatprep.mubr.bf16.mxu0 0
        %1070 = vmatmul.mubr.bf16.gmra.mrb[0].mxu0 %v997
        %v1071 = vpop.f32.mrb[0].mxu0
        %v1072 = vadd.f32 0.0, %v1071
        %v1073 = vpop.f32.mrb[0].mxu0
        %v1074 = vpop.f32.mrb[0].mxu0
        %v1075 = vadd.f32 0.0, %v1074
        %v1076 = vpop.f32.mrb[0].mxu0
        %1077 = vmatprep.mubr.bf16.mxu0 0
        %1078 = vmatmul.mubr.bf16.gmra.mrb[0].mxu0 %v1000
        %v1079 = vpop.f32.mrb[0].mxu0
        %v1080 = vadd.f32 0.0, %v1079
        %v1081 = vpop.f32.mrb[0].mxu0
        %v1082 = vpop.f32.mrb[0].mxu0
        %v1083 = vadd.f32 0.0, %v1082
        %v1084 = vpop.f32.mrb[0].mxu0
        %1085 = vmatprep.mubr.bf16.mxu0 0
        %1086 = vmatmul.mubr.bf16.gmra.mrb[0].mxu0 %v1003
        %v1087 = vpop.f32.mrb[0].mxu0
        %v1088 = vadd.f32 0.0, %v1087
        %v1089 = vpop.f32.mrb[0].mxu0
        %v1090 = vpop.f32.mrb[0].mxu0
        %v1091 = vadd.f32 0.0, %v1090
        %v1092 = vpop.f32.mrb[0].mxu0
        %1093 = vmatprep.mubr.bf16.mxu0 0
        %1094 = vmatmul.mubr.bf16.gmra.mrb[0].mxu0 %v1006
        %v1095 = vpop.f32.mrb[0].mxu0
        %v1096 = vadd.f32 0.0, %v1095
        %v1097 = vpop.f32.mrb[0].mxu0
        %v1098 = vpop.f32.mrb[0].mxu0
        %v1099 = vadd.f32 0.0, %v1098
        %v1100 = vpop.f32.mrb[0].mxu0
        %1101 = vmatprep.mubr.bf16.mxu0 0
        %1102 = vmatmul.mubr.bf16.gmra.mrb[0].mxu0 %v1009
        %v1103 = vpop.f32.mrb[0].mxu0
        %v1104 = vadd.f32 0.0, %v1103
        %v1105 = vpop.f32.mrb[0].mxu0
        %v1106 = vpop.f32.mrb[0].mxu0
        %v1107 = vadd.f32 0.0, %v1106
        %v1108 = vpop.f32.mrb[0].mxu0
        %1109 = vmatprep.mubr.bf16.mxu0 0
        %1110 = vmatmul.mubr.bf16.gmra.mrb[0].mxu0 %v1012
        %v1111 = vpop.f32.mrb[0].mxu0
        %v1112 = vadd.f32 0.0, %v1111
        %v1113 = vpop.f32.mrb[0].mxu0
        %v1114 = vpop.f32.mrb[0].mxu0
        %v1115 = vadd.f32 0.0, %v1114
        %v1116 = vpop.f32.mrb[0].mxu0
        %1117 = vmatprep.mubr.bf16.mxu0 0
        %1118 = vmatmul.mubr.bf16.gmra.mrb[0].mxu0 %v1015
        %v1119 = vpop.f32.mrb[0].mxu0
        %v1120 = vadd.f32 0.0, %v1119
        %v1121 = vpop.f32.mrb[0].mxu0
        %v1122 = vpop.f32.mrb[0].mxu0
        %v1123 = vadd.f32 0.0, %v1122
        %v1124 = vpop.f32.mrb[0].mxu0
        %1125 = vmatprep.mubr.bf16.mxu0 0
        %1126 = vmatmul.mubr.bf16.gmra.mrb[0].mxu0 %v1018
        %v1127 = vpop.f32.mrb[0].mxu0
        %v1128 = vadd.f32 0.0, %v1127
        %v1129 = vpop.f32.mrb[0].mxu0
        %v1130 = vpop.f32.mrb[0].mxu0
        %v1131 = vadd.f32 0.0, %v1130
        %v1132 = vpop.f32.mrb[0].mxu0
        %1133 = vmatprep.mubr.bf16.mxu0 0
        %1134 = vmatmul.mubr.bf16.gmra.mrb[0].mxu0 %v1021
        %v1135 = vpop.f32.mrb[0].mxu0
        %v1136 = vadd.f32 0.0, %v1135
        %v1137 = vpop.f32.mrb[0].mxu0
        %v1138 = vpop.f32.mrb[0].mxu0
        %v1139 = vadd.f32 0.0, %v1138
        %v1140 = vpop.f32.mrb[0].mxu0
        %1141 = vmatprep.mubr.bf16.mxu0 0
        %1142 = vmatmul.mubr.bf16.gmra.mrb[0].mxu0 %v1024
        %v1143 = vpop.f32.mrb[0].mxu0
        %v1144 = vadd.f32 0.0, %v1143
        %v1145 = vpop.f32.mrb[0].mxu0
        %v1146 = vpop.f32.mrb[0].mxu0
        %v1147 = vadd.f32 0.0, %v1146
        %v1148 = vpop.f32.mrb[0].mxu0
        %1149 = vmatprep.mubr.bf16.mxu0 0
        %1150 = vmatmul.mubr.bf16.gmra.mrb[0].mxu0 %v1027
        %v1151 = vpop.f32.mrb[0].mxu0
        %v1152 = vadd.f32 0.0, %v1151
        %v1153 = vpop.f32.mrb[0].mxu0
        %v1154 = vpop.f32.mrb[0].mxu0
        %v1155 = vadd.f32 0.0, %v1154
        %v1156 = vpop.f32.mrb[0].mxu0
        %1157 = vdwg.mxu0
        %v1158 = vadd.f32 %v937, %v1064
        %v1159 = vadd.f32 %v938, %v1067
        %v1160 = vadd.f32 %v939, %v1072
        %v1161 = vadd.f32 %v940, %v1075
        %v1162 = vadd.f32 %v941, %v1080
        %v1163 = vadd.f32 %v942, %v1083
        %v1164 = vadd.f32 %v943, %v1088
        %v1165 = vadd.f32 %v944, %v1091
        %v1166 = vadd.f32 %v945, %v1096
        %v1167 = vadd.f32 %v946, %v1099
        %v1168 = vadd.f32 %v947, %v1104
        %v1169 = vadd.f32 %v948, %v1107
        %v1170 = vadd.f32 %v949, %v1112
        %v1171 = vadd.f32 %v950, %v1115
        %v1172 = vadd.f32 %v951, %v1120
        %v1173 = vadd.f32 %v952, %v1123
        %v1174 = vadd.f32 %v953, %v1128
        %v1175 = vadd.f32 %v954, %v1131
        %v1176 = vadd.f32 %v955, %v1136
        %v1177 = vadd.f32 %v956, %v1139
        %v1178 = vadd.f32 %v957, %v1144
        %v1179 = vadd.f32 %v958, %v1147
        %v1180 = vadd.f32 %v959, %v1152
        %v1181 = vadd.f32 %v960, %v1155
        %1182 = vst.msk [vmem:[#allocation3] sm:$0xff] %vm824, %v1158
        %1183 = vst.msk [vmem:[#allocation3 + $0x8] sm:$0xff] %vm824, %v1159
        %1184 = vst.msk [vmem:[#allocation3 + $0x10] sm:$0xff] %vm824, %v1160
        %1185 = vst.msk [vmem:[#allocation3 + $0x18] sm:$0xff] %vm824, %v1161
        %1186 = vst.msk [vmem:[#allocation3 + $0x20] sm:$0xff] %vm824, %v1162
        %1187 = vst.msk [vmem:[#allocation3 + $0x28] sm:$0xff] %vm824, %v1163
        %1188 = vst.msk [vmem:[#allocation3 + $0x30] sm:$0xff] %vm824, %v1164
        %1189 = vst.msk [vmem:[#allocation3 + $0x38] sm:$0xff] %vm824, %v1165
        %1190 = vst.msk [vmem:[#allocation3 + $0x40] sm:$0xff] %vm824, %v1166
        %1191 = vst.msk [vmem:[#allocation3 + $0x48] sm:$0xff] %vm824, %v1167
        %1192 = vst.msk [vmem:[#allocation3 + $0x50] sm:$0xff] %vm824, %v1168
        %1193 = vst.msk [vmem:[#allocation3 + $0x58] sm:$0xff] %vm824, %v1169
        %1194 = vst.msk [vmem:[#allocation3 + $0x60] sm:$0xff] %vm824, %v1170
        %1195 = vst.msk [vmem:[#allocation3 + $0x68] sm:$0xff] %vm824, %v1171
        %1196 = vst.msk [vmem:[#allocation3 + $0x70] sm:$0xff] %vm824, %v1172
        %1197 = vst.msk [vmem:[#allocation3 + $0x78] sm:$0xff] %vm824, %v1173
        %1198 = vst.msk [vmem:[#allocation3 + $0x80] sm:$0xff] %vm824, %v1174
        %1199 = vst.msk [vmem:[#allocation3 + $0x88] sm:$0xff] %vm824, %v1175
        %1200 = vst.msk [vmem:[#allocation3 + $0x90] sm:$0xff] %vm824, %v1176
        %1201 = vst.msk [vmem:[#allocation3 + $0x98] sm:$0xff] %vm824, %v1177
        %1202 = vst.msk [vmem:[#allocation3 + $0xa0] sm:$0xff] %vm824, %v1178
        %1203 = vst.msk [vmem:[#allocation3 + $0xa8] sm:$0xff] %vm824, %v1179
        %1204 = vst.msk [vmem:[#allocation3 + $0xb0] sm:$0xff] %vm824, %v1180
        %1205 = vst.msk [vmem:[#allocation3 + $0xb8] sm:$0xff] %vm824, %v1181
        %v1206 = vld [vmem:[#allocation3] sm:$0xff]
        %v1207 = vld [vmem:[#allocation3 + $0x8] sm:$0xff]
        %v1208 = vld [vmem:[#allocation3 + $0x10] sm:$0xff]
        %v1209 = vld [vmem:[#allocation3 + $0x18] sm:$0xff]
        %v1210 = vld [vmem:[#allocation3 + $0x20] sm:$0xff]
        %v1211 = vld [vmem:[#allocation3 + $0x28] sm:$0xff]
        %v1212 = vld [vmem:[#allocation3 + $0x30] sm:$0xff]
        %v1213 = vld [vmem:[#allocation3 + $0x38] sm:$0xff]
        %v1214 = vld [vmem:[#allocation3 + $0x40] sm:$0xff]
        %v1215 = vld [vmem:[#allocation3 + $0x48] sm:$0xff]
        %v1216 = vld [vmem:[#allocation3 + $0x50] sm:$0xff]
        %v1217 = vld [vmem:[#allocation3 + $0x58] sm:$0xff]
        %v1218 = vld [vmem:[#allocation3 + $0x60] sm:$0xff]
        %v1219 = vld [vmem:[#allocation3 + $0x68] sm:$0xff]
        %v1220 = vld [vmem:[#allocation3 + $0x70] sm:$0xff]
        %v1221 = vld [vmem:[#allocation3 + $0x78] sm:$0xff]
        %v1222 = vld [vmem:[#allocation3 + $0x80] sm:$0xff]
        %v1223 = vld [vmem:[#allocation3 + $0x88] sm:$0xff]
        %v1224 = vld [vmem:[#allocation3 + $0x90] sm:$0xff]
        %v1225 = vld [vmem:[#allocation3 + $0x98] sm:$0xff]
        %v1226 = vld [vmem:[#allocation3 + $0xa0] sm:$0xff]
        %v1227 = vld [vmem:[#allocation3 + $0xa8] sm:$0xff]
        %v1228 = vld [vmem:[#allocation3 + $0xb0] sm:$0xff]
        %v1229 = vld [vmem:[#allocation3 + $0xb8] sm:$0xff]
        %s1230 = scalar_lea.vmem [#allocation13], 96
        %v1231 = vld [vmem:[%s1230] sm:$0xf]
        %v1232 = vld [vmem:[%s1230 + $0x4] sm:$0xf]
        %v1233 = vld [vmem:[%s1230 + $0x8] sm:$0xf]
        %v1234 = vld [vmem:[%s1230 + $0xc] sm:$0xf]
        %v1235 = vld [vmem:[%s1230 + $0x10] sm:$0xf]
        %v1236 = vld [vmem:[%s1230 + $0x14] sm:$0xf]
        %v1237 = vld [vmem:[%s1230 + $0x18] sm:$0xf]
        %v1238 = vld [vmem:[%s1230 + $0x1c] sm:$0xf]
        %vm1252 = vcmask 1043456
        %v1253 = vrot.slane %v923, 4
        %v1254 = vrot.slane %v924, 4
        %v1255 = vsel %vm1252, %v1253, %v1254
        %v1256 = vrot.slane %v925, 4
        %v1257 = vsel %vm1252, %v1254, %v1256
        %v1258 = vrot.slane %v926, 4
        %v1259 = vsel %vm1252, %v1256, %v1258
        %v1260 = vrot.slane %v927, 4
        %v1261 = vsel %vm1252, %v1258, %v1260
        %v1262 = vrot.slane %v928, 4
        %v1263 = vsel %vm1252, %v1260, %v1262
        %v1264 = vrot.slane %v929, 4
        %v1265 = vsel %vm1252, %v1262, %v1264
        %v1266 = vrot.slane %v930, 4
        %v1267 = vsel %vm1252, %v1264, %v1266
        %v1268 = vrot.slane %v931, 4
        %v1269 = vsel %vm1252, %v1266, %v1268
        %v1270 = vrot.slane %v932, 4
        %v1271 = vsel %vm1252, %v1268, %v1270
        %v1272 = vrot.slane %v933, 4
        %v1273 = vsel %vm1252, %v1270, %v1272
        %v1274 = vrot.slane %v934, 4
        %v1275 = vsel %vm1252, %v1272, %v1274
        %v1276 = vrot.slane %v935, 4
        %v1277 = vsel %vm1252, %v1274, %v1276
        %v1286 = vunpack.c.l.b16 %v1231
        %v1287 = vunpack.c.l.b16 %v1232
        %v1288 = vunpack.c.l.b16 %v1233
        %v1289 = vunpack.c.l.b16 %v1234
        %v1290 = vunpack.c.l.b16 %v1235
        %v1291 = vunpack.c.l.b16 %v1236
        %v1292 = vunpack.c.l.b16 %v1237
        %v1293 = vunpack.c.l.b16 %v1238
        %v1294 = vpack.c.b16 %v1287, %v1286
        %v1295 = vpack.c.b16 %v1289, %v1288
        %v1296 = vpack.c.b16 %v1291, %v1290
        %v1297 = vpack.c.b16 %v1293, %v1292
        %v1303 = vsel %vm824, %v1255, 0
        %v1306 = vsel %vm824, %v1257, 0
        %v1309 = vsel %vm824, %v1259, 0
        %v1312 = vsel %vm824, %v1261, 0
        %v1315 = vsel %vm824, %v1263, 0
        %v1318 = vsel %vm824, %v1265, 0
        %v1321 = vsel %vm824, %v1267, 0
        %v1324 = vsel %vm824, %v1269, 0
        %v1327 = vsel %vm824, %v1271, 0
        %v1330 = vsel %vm824, %v1273, 0
        %v1333 = vsel %vm824, %v1275, 0
        %v1336 = vsel %vm824, %v1277, 0
        %1338 = vmatprep.subr.bf16.mxu0 0
        %1339 = vmatpush1.bf16.msra.mxu0 %v1294
        %1340 = vmatprep.subr.bf16.mxu0 0
        %1341 = vmatpush1.bf16.msra.mxu0 %v1295
        %1342 = vmatprep.subr.bf16.mxu0 0
        %1343 = vmatpush1.bf16.msra.mxu0 %v1296
        %1344 = vmatprep.subr.bf16.mxu0 0
        %1345 = vmatpush1.bf16.msra.mxu0 %v1297
        %1346 = vmatprep.subr.bf16.mxu0 0
        %1347 = vmatpush1.bf16.msra.mxu0 0
        %1348 = vmatprep.subr.bf16.mxu0 0
        %1349 = vmatpush1.bf16.msra.mxu0 0
        %1350 = vmatprep.subr.bf16.mxu0 0
        %1351 = vmatpush1.bf16.msra.mxu0 0
        %1352 = vmatprep.subr.bf16.mxu0 0
        %1353 = vmatpush1.bf16.msra.mxu0 0
        %1354 = vmatprep.subr.bf16.mxu0 0
        %1355 = vmatpush1.bf16.msra.mxu0 0
        %1356 = vmatprep.subr.bf16.mxu0 0
        %1357 = vmatpush1.bf16.msra.mxu0 0
        %1358 = vmatprep.subr.bf16.mxu0 0
        %1359 = vmatpush1.bf16.msra.mxu0 0
        %1360 = vmatprep.subr.bf16.mxu0 0
        %1361 = vmatpush1.bf16.msra.mxu0 0
        %1362 = vmatprep.subr.bf16.mxu0 0
        %1363 = vmatpush1.bf16.msra.mxu0 0
        %1364 = vmatprep.subr.bf16.mxu0 0
        %1365 = vmatpush1.bf16.msra.mxu0 0
        %1366 = vmatprep.subr.bf16.mxu0 0
        %1367 = vmatpush1.bf16.msra.mxu0 0
        %1368 = vmatprep.subr.bf16.mxu0 0
        %1369 = vmatpush1.bf16.msra.mxu0 0
        %1370 = vmatprep.mubr.bf16.mxu0 0
        %1371 = vmatmul.mubr.bf16.gmra.mrb[0].mxu0 %v1303
        %v1372 = vpop.f32.mrb[0].mxu0
        %v1373 = vadd.f32 0.0, %v1372
        %v1374 = vpop.f32.mrb[0].mxu0
        %v1375 = vpop.f32.mrb[0].mxu0
        %v1376 = vadd.f32 0.0, %v1375
        %v1377 = vpop.f32.mrb[0].mxu0
        %1378 = vmatprep.mubr.bf16.mxu0 0
        %1379 = vmatmul.mubr.bf16.gmra.mrb[0].mxu0 %v1306
        %v1380 = vpop.f32.mrb[0].mxu0
        %v1381 = vadd.f32 0.0, %v1380
        %v1382 = vpop.f32.mrb[0].mxu0
        %v1383 = vpop.f32.mrb[0].mxu0
        %v1384 = vadd.f32 0.0, %v1383
        %v1385 = vpop.f32.mrb[0].mxu0
        %1386 = vmatprep.mubr.bf16.mxu0 0
        %1387 = vmatmul.mubr.bf16.gmra.mrb[0].mxu0 %v1309
        %v1388 = vpop.f32.mrb[0].mxu0
        %v1389 = vadd.f32 0.0, %v1388
        %v1390 = vpop.f32.mrb[0].mxu0
        %v1391 = vpop.f32.mrb[0].mxu0
        %v1392 = vadd.f32 0.0, %v1391
        %v1393 = vpop.f32.mrb[0].mxu0
        %1394 = vmatprep.mubr.bf16.mxu0 0
        %1395 = vmatmul.mubr.bf16.gmra.mrb[0].mxu0 %v1312
        %v1396 = vpop.f32.mrb[0].mxu0
        %v1397 = vadd.f32 0.0, %v1396
        %v1398 = vpop.f32.mrb[0].mxu0
        %v1399 = vpop.f32.mrb[0].mxu0
        %v1400 = vadd.f32 0.0, %v1399
        %v1401 = vpop.f32.mrb[0].mxu0
        %1402 = vmatprep.mubr.bf16.mxu0 0
        %1403 = vmatmul.mubr.bf16.gmra.mrb[0].mxu0 %v1315
        %v1404 = vpop.f32.mrb[0].mxu0
        %v1405 = vadd.f32 0.0, %v1404
        %v1406 = vpop.f32.mrb[0].mxu0
        %v1407 = vpop.f32.mrb[0].mxu0
        %v1408 = vadd.f32 0.0, %v1407
        %v1409 = vpop.f32.mrb[0].mxu0
        %1410 = vmatprep.mubr.bf16.mxu0 0
        %1411 = vmatmul.mubr.bf16.gmra.mrb[0].mxu0 %v1318
        %v1412 = vpop.f32.mrb[0].mxu0
        %v1413 = vadd.f32 0.0, %v1412
        %v1414 = vpop.f32.mrb[0].mxu0
        %v1415 = vpop.f32.mrb[0].mxu0
        %v1416 = vadd.f32 0.0, %v1415
        %v1417 = vpop.f32.mrb[0].mxu0
        %1418 = vmatprep.mubr.bf16.mxu0 0
        %1419 = vmatmul.mubr.bf16.gmra.mrb[0].mxu0 %v1321
        %v1420 = vpop.f32.mrb[0].mxu0
        %v1421 = vadd.f32 0.0, %v1420
        %v1422 = vpop.f32.mrb[0].mxu0
        %v1423 = vpop.f32.mrb[0].mxu0
        %v1424 = vadd.f32 0.0, %v1423
        %v1425 = vpop.f32.mrb[0].mxu0
        %1426 = vmatprep.mubr.bf16.mxu0 0
        %1427 = vmatmul.mubr.bf16.gmra.mrb[0].mxu0 %v1324
        %v1428 = vpop.f32.mrb[0].mxu0
        %v1429 = vadd.f32 0.0, %v1428
        %v1430 = vpop.f32.mrb[0].mxu0
        %v1431 = vpop.f32.mrb[0].mxu0
        %v1432 = vadd.f32 0.0, %v1431
        %v1433 = vpop.f32.mrb[0].mxu0
        %1434 = vmatprep.mubr.bf16.mxu0 0
        %1435 = vmatmul.mubr.bf16.gmra.mrb[0].mxu0 %v1327
        %v1436 = vpop.f32.mrb[0].mxu0
        %v1437 = vadd.f32 0.0, %v1436
        %v1438 = vpop.f32.mrb[0].mxu0
        %v1439 = vpop.f32.mrb[0].mxu0
        %v1440 = vadd.f32 0.0, %v1439
        %v1441 = vpop.f32.mrb[0].mxu0
        %1442 = vmatprep.mubr.bf16.mxu0 0
        %1443 = vmatmul.mubr.bf16.gmra.mrb[0].mxu0 %v1330
        %v1444 = vpop.f32.mrb[0].mxu0
        %v1445 = vadd.f32 0.0, %v1444
        %v1446 = vpop.f32.mrb[0].mxu0
        %v1447 = vpop.f32.mrb[0].mxu0
        %v1448 = vadd.f32 0.0, %v1447
        %v1449 = vpop.f32.mrb[0].mxu0
        %1450 = vmatprep.mubr.bf16.mxu0 0
        %1451 = vmatmul.mubr.bf16.gmra.mrb[0].mxu0 %v1333
        %v1452 = vpop.f32.mrb[0].mxu0
        %v1453 = vadd.f32 0.0, %v1452
        %v1454 = vpop.f32.mrb[0].mxu0
        %v1455 = vpop.f32.mrb[0].mxu0
        %v1456 = vadd.f32 0.0, %v1455
        %v1457 = vpop.f32.mrb[0].mxu0
        %1458 = vmatprep.mubr.bf16.mxu0 0
        %1459 = vmatmul.mubr.bf16.gmra.mrb[0].mxu0 %v1336
        %v1460 = vpop.f32.mrb[0].mxu0
        %v1461 = vadd.f32 0.0, %v1460
        %v1462 = vpop.f32.mrb[0].mxu0
        %v1463 = vpop.f32.mrb[0].mxu0
        %v1464 = vadd.f32 0.0, %v1463
        %v1465 = vpop.f32.mrb[0].mxu0
        %1466 = vdwg.mxu0
        %v1467 = vadd.f32 %v1206, %v1373
        %v1468 = vadd.f32 %v1207, %v1376
        %v1469 = vadd.f32 %v1208, %v1381
        %v1470 = vadd.f32 %v1209, %v1384
        %v1471 = vadd.f32 %v1210, %v1389
        %v1472 = vadd.f32 %v1211, %v1392
        %v1473 = vadd.f32 %v1212, %v1397
        %v1474 = vadd.f32 %v1213, %v1400
        %v1475 = vadd.f32 %v1214, %v1405
        %v1476 = vadd.f32 %v1215, %v1408
        %v1477 = vadd.f32 %v1216, %v1413
        %v1478 = vadd.f32 %v1217, %v1416
        %v1479 = vadd.f32 %v1218, %v1421
        %v1480 = vadd.f32 %v1219, %v1424
        %v1481 = vadd.f32 %v1220, %v1429
        %v1482 = vadd.f32 %v1221, %v1432
        %v1483 = vadd.f32 %v1222, %v1437
        %v1484 = vadd.f32 %v1223, %v1440
        %v1485 = vadd.f32 %v1224, %v1445
        %v1486 = vadd.f32 %v1225, %v1448
        %v1487 = vadd.f32 %v1226, %v1453
        %v1488 = vadd.f32 %v1227, %v1456
        %v1489 = vadd.f32 %v1228, %v1461
        %v1490 = vadd.f32 %v1229, %v1464
        %1491 = vst.msk [vmem:[#allocation3] sm:$0xff] %vm824, %v1467
        %1492 = vst.msk [vmem:[#allocation3 + $0x8] sm:$0xff] %vm824, %v1468
        %1493 = vst.msk [vmem:[#allocation3 + $0x10] sm:$0xff] %vm824, %v1469
        %1494 = vst.msk [vmem:[#allocation3 + $0x18] sm:$0xff] %vm824, %v1470
        %1495 = vst.msk [vmem:[#allocation3 + $0x20] sm:$0xff] %vm824, %v1471
        %1496 = vst.msk [vmem:[#allocation3 + $0x28] sm:$0xff] %vm824, %v1472
        %1497 = vst.msk [vmem:[#allocation3 + $0x30] sm:$0xff] %vm824, %v1473
        %1498 = vst.msk [vmem:[#allocation3 + $0x38] sm:$0xff] %vm824, %v1474
        %1499 = vst.msk [vmem:[#allocation3 + $0x40] sm:$0xff] %vm824, %v1475
        %1500 = vst.msk [vmem:[#allocation3 + $0x48] sm:$0xff] %vm824, %v1476
        %1501 = vst.msk [vmem:[#allocation3 + $0x50] sm:$0xff] %vm824, %v1477
        %1502 = vst.msk [vmem:[#allocation3 + $0x58] sm:$0xff] %vm824, %v1478
        %1503 = vst.msk [vmem:[#allocation3 + $0x60] sm:$0xff] %vm824, %v1479
        %1504 = vst.msk [vmem:[#allocation3 + $0x68] sm:$0xff] %vm824, %v1480
        %1505 = vst.msk [vmem:[#allocation3 + $0x70] sm:$0xff] %vm824, %v1481
        %1506 = vst.msk [vmem:[#allocation3 + $0x78] sm:$0xff] %vm824, %v1482
        %1507 = vst.msk [vmem:[#allocation3 + $0x80] sm:$0xff] %vm824, %v1483
        %1508 = vst.msk [vmem:[#allocation3 + $0x88] sm:$0xff] %vm824, %v1484
        %1509 = vst.msk [vmem:[#allocation3 + $0x90] sm:$0xff] %vm824, %v1485
        %1510 = vst.msk [vmem:[#allocation3 + $0x98] sm:$0xff] %vm824, %v1486
        %1511 = vst.msk [vmem:[#allocation3 + $0xa0] sm:$0xff] %vm824, %v1487
        %1512 = vst.msk [vmem:[#allocation3 + $0xa8] sm:$0xff] %vm824, %v1488
        %1513 = vst.msk [vmem:[#allocation3 + $0xb0] sm:$0xff] %vm824, %v1489
        %1514 = vst.msk [vmem:[#allocation3 + $0xb8] sm:$0xff] %vm824, %v1490
        %v1515 = vld [vmem:[#allocation3] sm:$0xff]
        %v1516 = vld [vmem:[#allocation3 + $0x8] sm:$0xff]
        %v1517 = vld [vmem:[#allocation3 + $0x10] sm:$0xff]
        %v1518 = vld [vmem:[#allocation3 + $0x18] sm:$0xff]
        %v1519 = vld [vmem:[#allocation3 + $0x20] sm:$0xff]
        %v1520 = vld [vmem:[#allocation3 + $0x28] sm:$0xff]
        %v1521 = vld [vmem:[#allocation3 + $0x30] sm:$0xff]
        %v1522 = vld [vmem:[#allocation3 + $0x38] sm:$0xff]
        %v1523 = vld [vmem:[#allocation3 + $0x40] sm:$0xff]
        %v1524 = vld [vmem:[#allocation3 + $0x48] sm:$0xff]
        %v1525 = vld [vmem:[#allocation3 + $0x50] sm:$0xff]
        %v1526 = vld [vmem:[#allocation3 + $0x58] sm:$0xff]
        %v1527 = vld [vmem:[#allocation3 + $0x60] sm:$0xff]
        %v1528 = vld [vmem:[#allocation3 + $0x68] sm:$0xff]
        %v1529 = vld [vmem:[#allocation3 + $0x70] sm:$0xff]
        %v1530 = vld [vmem:[#allocation3 + $0x78] sm:$0xff]
        %v1531 = vld [vmem:[#allocation3 + $0x80] sm:$0xff]
        %v1532 = vld [vmem:[#allocation3 + $0x88] sm:$0xff]
        %v1533 = vld [vmem:[#allocation3 + $0x90] sm:$0xff]
        %v1534 = vld [vmem:[#allocation3 + $0x98] sm:$0xff]
        %v1535 = vld [vmem:[#allocation3 + $0xa0] sm:$0xff]
        %v1536 = vld [vmem:[#allocation3 + $0xa8] sm:$0xff]
        %v1537 = vld [vmem:[#allocation3 + $0xb0] sm:$0xff]
        %v1538 = vld [vmem:[#allocation3 + $0xb8] sm:$0xff]
        %s1539 = scalar_lea.vmem [#allocation13], 192
        %v1540 = vld [vmem:[%s1539] sm:$0xf]
        %v1541 = vld [vmem:[%s1539 + $0x4] sm:$0xf]
        %v1542 = vld [vmem:[%s1539 + $0x8] sm:$0xf]
        %v1543 = vld [vmem:[%s1539 + $0xc] sm:$0xf]
        %v1544 = vld [vmem:[%s1539 + $0x10] sm:$0xf]
        %v1545 = vld [vmem:[%s1539 + $0x14] sm:$0xf]
        %v1546 = vld [vmem:[%s1539 + $0x18] sm:$0xf]
        %v1547 = vld [vmem:[%s1539 + $0x1c] sm:$0xf]
        %v1556 = vunpack.c.l.b16 %v1540
        %v1557 = vunpack.c.l.b16 %v1541
        %v1558 = vunpack.c.l.b16 %v1542
        %v1559 = vunpack.c.l.b16 %v1543
        %v1560 = vunpack.c.l.b16 %v1544
        %v1561 = vunpack.c.l.b16 %v1545
        %v1562 = vunpack.c.l.b16 %v1546
        %v1563 = vunpack.c.l.b16 %v1547
        %v1564 = vpack.c.b16 %v1557, %v1556
        %v1565 = vpack.c.b16 %v1559, %v1558
        %v1566 = vpack.c.b16 %v1561, %v1560
        %v1567 = vpack.c.b16 %v1563, %v1562
        %v1573 = vsel %vm824, %v934, 0
        %v1576 = vsel %vm824, %v935, 0
        %v1579 = vsel %vm824, %v936, 0
        %1581 = vmatprep.subr.bf16.mxu0 0
        %1582 = vmatpush1.bf16.msra.mxu0 %v1564
        %1583 = vmatprep.subr.bf16.mxu0 0
        %1584 = vmatpush1.bf16.msra.mxu0 %v1565
        %1585 = vmatprep.subr.bf16.mxu0 0
        %1586 = vmatpush1.bf16.msra.mxu0 %v1566
        %1587 = vmatprep.subr.bf16.mxu0 0
        %1588 = vmatpush1.bf16.msra.mxu0 %v1567
        %1589 = vmatprep.subr.bf16.mxu0 0
        %1590 = vmatpush1.bf16.msra.mxu0 0
        %1591 = vmatprep.subr.bf16.mxu0 0
        %1592 = vmatpush1.bf16.msra.mxu0 0
        %1593 = vmatprep.subr.bf16.mxu0 0
        %1594 = vmatpush1.bf16.msra.mxu0 0
        %1595 = vmatprep.subr.bf16.mxu0 0
        %1596 = vmatpush1.bf16.msra.mxu0 0
        %1597 = vmatprep.subr.bf16.mxu0 0
        %1598 = vmatpush1.bf16.msra.mxu0 0
        %1599 = vmatprep.subr.bf16.mxu0 0
        %1600 = vmatpush1.bf16.msra.mxu0 0
        %1601 = vmatprep.subr.bf16.mxu0 0
        %1602 = vmatpush1.bf16.msra.mxu0 0
        %1603 = vmatprep.subr.bf16.mxu0 0
        %1604 = vmatpush1.bf16.msra.mxu0 0
        %1605 = vmatprep.subr.bf16.mxu0 0
        %1606 = vmatpush1.bf16.msra.mxu0 0
        %1607 = vmatprep.subr.bf16.mxu0 0
        %1608 = vmatpush1.bf16.msra.mxu0 0
        %1609 = vmatprep.subr.bf16.mxu0 0
        %1610 = vmatpush1.bf16.msra.mxu0 0
        %1611 = vmatprep.subr.bf16.mxu0 0
        %1612 = vmatpush1.bf16.msra.mxu0 0
        %1613 = vmatprep.mubr.bf16.mxu0 0
        %1614 = vmatmul.mubr.bf16.gmra.mrb[0].mxu0 %v1003
        %v1615 = vpop.f32.mrb[0].mxu0
        %v1616 = vadd.f32 0.0, %v1615
        %v1617 = vpop.f32.mrb[0].mxu0
        %v1618 = vpop.f32.mrb[0].mxu0
        %v1619 = vadd.f32 0.0, %v1618
        %v1620 = vpop.f32.mrb[0].mxu0
        %1621 = vmatprep.mubr.bf16.mxu0 0
        %1622 = vmatmul.mubr.bf16.gmra.mrb[0].mxu0 %v1006
        %v1623 = vpop.f32.mrb[0].mxu0
        %v1624 = vadd.f32 0.0, %v1623
        %v1625 = vpop.f32.mrb[0].mxu0
        %v1626 = vpop.f32.mrb[0].mxu0
        %v1627 = vadd.f32 0.0, %v1626
        %v1628 = vpop.f32.mrb[0].mxu0
        %1629 = vmatprep.mubr.bf16.mxu0 0
        %1630 = vmatmul.mubr.bf16.gmra.mrb[0].mxu0 %v1009
        %v1631 = vpop.f32.mrb[0].mxu0
        %v1632 = vadd.f32 0.0, %v1631
        %v1633 = vpop.f32.mrb[0].mxu0
        %v1634 = vpop.f32.mrb[0].mxu0
        %v1635 = vadd.f32 0.0, %v1634
        %v1636 = vpop.f32.mrb[0].mxu0
        %1637 = vmatprep.mubr.bf16.mxu0 0
        %1638 = vmatmul.mubr.bf16.gmra.mrb[0].mxu0 %v1012
        %v1639 = vpop.f32.mrb[0].mxu0
        %v1640 = vadd.f32 0.0, %v1639
        %v1641 = vpop.f32.mrb[0].mxu0
        %v1642 = vpop.f32.mrb[0].mxu0
        %v1643 = vadd.f32 0.0, %v1642
        %v1644 = vpop.f32.mrb[0].mxu0
        %1645 = vmatprep.mubr.bf16.mxu0 0
        %1646 = vmatmul.mubr.bf16.gmra.mrb[0].mxu0 %v1015
        %v1647 = vpop.f32.mrb[0].mxu0
        %v1648 = vadd.f32 0.0, %v1647
        %v1649 = vpop.f32.mrb[0].mxu0
        %v1650 = vpop.f32.mrb[0].mxu0
        %v1651 = vadd.f32 0.0, %v1650
        %v1652 = vpop.f32.mrb[0].mxu0
        %1653 = vmatprep.mubr.bf16.mxu0 0
        %1654 = vmatmul.mubr.bf16.gmra.mrb[0].mxu0 %v1018
        %v1655 = vpop.f32.mrb[0].mxu0
        %v1656 = vadd.f32 0.0, %v1655
        %v1657 = vpop.f32.mrb[0].mxu0
        %v1658 = vpop.f32.mrb[0].mxu0
        %v1659 = vadd.f32 0.0, %v1658
        %v1660 = vpop.f32.mrb[0].mxu0
        %1661 = vmatprep.mubr.bf16.mxu0 0
        %1662 = vmatmul.mubr.bf16.gmra.mrb[0].mxu0 %v1021
        %v1663 = vpop.f32.mrb[0].mxu0
        %v1664 = vadd.f32 0.0, %v1663
        %v1665 = vpop.f32.mrb[0].mxu0
        %v1666 = vpop.f32.mrb[0].mxu0
        %v1667 = vadd.f32 0.0, %v1666
        %v1668 = vpop.f32.mrb[0].mxu0
        %1669 = vmatprep.mubr.bf16.mxu0 0
        %1670 = vmatmul.mubr.bf16.gmra.mrb[0].mxu0 %v1024
        %v1671 = vpop.f32.mrb[0].mxu0
        %v1672 = vadd.f32 0.0, %v1671
        %v1673 = vpop.f32.mrb[0].mxu0
        %v1674 = vpop.f32.mrb[0].mxu0
        %v1675 = vadd.f32 0.0, %v1674
        %v1676 = vpop.f32.mrb[0].mxu0
        %1677 = vmatprep.mubr.bf16.mxu0 0
        %1678 = vmatmul.mubr.bf16.gmra.mrb[0].mxu0 %v1027
        %v1679 = vpop.f32.mrb[0].mxu0
        %v1680 = vadd.f32 0.0, %v1679
        %v1681 = vpop.f32.mrb[0].mxu0
        %v1682 = vpop.f32.mrb[0].mxu0
        %v1683 = vadd.f32 0.0, %v1682
        %v1684 = vpop.f32.mrb[0].mxu0
        %1685 = vmatprep.mubr.bf16.mxu0 0
        %1686 = vmatmul.mubr.bf16.gmra.mrb[0].mxu0 %v1573
        %v1687 = vpop.f32.mrb[0].mxu0
        %v1688 = vadd.f32 0.0, %v1687
        %v1689 = vpop.f32.mrb[0].mxu0
        %v1690 = vpop.f32.mrb[0].mxu0
        %v1691 = vadd.f32 0.0, %v1690
        %v1692 = vpop.f32.mrb[0].mxu0
        %1693 = vmatprep.mubr.bf16.mxu0 0
        %1694 = vmatmul.mubr.bf16.gmra.mrb[0].mxu0 %v1576
        %v1695 = vpop.f32.mrb[0].mxu0
        %v1696 = vadd.f32 0.0, %v1695
        %v1697 = vpop.f32.mrb[0].mxu0
        %v1698 = vpop.f32.mrb[0].mxu0
        %v1699 = vadd.f32 0.0, %v1698
        %v1700 = vpop.f32.mrb[0].mxu0
        %1701 = vmatprep.mubr.bf16.mxu0 0
        %1702 = vmatmul.mubr.bf16.gmra.mrb[0].mxu0 %v1579
        %v1703 = vpop.f32.mrb[0].mxu0
        %v1704 = vadd.f32 0.0, %v1703
        %v1705 = vpop.f32.mrb[0].mxu0
        %v1706 = vpop.f32.mrb[0].mxu0
        %v1707 = vadd.f32 0.0, %v1706
        %v1708 = vpop.f32.mrb[0].mxu0
        %1709 = vdwg.mxu0
        %v1710 = vadd.f32 %v1515, %v1616
        %v1711 = vadd.f32 %v1516, %v1619
        %v1712 = vadd.f32 %v1517, %v1624
        %v1713 = vadd.f32 %v1518, %v1627
        %v1714 = vadd.f32 %v1519, %v1632
        %v1715 = vadd.f32 %v1520, %v1635
        %v1716 = vadd.f32 %v1521, %v1640
        %v1717 = vadd.f32 %v1522, %v1643
        %v1718 = vadd.f32 %v1523, %v1648
        %v1719 = vadd.f32 %v1524, %v1651
        %v1720 = vadd.f32 %v1525, %v1656
        %v1721 = vadd.f32 %v1526, %v1659
        %v1722 = vadd.f32 %v1527, %v1664
        %v1723 = vadd.f32 %v1528, %v1667
        %v1724 = vadd.f32 %v1529, %v1672
        %v1725 = vadd.f32 %v1530, %v1675
        %v1726 = vadd.f32 %v1531, %v1680
        %v1727 = vadd.f32 %v1532, %v1683
        %v1728 = vadd.f32 %v1533, %v1688
        %v1729 = vadd.f32 %v1534, %v1691
        %v1730 = vadd.f32 %v1535, %v1696
        %v1731 = vadd.f32 %v1536, %v1699
        %v1732 = vadd.f32 %v1537, %v1704
        %v1733 = vadd.f32 %v1538, %v1707
        %1734 = vst.msk [vmem:[#allocation3] sm:$0xff] %vm824, %v1710
        %1735 = vst.msk [vmem:[#allocation3 + $0x8] sm:$0xff] %vm824, %v1711
        %1736 = vst.msk [vmem:[#allocation3 + $0x10] sm:$0xff] %vm824, %v1712
        %1737 = vst.msk [vmem:[#allocation3 + $0x18] sm:$0xff] %vm824, %v1713
        %1738 = vst.msk [vmem:[#allocation3 + $0x20] sm:$0xff] %vm824, %v1714
        %1739 = vst.msk [vmem:[#allocation3 + $0x28] sm:$0xff] %vm824, %v1715
        %1740 = vst.msk [vmem:[#allocation3 + $0x30] sm:$0xff] %vm824, %v1716
        %1741 = vst.msk [vmem:[#allocation3 + $0x38] sm:$0xff] %vm824, %v1717
        %1742 = vst.msk [vmem:[#allocation3 + $0x40] sm:$0xff] %vm824, %v1718
        %1743 = vst.msk [vmem:[#allocation3 + $0x48] sm:$0xff] %vm824, %v1719
        %1744 = vst.msk [vmem:[#allocation3 + $0x50] sm:$0xff] %vm824, %v1720
        %1745 = vst.msk [vmem:[#allocation3 + $0x58] sm:$0xff] %vm824, %v1721
        %1746 = vst.msk [vmem:[#allocation3 + $0x60] sm:$0xff] %vm824, %v1722
        %1747 = vst.msk [vmem:[#allocation3 + $0x68] sm:$0xff] %vm824, %v1723
        %1748 = vst.msk [vmem:[#allocation3 + $0x70] sm:$0xff] %vm824, %v1724
        %1749 = vst.msk [vmem:[#allocation3 + $0x78] sm:$0xff] %vm824, %v1725
        %1750 = vst.msk [vmem:[#allocation3 + $0x80] sm:$0xff] %vm824, %v1726
        %1751 = vst.msk [vmem:[#allocation3 + $0x88] sm:$0xff] %vm824, %v1727
        %1752 = vst.msk [vmem:[#allocation3 + $0x90] sm:$0xff] %vm824, %v1728
        %1753 = vst.msk [vmem:[#allocation3 + $0x98] sm:$0xff] %vm824, %v1729
        %1754 = vst.msk [vmem:[#allocation3 + $0xa0] sm:$0xff] %vm824, %v1730
        %1755 = vst.msk [vmem:[#allocation3 + $0xa8] sm:$0xff] %vm824, %v1731
        %1756 = vst.msk [vmem:[#allocation3 + $0xb0] sm:$0xff] %vm824, %v1732
        %1757 = vst.msk [vmem:[#allocation3 + $0xb8] sm:$0xff] %vm824, %v1733
        %v1758 = vpack.c.bf16 %v897, %v897
        %v1759 = vld [vmem:[#allocation3] sm:$0xff]
        %v1760 = vld [vmem:[#allocation3 + $0x8] sm:$0xff]
        %v1761 = vld [vmem:[#allocation3 + $0x10] sm:$0xff]
        %v1762 = vld [vmem:[#allocation3 + $0x18] sm:$0xff]
        %v1763 = vld [vmem:[#allocation3 + $0x20] sm:$0xff]
        %v1764 = vld [vmem:[#allocation3 + $0x28] sm:$0xff]
        %v1765 = vld [vmem:[#allocation3 + $0x30] sm:$0xff]
        %v1766 = vld [vmem:[#allocation3 + $0x38] sm:$0xff]
        %v1767 = vld [vmem:[#allocation3 + $0x40] sm:$0xff]
        %v1768 = vld [vmem:[#allocation3 + $0x48] sm:$0xff]
        %v1769 = vld [vmem:[#allocation3 + $0x50] sm:$0xff]
        %v1770 = vld [vmem:[#allocation3 + $0x58] sm:$0xff]
        %v1771 = vld [vmem:[#allocation3 + $0x60] sm:$0xff]
        %v1772 = vld [vmem:[#allocation3 + $0x68] sm:$0xff]
        %v1773 = vld [vmem:[#allocation3 + $0x70] sm:$0xff]
        %v1774 = vld [vmem:[#allocation3 + $0x78] sm:$0xff]
        %v1775 = vld [vmem:[#allocation3 + $0x80] sm:$0xff]
        %v1776 = vld [vmem:[#allocation3 + $0x88] sm:$0xff]
        %v1777 = vld [vmem:[#allocation3 + $0x90] sm:$0xff]
        %v1778 = vld [vmem:[#allocation3 + $0x98] sm:$0xff]
        %v1779 = vld [vmem:[#allocation3 + $0xa0] sm:$0xff]
        %v1780 = vld [vmem:[#allocation3 + $0xa8] sm:$0xff]
        %v1781 = vld [vmem:[#allocation3 + $0xb0] sm:$0xff]
        %v1782 = vld [vmem:[#allocation3 + $0xb8] sm:$0xff]
        %s1783 = scalar_lea.vmem [#allocation13], 32
        %v1784 = vld [vmem:[%s1783] sm:$0xf]
        %v1785 = vld [vmem:[%s1783 + $0x4] sm:$0xf]
        %v1786 = vld [vmem:[%s1783 + $0x8] sm:$0xf]
        %v1787 = vld [vmem:[%s1783 + $0xc] sm:$0xf]
        %v1788 = vld [vmem:[%s1783 + $0x10] sm:$0xf]
        %v1789 = vld [vmem:[%s1783 + $0x14] sm:$0xf]
        %v1790 = vld [vmem:[%s1783 + $0x18] sm:$0xf]
        %v1791 = vld [vmem:[%s1783 + $0x1c] sm:$0xf]
        %vm1792 = vsmask.f32 7424
        %v1793 = vshrl.u32 %v922, 16
        %v1795 = vshll.u32 %v922, 16
        %v1797 = vrot.slane %v1795, 1
        %v1798 = vor.u32 %v1793, %v1797
        %v1799 = vshll.u32 %v923, 16
        %v1801 = vrot.slane %v1799, 1
        %v1802 = vsel %vm1792, %v1798, %v1801
        %v1803 = vshrl.u32 %v923, 16
        %v1805 = vor.u32 %v1803, %v1801
        %v1806 = vshll.u32 %v924, 16
        %v1808 = vrot.slane %v1806, 1
        %v1809 = vsel %vm1792, %v1805, %v1808
        %v1810 = vshrl.u32 %v924, 16
        %v1812 = vor.u32 %v1810, %v1808
        %v1813 = vshll.u32 %v925, 16
        %v1815 = vrot.slane %v1813, 1
        %v1816 = vsel %vm1792, %v1812, %v1815
        %v1817 = vshrl.u32 %v925, 16
        %v1819 = vor.u32 %v1817, %v1815
        %v1820 = vshll.u32 %v926, 16
        %v1822 = vrot.slane %v1820, 1
        %v1823 = vsel %vm1792, %v1819, %v1822
        %v1824 = vshrl.u32 %v926, 16
        %v1826 = vor.u32 %v1824, %v1822
        %v1827 = vshll.u32 %v927, 16
        %v1829 = vrot.slane %v1827, 1
        %v1830 = vsel %vm1792, %v1826, %v1829
        %v1831 = vshrl.u32 %v927, 16
        %v1833 = vor.u32 %v1831, %v1829
        %v1834 = vshll.u32 %v928, 16
        %v1836 = vrot.slane %v1834, 1
        %v1837 = vsel %vm1792, %v1833, %v1836
        %v1838 = vshrl.u32 %v928, 16
        %v1840 = vor.u32 %v1838, %v1836
        %v1841 = vshll.u32 %v929, 16
        %v1843 = vrot.slane %v1841, 1
        %v1844 = vsel %vm1792, %v1840, %v1843
        %v1845 = vshrl.u32 %v929, 16
        %v1847 = vor.u32 %v1845, %v1843
        %v1848 = vshll.u32 %v930, 16
        %v1850 = vrot.slane %v1848, 1
        %v1851 = vsel %vm1792, %v1847, %v1850
        %v1852 = vshrl.u32 %v930, 16
        %v1854 = vor.u32 %v1852, %v1850
        %v1855 = vshll.u32 %v931, 16
        %v1857 = vrot.slane %v1855, 1
        %v1858 = vsel %vm1792, %v1854, %v1857
        %v1859 = vshrl.u32 %v931, 16
        %v1861 = vor.u32 %v1859, %v1857
        %v1862 = vshll.u32 %v932, 16
        %v1864 = vrot.slane %v1862, 1
        %v1865 = vsel %vm1792, %v1861, %v1864
        %v1866 = vshrl.u32 %v932, 16
        %v1868 = vor.u32 %v1866, %v1864
        %v1869 = vshll.u32 %v933, 16
        %v1871 = vrot.slane %v1869, 1
        %v1872 = vsel %vm1792, %v1868, %v1871
        %v1873 = vshrl.u32 %v933, 16
        %v1875 = vor.u32 %v1873, %v1871
        %v1876 = vshll.u32 %v934, 16
        %v1878 = vrot.slane %v1876, 1
        %v1879 = vsel %vm1792, %v1875, %v1878
        %v1888 = vunpack.c.l.b16 %v1784
        %v1889 = vunpack.c.l.b16 %v1785
        %v1890 = vunpack.c.l.b16 %v1786
        %v1891 = vunpack.c.l.b16 %v1787
        %v1892 = vunpack.c.l.b16 %v1788
        %v1893 = vunpack.c.l.b16 %v1789
        %v1894 = vunpack.c.l.b16 %v1790
        %v1895 = vunpack.c.l.b16 %v1791
        %v1896 = vpack.c.b16 %v1889, %v1888
        %v1897 = vpack.c.b16 %v1891, %v1890
        %v1898 = vpack.c.b16 %v1893, %v1892
        %v1899 = vpack.c.b16 %v1895, %v1894
        %v1905 = vsel %vm824, %v1802, 0
        %v1908 = vsel %vm824, %v1809, 0
        %v1911 = vsel %vm824, %v1816, 0
        %v1914 = vsel %vm824, %v1823, 0
        %v1917 = vsel %vm824, %v1830, 0
        %v1920 = vsel %vm824, %v1837, 0
        %v1923 = vsel %vm824, %v1844, 0
        %v1926 = vsel %vm824, %v1851, 0
        %v1929 = vsel %vm824, %v1858, 0
        %v1932 = vsel %vm824, %v1865, 0
        %v1935 = vsel %vm824, %v1872, 0
        %v1938 = vsel %vm824, %v1879, 0
        %1940 = vmatprep.subr.bf16.mxu0 0
        %1941 = vmatpush1.bf16.msra.mxu0 %v1896
        %1942 = vmatprep.subr.bf16.mxu0 0
        %1943 = vmatpush1.bf16.msra.mxu0 %v1897
        %1944 = vmatprep.subr.bf16.mxu0 0
        %1945 = vmatpush1.bf16.msra.mxu0 %v1898
        %1946 = vmatprep.subr.bf16.mxu0 0
        %1947 = vmatpush1.bf16.msra.mxu0 %v1899
        %1948 = vmatprep.subr.bf16.mxu0 0
        %1949 = vmatpush1.bf16.msra.mxu0 0
        %1950 = vmatprep.subr.bf16.mxu0 0
        %1951 = vmatpush1.bf16.msra.mxu0 0
        %1952 = vmatprep.subr.bf16.mxu0 0
        %1953 = vmatpush1.bf16.msra.mxu0 0
        %1954 = vmatprep.subr.bf16.mxu0 0
        %1955 = vmatpush1.bf16.msra.mxu0 0
        %1956 = vmatprep.subr.bf16.mxu0 0
        %1957 = vmatpush1.bf16.msra.mxu0 0
        %1958 = vmatprep.subr.bf16.mxu0 0
        %1959 = vmatpush1.bf16.msra.mxu0 0
        %1960 = vmatprep.subr.bf16.mxu0 0
        %1961 = vmatpush1.bf16.msra.mxu0 0
        %1962 = vmatprep.subr.bf16.mxu0 0
        %1963 = vmatpush1.bf16.msra.mxu0 0
        %1964 = vmatprep.subr.bf16.mxu0 0
        %1965 = vmatpush1.bf16.msra.mxu0 0
        %1966 = vmatprep.subr.bf16.mxu0 0
        %1967 = vmatpush1.bf16.msra.mxu0 0
        %1968 = vmatprep.subr.bf16.mxu0 0
        %1969 = vmatpush1.bf16.msra.mxu0 0
        %1970 = vmatprep.subr.bf16.mxu0 0
        %1971 = vmatpush1.bf16.msra.mxu0 0
        %1972 = vmatprep.mubr.bf16.mxu0 0
        %1973 = vmatmul.mubr.bf16.gmra.mrb[0].mxu0 %v1905
        %v1974 = vpop.f32.mrb[0].mxu0
        %v1975 = vadd.f32 0.0, %v1974
        %v1976 = vpop.f32.mrb[0].mxu0
        %v1977 = vpop.f32.mrb[0].mxu0
        %v1978 = vadd.f32 0.0, %v1977
        %v1979 = vpop.f32.mrb[0].mxu0
        %1980 = vmatprep.mubr.bf16.mxu0 0
        %1981 = vmatmul.mubr.bf16.gmra.mrb[0].mxu0 %v1908
        %v1982 = vpop.f32.mrb[0].mxu0
        %v1983 = vadd.f32 0.0, %v1982
        %v1984 = vpop.f32.mrb[0].mxu0
        %v1985 = vpop.f32.mrb[0].mxu0
        %v1986 = vadd.f32 0.0, %v1985
        %v1987 = vpop.f32.mrb[0].mxu0
        %1988 = vmatprep.mubr.bf16.mxu0 0
        %1989 = vmatmul.mubr.bf16.gmra.mrb[0].mxu0 %v1911
        %v1990 = vpop.f32.mrb[0].mxu0
        %v1991 = vadd.f32 0.0, %v1990
        %v1992 = vpop.f32.mrb[0].mxu0
        %v1993 = vpop.f32.mrb[0].mxu0
        %v1994 = vadd.f32 0.0, %v1993
        %v1995 = vpop.f32.mrb[0].mxu0
        %1996 = vmatprep.mubr.bf16.mxu0 0
        %1997 = vmatmul.mubr.bf16.gmra.mrb[0].mxu0 %v1914
        %v1998 = vpop.f32.mrb[0].mxu0
        %v1999 = vadd.f32 0.0, %v1998
        %v2000 = vpop.f32.mrb[0].mxu0
        %v2001 = vpop.f32.mrb[0].mxu0
        %v2002 = vadd.f32 0.0, %v2001
        %v2003 = vpop.f32.mrb[0].mxu0
        %2004 = vmatprep.mubr.bf16.mxu0 0
        %2005 = vmatmul.mubr.bf16.gmra.mrb[0].mxu0 %v1917
        %v2006 = vpop.f32.mrb[0].mxu0
        %v2007 = vadd.f32 0.0, %v2006
        %v2008 = vpop.f32.mrb[0].mxu0
        %v2009 = vpop.f32.mrb[0].mxu0
        %v2010 = vadd.f32 0.0, %v2009
        %v2011 = vpop.f32.mrb[0].mxu0
        %2012 = vmatprep.mubr.bf16.mxu0 0
        %2013 = vmatmul.mubr.bf16.gmra.mrb[0].mxu0 %v1920
        %v2014 = vpop.f32.mrb[0].mxu0
        %v2015 = vadd.f32 0.0, %v2014
        %v2016 = vpop.f32.mrb[0].mxu0
        %v2017 = vpop.f32.mrb[0].mxu0
        %v2018 = vadd.f32 0.0, %v2017
        %v2019 = vpop.f32.mrb[0].mxu0
        %2020 = vmatprep.mubr.bf16.mxu0 0
        %2021 = vmatmul.mubr.bf16.gmra.mrb[0].mxu0 %v1923
        %v2022 = vpop.f32.mrb[0].mxu0
        %v2023 = vadd.f32 0.0, %v2022
        %v2024 = vpop.f32.mrb[0].mxu0
        %v2025 = vpop.f32.mrb[0].mxu0
        %v2026 = vadd.f32 0.0, %v2025
        %v2027 = vpop.f32.mrb[0].mxu0
        %2028 = vmatprep.mubr.bf16.mxu0 0
        %2029 = vmatmul.mubr.bf16.gmra.mrb[0].mxu0 %v1926
        %v2030 = vpop.f32.mrb[0].mxu0
        %v2031 = vadd.f32 0.0, %v2030
        %v2032 = vpop.f32.mrb[0].mxu0
        %v2033 = vpop.f32.mrb[0].mxu0
        %v2034 = vadd.f32 0.0, %v2033
        %v2035 = vpop.f32.mrb[0].mxu0
        %2036 = vmatprep.mubr.bf16.mxu0 0
        %2037 = vmatmul.mubr.bf16.gmra.mrb[0].mxu0 %v1929
        %v2038 = vpop.f32.mrb[0].mxu0
        %v2039 = vadd.f32 0.0, %v2038
        %v2040 = vpop.f32.mrb[0].mxu0
        %v2041 = vpop.f32.mrb[0].mxu0
        %v2042 = vadd.f32 0.0, %v2041
        %v2043 = vpop.f32.mrb[0].mxu0
        %2044 = vmatprep.mubr.bf16.mxu0 0
        %2045 = vmatmul.mubr.bf16.gmra.mrb[0].mxu0 %v1932
        %v2046 = vpop.f32.mrb[0].mxu0
        %v2047 = vadd.f32 0.0, %v2046
        %v2048 = vpop.f32.mrb[0].mxu0
        %v2049 = vpop.f32.mrb[0].mxu0
        %v2050 = vadd.f32 0.0, %v2049
        %v2051 = vpop.f32.mrb[0].mxu0
        %2052 = vmatprep.mubr.bf16.mxu0 0
        %2053 = vmatmul.mubr.bf16.gmra.mrb[0].mxu0 %v1935
        %v2054 = vpop.f32.mrb[0].mxu0
        %v2055 = vadd.f32 0.0, %v2054
        %v2056 = vpop.f32.mrb[0].mxu0
        %v2057 = vpop.f32.mrb[0].mxu0
        %v2058 = vadd.f32 0.0, %v2057
        %v2059 = vpop.f32.mrb[0].mxu0
        %2060 = vmatprep.mubr.bf16.mxu0 0
        %2061 = vmatmul.mubr.bf16.gmra.mrb[0].mxu0 %v1938
        %v2062 = vpop.f32.mrb[0].mxu0
        %v2063 = vadd.f32 0.0, %v2062
        %v2064 = vpop.f32.mrb[0].mxu0
        %v2065 = vpop.f32.mrb[0].mxu0
        %v2066 = vadd.f32 0.0, %v2065
        %v2067 = vpop.f32.mrb[0].mxu0
        %2068 = vdwg.mxu0
        %v2069 = vadd.f32 %v1759, %v1975
        %v2070 = vadd.f32 %v1760, %v1978
        %v2071 = vadd.f32 %v1761, %v1983
        %v2072 = vadd.f32 %v1762, %v1986
        %v2073 = vadd.f32 %v1763, %v1991
        %v2074 = vadd.f32 %v1764, %v1994
        %v2075 = vadd.f32 %v1765, %v1999
        %v2076 = vadd.f32 %v1766, %v2002
        %v2077 = vadd.f32 %v1767, %v2007
        %v2078 = vadd.f32 %v1768, %v2010
        %v2079 = vadd.f32 %v1769, %v2015
        %v2080 = vadd.f32 %v1770, %v2018
        %v2081 = vadd.f32 %v1771, %v2023
        %v2082 = vadd.f32 %v1772, %v2026
        %v2083 = vadd.f32 %v1773, %v2031
        %v2084 = vadd.f32 %v1774, %v2034
        %v2085 = vadd.f32 %v1775, %v2039
        %v2086 = vadd.f32 %v1776, %v2042
        %v2087 = vadd.f32 %v1777, %v2047
        %v2088 = vadd.f32 %v1778, %v2050
        %v2089 = vadd.f32 %v1779, %v2055
        %v2090 = vadd.f32 %v1780, %v2058
        %v2091 = vadd.f32 %v1781, %v2063
        %v2092 = vadd.f32 %v1782, %v2066
        %2093 = vst.msk [vmem:[#allocation3] sm:$0xff] %vm824, %v2069
        %2094 = vst.msk [vmem:[#allocation3 + $0x8] sm:$0xff] %vm824, %v2070
        %2095 = vst.msk [vmem:[#allocation3 + $0x10] sm:$0xff] %vm824, %v2071
        %2096 = vst.msk [vmem:[#allocation3 + $0x18] sm:$0xff] %vm824, %v2072
        %2097 = vst.msk [vmem:[#allocation3 + $0x20] sm:$0xff] %vm824, %v2073
        %2098 = vst.msk [vmem:[#allocation3 + $0x28] sm:$0xff] %vm824, %v2074
        %2099 = vst.msk [vmem:[#allocation3 + $0x30] sm:$0xff] %vm824, %v2075
        %2100 = vst.msk [vmem:[#allocation3 + $0x38] sm:$0xff] %vm824, %v2076
        %2101 = vst.msk [vmem:[#allocation3 + $0x40] sm:$0xff] %vm824, %v2077
        %2102 = vst.msk [vmem:[#allocation3 + $0x48] sm:$0xff] %vm824, %v2078
        %2103 = vst.msk [vmem:[#allocation3 + $0x50] sm:$0xff] %vm824, %v2079
        %2104 = vst.msk [vmem:[#allocation3 + $0x58] sm:$0xff] %vm824, %v2080
        %2105 = vst.msk [vmem:[#allocation3 + $0x60] sm:$0xff] %vm824, %v2081
        %2106 = vst.msk [vmem:[#allocation3 + $0x68] sm:$0xff] %vm824, %v2082
        %2107 = vst.msk [vmem:[#allocation3 + $0x70] sm:$0xff] %vm824, %v2083
        %2108 = vst.msk [vmem:[#allocation3 + $0x78] sm:$0xff] %vm824, %v2084
        %2109 = vst.msk [vmem:[#allocation3 + $0x80] sm:$0xff] %vm824, %v2085
        %2110 = vst.msk [vmem:[#allocation3 + $0x88] sm:$0xff] %vm824, %v2086
        %2111 = vst.msk [vmem:[#allocation3 + $0x90] sm:$0xff] %vm824, %v2087
        %2112 = vst.msk [vmem:[#allocation3 + $0x98] sm:$0xff] %vm824, %v2088
        %2113 = vst.msk [vmem:[#allocation3 + $0xa0] sm:$0xff] %vm824, %v2089
        %2114 = vst.msk [vmem:[#allocation3 + $0xa8] sm:$0xff] %vm824, %v2090
        %2115 = vst.msk [vmem:[#allocation3 + $0xb0] sm:$0xff] %vm824, %v2091
        %2116 = vst.msk [vmem:[#allocation3 + $0xb8] sm:$0xff] %vm824, %v2092
        %v2117 = vld [vmem:[#allocation3] sm:$0xff]
        %v2118 = vld [vmem:[#allocation3 + $0x8] sm:$0xff]
        %v2119 = vld [vmem:[#allocation3 + $0x10] sm:$0xff]
        %v2120 = vld [vmem:[#allocation3 + $0x18] sm:$0xff]
        %v2121 = vld [vmem:[#allocation3 + $0x20] sm:$0xff]
        %v2122 = vld [vmem:[#allocation3 + $0x28] sm:$0xff]
        %v2123 = vld [vmem:[#allocation3 + $0x30] sm:$0xff]
        %v2124 = vld [vmem:[#allocation3 + $0x38] sm:$0xff]
        %v2125 = vld [vmem:[#allocation3 + $0x40] sm:$0xff]
        %v2126 = vld [vmem:[#allocation3 + $0x48] sm:$0xff]
        %v2127 = vld [vmem:[#allocation3 + $0x50] sm:$0xff]
        %v2128 = vld [vmem:[#allocation3 + $0x58] sm:$0xff]
        %v2129 = vld [vmem:[#allocation3 + $0x60] sm:$0xff]
        %v2130 = vld [vmem:[#allocation3 + $0x68] sm:$0xff]
        %v2131 = vld [vmem:[#allocation3 + $0x70] sm:$0xff]
        %v2132 = vld [vmem:[#allocation3 + $0x78] sm:$0xff]
        %v2133 = vld [vmem:[#allocation3 + $0x80] sm:$0xff]
        %v2134 = vld [vmem:[#allocation3 + $0x88] sm:$0xff]
        %v2135 = vld [vmem:[#allocation3 + $0x90] sm:$0xff]
        %v2136 = vld [vmem:[#allocation3 + $0x98] sm:$0xff]
        %v2137 = vld [vmem:[#allocation3 + $0xa0] sm:$0xff]
        %v2138 = vld [vmem:[#allocation3 + $0xa8] sm:$0xff]
        %v2139 = vld [vmem:[#allocation3 + $0xb0] sm:$0xff]
        %v2140 = vld [vmem:[#allocation3 + $0xb8] sm:$0xff]
        %s2141 = scalar_lea.vmem [#allocation13], 128
        %v2142 = vld [vmem:[%s2141] sm:$0xf]
        %v2143 = vld [vmem:[%s2141 + $0x4] sm:$0xf]
        %v2144 = vld [vmem:[%s2141 + $0x8] sm:$0xf]
        %v2145 = vld [vmem:[%s2141 + $0xc] sm:$0xf]
        %v2146 = vld [vmem:[%s2141 + $0x10] sm:$0xf]
        %v2147 = vld [vmem:[%s2141 + $0x14] sm:$0xf]
        %v2148 = vld [vmem:[%s2141 + $0x18] sm:$0xf]
        %v2149 = vld [vmem:[%s2141 + $0x1c] sm:$0xf]
        %vm2150 = vsmask.f32 3328
        %v2151 = vrot.slane %v1803, 4
        %v2152 = vrot.slane %v1799, 5
        %v2153 = vor.u32 %v2151, %v2152
        %v2154 = vrot.slane %v1810, 4
        %v2155 = vrot.slane %v1806, 5
        %v2156 = vor.u32 %v2154, %v2155
        %v2157 = vsel %vm2150, %v2153, %v2156
        %v2158 = vrot.slane %v1817, 4
        %v2159 = vrot.slane %v1813, 5
        %v2160 = vor.u32 %v2158, %v2159
        %v2161 = vsel %vm2150, %v2156, %v2160
        %v2162 = vrot.slane %v1824, 4
        %v2163 = vrot.slane %v1820, 5
        %v2164 = vor.u32 %v2162, %v2163
        %v2165 = vsel %vm2150, %v2160, %v2164
        %v2166 = vrot.slane %v1831, 4
        %v2167 = vrot.slane %v1827, 5
        %v2168 = vor.u32 %v2166, %v2167
        %v2169 = vsel %vm2150, %v2164, %v2168
        %v2170 = vrot.slane %v1838, 4
        %v2171 = vrot.slane %v1834, 5
        %v2172 = vor.u32 %v2170, %v2171
        %v2173 = vsel %vm2150, %v2168, %v2172
        %v2174 = vrot.slane %v1845, 4
        %v2175 = vrot.slane %v1841, 5
        %v2176 = vor.u32 %v2174, %v2175
        %v2177 = vsel %vm2150, %v2172, %v2176
        %v2178 = vrot.slane %v1852, 4
        %v2179 = vrot.slane %v1848, 5
        %v2180 = vor.u32 %v2178, %v2179
        %v2181 = vsel %vm2150, %v2176, %v2180
        %v2182 = vrot.slane %v1859, 4
        %v2183 = vrot.slane %v1855, 5
        %v2184 = vor.u32 %v2182, %v2183
        %v2185 = vsel %vm2150, %v2180, %v2184
        %v2186 = vrot.slane %v1866, 4
        %v2187 = vrot.slane %v1862, 5
        %v2188 = vor.u32 %v2186, %v2187
        %v2189 = vsel %vm2150, %v2184, %v2188
        %v2190 = vrot.slane %v1873, 4
        %v2191 = vrot.slane %v1869, 5
        %v2192 = vor.u32 %v2190, %v2191
        %v2193 = vsel %vm2150, %v2188, %v2192
        %v2194 = vshrl.u32 %v934, 16
        %v2196 = vrot.slane %v2194, 4
        %v2197 = vrot.slane %v1876, 5
        %v2198 = vor.u32 %v2196, %v2197
        %v2199 = vsel %vm2150, %v2192, %v2198
        %v2200 = vshrl.u32 %v935, 16
        %v2202 = vrot.slane %v2200, 4
        %v2203 = vshll.u32 %v935, 16
        %v2205 = vrot.slane %v2203, 5
        %v2206 = vor.u32 %v2202, %v2205
        %v2207 = vsel %vm2150, %v2198, %v2206
        %v2216 = vunpack.c.l.b16 %v2142
        %v2217 = vunpack.c.l.b16 %v2143
        %v2218 = vunpack.c.l.b16 %v2144
        %v2219 = vunpack.c.l.b16 %v2145
        %v2220 = vunpack.c.l.b16 %v2146
        %v2221 = vunpack.c.l.b16 %v2147
        %v2222 = vunpack.c.l.b16 %v2148
        %v2223 = vunpack.c.l.b16 %v2149
        %v2224 = vpack.c.b16 %v2217, %v2216
        %v2225 = vpack.c.b16 %v2219, %v2218
        %v2226 = vpack.c.b16 %v2221, %v2220
        %v2227 = vpack.c.b16 %v2223, %v2222
        %v2233 = vsel %vm824, %v2157, 0
        %v2236 = vsel %vm824, %v2161, 0
        %v2239 = vsel %vm824, %v2165, 0
        %v2242 = vsel %vm824, %v2169, 0
        %v2245 = vsel %vm824, %v2173, 0
        %v2248 = vsel %vm824, %v2177, 0
        %v2251 = vsel %vm824, %v2181, 0
        %v2254 = vsel %vm824, %v2185, 0
        %v2257 = vsel %vm824, %v2189, 0
        %v2260 = vsel %vm824, %v2193, 0
        %v2263 = vsel %vm824, %v2199, 0
        %v2266 = vsel %vm824, %v2207, 0
        %2268 = vmatprep.subr.bf16.mxu0 0
        %2269 = vmatpush1.bf16.msra.mxu0 %v2224
        %2270 = vmatprep.subr.bf16.mxu0 0
        %2271 = vmatpush1.bf16.msra.mxu0 %v2225
        %2272 = vmatprep.subr.bf16.mxu0 0
        %2273 = vmatpush1.bf16.msra.mxu0 %v2226
        %2274 = vmatprep.subr.bf16.mxu0 0
        %2275 = vmatpush1.bf16.msra.mxu0 %v2227
        %2276 = vmatprep.subr.bf16.mxu0 0
        %2277 = vmatpush1.bf16.msra.mxu0 0
        %2278 = vmatprep.subr.bf16.mxu0 0
        %2279 = vmatpush1.bf16.msra.mxu0 0
        %2280 = vmatprep.subr.bf16.mxu0 0
        %2281 = vmatpush1.bf16.msra.mxu0 0
        %2282 = vmatprep.subr.bf16.mxu0 0
        %2283 = vmatpush1.bf16.msra.mxu0 0
        %2284 = vmatprep.subr.bf16.mxu0 0
        %2285 = vmatpush1.bf16.msra.mxu0 0
        %2286 = vmatprep.subr.bf16.mxu0 0
        %2287 = vmatpush1.bf16.msra.mxu0 0
        %2288 = vmatprep.subr.bf16.mxu0 0
        %2289 = vmatpush1.bf16.msra.mxu0 0
        %2290 = vmatprep.subr.bf16.mxu0 0
        %2291 = vmatpush1.bf16.msra.mxu0 0
        %2292 = vmatprep.subr.bf16.mxu0 0
        %2293 = vmatpush1.bf16.msra.mxu0 0
        %2294 = vmatprep.subr.bf16.mxu0 0
        %2295 = vmatpush1.bf16.msra.mxu0 0
        %2296 = vmatprep.subr.bf16.mxu0 0
        %2297 = vmatpush1.bf16.msra.mxu0 0
        %2298 = vmatprep.subr.bf16.mxu0 0
        %2299 = vmatpush1.bf16.msra.mxu0 0
        %2300 = vmatprep.mubr.bf16.mxu0 0
        %2301 = vmatmul.mubr.bf16.gmra.mrb[0].mxu0 %v2233
        %v2302 = vpop.f32.mrb[0].mxu0
        %v2303 = vadd.f32 0.0, %v2302
        %v2304 = vpop.f32.mrb[0].mxu0
        %v2305 = vpop.f32.mrb[0].mxu0
        %v2306 = vadd.f32 0.0, %v2305
        %v2307 = vpop.f32.mrb[0].mxu0
        %2308 = vmatprep.mubr.bf16.mxu0 0
        %2309 = vmatmul.mubr.bf16.gmra.mrb[0].mxu0 %v2236
        %v2310 = vpop.f32.mrb[0].mxu0
        %v2311 = vadd.f32 0.0, %v2310
        %v2312 = vpop.f32.mrb[0].mxu0
        %v2313 = vpop.f32.mrb[0].mxu0
        %v2314 = vadd.f32 0.0, %v2313
        %v2315 = vpop.f32.mrb[0].mxu0
        %2316 = vmatprep.mubr.bf16.mxu0 0
        %2317 = vmatmul.mubr.bf16.gmra.mrb[0].mxu0 %v2239
        %v2318 = vpop.f32.mrb[0].mxu0
        %v2319 = vadd.f32 0.0, %v2318
        %v2320 = vpop.f32.mrb[0].mxu0
        %v2321 = vpop.f32.mrb[0].mxu0
        %v2322 = vadd.f32 0.0, %v2321
        %v2323 = vpop.f32.mrb[0].mxu0
        %2324 = vmatprep.mubr.bf16.mxu0 0
        %2325 = vmatmul.mubr.bf16.gmra.mrb[0].mxu0 %v2242
        %v2326 = vpop.f32.mrb[0].mxu0
        %v2327 = vadd.f32 0.0, %v2326
        %v2328 = vpop.f32.mrb[0].mxu0
        %v2329 = vpop.f32.mrb[0].mxu0
        %v2330 = vadd.f32 0.0, %v2329
        %v2331 = vpop.f32.mrb[0].mxu0
        %2332 = vmatprep.mubr.bf16.mxu0 0
        %2333 = vmatmul.mubr.bf16.gmra.mrb[0].mxu0 %v2245
        %v2334 = vpop.f32.mrb[0].mxu0
        %v2335 = vadd.f32 0.0, %v2334
        %v2336 = vpop.f32.mrb[0].mxu0
        %v2337 = vpop.f32.mrb[0].mxu0
        %v2338 = vadd.f32 0.0, %v2337
        %v2339 = vpop.f32.mrb[0].mxu0
        %2340 = vmatprep.mubr.bf16.mxu0 0
        %2341 = vmatmul.mubr.bf16.gmra.mrb[0].mxu0 %v2248
        %v2342 = vpop.f32.mrb[0].mxu0
        %v2343 = vadd.f32 0.0, %v2342
        %v2344 = vpop.f32.mrb[0].mxu0
        %v2345 = vpop.f32.mrb[0].mxu0
        %v2346 = vadd.f32 0.0, %v2345
        %v2347 = vpop.f32.mrb[0].mxu0
        %2348 = vmatprep.mubr.bf16.mxu0 0
        %2349 = vmatmul.mubr.bf16.gmra.mrb[0].mxu0 %v2251
        %v2350 = vpop.f32.mrb[0].mxu0
        %v2351 = vadd.f32 0.0, %v2350
        %v2352 = vpop.f32.mrb[0].mxu0
        %v2353 = vpop.f32.mrb[0].mxu0
        %v2354 = vadd.f32 0.0, %v2353
        %v2355 = vpop.f32.mrb[0].mxu0
        %2356 = vmatprep.mubr.bf16.mxu0 0
        %2357 = vmatmul.mubr.bf16.gmra.mrb[0].mxu0 %v2254
        %v2358 = vpop.f32.mrb[0].mxu0
        %v2359 = vadd.f32 0.0, %v2358
        %v2360 = vpop.f32.mrb[0].mxu0
        %v2361 = vpop.f32.mrb[0].mxu0
        %v2362 = vadd.f32 0.0, %v2361
        %v2363 = vpop.f32.mrb[0].mxu0
        %2364 = vmatprep.mubr.bf16.mxu0 0
        %2365 = vmatmul.mubr.bf16.gmra.mrb[0].mxu0 %v2257
        %v2366 = vpop.f32.mrb[0].mxu0
        %v2367 = vadd.f32 0.0, %v2366
        %v2368 = vpop.f32.mrb[0].mxu0
        %v2369 = vpop.f32.mrb[0].mxu0
        %v2370 = vadd.f32 0.0, %v2369
        %v2371 = vpop.f32.mrb[0].mxu0
        %2372 = vmatprep.mubr.bf16.mxu0 0
        %2373 = vmatmul.mubr.bf16.gmra.mrb[0].mxu0 %v2260
        %v2374 = vpop.f32.mrb[0].mxu0
        %v2375 = vadd.f32 0.0, %v2374
        %v2376 = vpop.f32.mrb[0].mxu0
        %v2377 = vpop.f32.mrb[0].mxu0
        %v2378 = vadd.f32 0.0, %v2377
        %v2379 = vpop.f32.mrb[0].mxu0
        %2380 = vmatprep.mubr.bf16.mxu0 0
        %2381 = vmatmul.mubr.bf16.gmra.mrb[0].mxu0 %v2263
        %v2382 = vpop.f32.mrb[0].mxu0
        %v2383 = vadd.f32 0.0, %v2382
        %v2384 = vpop.f32.mrb[0].mxu0
        %v2385 = vpop.f32.mrb[0].mxu0
        %v2386 = vadd.f32 0.0, %v2385
        %v2387 = vpop.f32.mrb[0].mxu0
        %2388 = vmatprep.mubr.bf16.mxu0 0
        %2389 = vmatmul.mubr.bf16.gmra.mrb[0].mxu0 %v2266
        %v2390 = vpop.f32.mrb[0].mxu0
        %v2391 = vadd.f32 0.0, %v2390
        %v2392 = vpop.f32.mrb[0].mxu0
        %v2393 = vpop.f32.mrb[0].mxu0
        %v2394 = vadd.f32 0.0, %v2393
        %v2395 = vpop.f32.mrb[0].mxu0
        %2396 = vdwg.mxu0
        %v2397 = vadd.f32 %v2117, %v2303
        %v2398 = vadd.f32 %v2118, %v2306
        %v2399 = vadd.f32 %v2119, %v2311
        %v2400 = vadd.f32 %v2120, %v2314
        %v2401 = vadd.f32 %v2121, %v2319
        %v2402 = vadd.f32 %v2122, %v2322
        %v2403 = vadd.f32 %v2123, %v2327
        %v2404 = vadd.f32 %v2124, %v2330
        %v2405 = vadd.f32 %v2125, %v2335
        %v2406 = vadd.f32 %v2126, %v2338
        %v2407 = vadd.f32 %v2127, %v2343
        %v2408 = vadd.f32 %v2128, %v2346
        %v2409 = vadd.f32 %v2129, %v2351
        %v2410 = vadd.f32 %v2130, %v2354
        %v2411 = vadd.f32 %v2131, %v2359
        %v2412 = vadd.f32 %v2132, %v2362
        %v2413 = vadd.f32 %v2133, %v2367
        %v2414 = vadd.f32 %v2134, %v2370
        %v2415 = vadd.f32 %v2135, %v2375
        %v2416 = vadd.f32 %v2136, %v2378
        %v2417 = vadd.f32 %v2137, %v2383
        %v2418 = vadd.f32 %v2138, %v2386
        %v2419 = vadd.f32 %v2139, %v2391
        %v2420 = vadd.f32 %v2140, %v2394
        %2421 = vst.msk [vmem:[#allocation3] sm:$0xff] %vm824, %v2397
        %2422 = vst.msk [vmem:[#allocation3 + $0x8] sm:$0xff] %vm824, %v2398
        %2423 = vst.msk [vmem:[#allocation3 + $0x10] sm:$0xff] %vm824, %v2399
        %2424 = vst.msk [vmem:[#allocation3 + $0x18] sm:$0xff] %vm824, %v2400
        %2425 = vst.msk [vmem:[#allocation3 + $0x20] sm:$0xff] %vm824, %v2401
        %2426 = vst.msk [vmem:[#allocation3 + $0x28] sm:$0xff] %vm824, %v2402
        %2427 = vst.msk [vmem:[#allocation3 + $0x30] sm:$0xff] %vm824, %v2403
        %2428 = vst.msk [vmem:[#allocation3 + $0x38] sm:$0xff] %vm824, %v2404
        %2429 = vst.msk [vmem:[#allocation3 + $0x40] sm:$0xff] %vm824, %v2405
        %2430 = vst.msk [vmem:[#allocation3 + $0x48] sm:$0xff] %vm824, %v2406
        %2431 = vst.msk [vmem:[#allocation3 + $0x50] sm:$0xff] %vm824, %v2407
        %2432 = vst.msk [vmem:[#allocation3 + $0x58] sm:$0xff] %vm824, %v2408
        %2433 = vst.msk [vmem:[#allocation3 + $0x60] sm:$0xff] %vm824, %v2409
        %2434 = vst.msk [vmem:[#allocation3 + $0x68] sm:$0xff] %vm824, %v2410
        %2435 = vst.msk [vmem:[#allocation3 + $0x70] sm:$0xff] %vm824, %v2411
        %2436 = vst.msk [vmem:[#allocation3 + $0x78] sm:$0xff] %vm824, %v2412
        %2437 = vst.msk [vmem:[#allocation3 + $0x80] sm:$0xff] %vm824, %v2413
        %2438 = vst.msk [vmem:[#allocation3 + $0x88] sm:$0xff] %vm824, %v2414
        %2439 = vst.msk [vmem:[#allocation3 + $0x90] sm:$0xff] %vm824, %v2415
        %2440 = vst.msk [vmem:[#allocation3 + $0x98] sm:$0xff] %vm824, %v2416
        %2441 = vst.msk [vmem:[#allocation3 + $0xa0] sm:$0xff] %vm824, %v2417
        %2442 = vst.msk [vmem:[#allocation3 + $0xa8] sm:$0xff] %vm824, %v2418
        %2443 = vst.msk [vmem:[#allocation3 + $0xb0] sm:$0xff] %vm824, %v2419
        %2444 = vst.msk [vmem:[#allocation3 + $0xb8] sm:$0xff] %vm824, %v2420
        %v2445 = vld [vmem:[#allocation3] sm:$0xff]
        %v2446 = vld [vmem:[#allocation3 + $0x8] sm:$0xff]
        %v2447 = vld [vmem:[#allocation3 + $0x10] sm:$0xff]
        %v2448 = vld [vmem:[#allocation3 + $0x18] sm:$0xff]
        %v2449 = vld [vmem:[#allocation3 + $0x20] sm:$0xff]
        %v2450 = vld [vmem:[#allocation3 + $0x28] sm:$0xff]
        %v2451 = vld [vmem:[#allocation3 + $0x30] sm:$0xff]
        %v2452 = vld [vmem:[#allocation3 + $0x38] sm:$0xff]
        %v2453 = vld [vmem:[#allocation3 + $0x40] sm:$0xff]
        %v2454 = vld [vmem:[#allocation3 + $0x48] sm:$0xff]
        %v2455 = vld [vmem:[#allocation3 + $0x50] sm:$0xff]
        %v2456 = vld [vmem:[#allocation3 + $0x58] sm:$0xff]
        %v2457 = vld [vmem:[#allocation3 + $0x60] sm:$0xff]
        %v2458 = vld [vmem:[#allocation3 + $0x68] sm:$0xff]
        %v2459 = vld [vmem:[#allocation3 + $0x70] sm:$0xff]
        %v2460 = vld [vmem:[#allocation3 + $0x78] sm:$0xff]
        %v2461 = vld [vmem:[#allocation3 + $0x80] sm:$0xff]
        %v2462 = vld [vmem:[#allocation3 + $0x88] sm:$0xff]
        %v2463 = vld [vmem:[#allocation3 + $0x90] sm:$0xff]
        %v2464 = vld [vmem:[#allocation3 + $0x98] sm:$0xff]
        %v2465 = vld [vmem:[#allocation3 + $0xa0] sm:$0xff]
        %v2466 = vld [vmem:[#allocation3 + $0xa8] sm:$0xff]
        %v2467 = vld [vmem:[#allocation3 + $0xb0] sm:$0xff]
        %v2468 = vld [vmem:[#allocation3 + $0xb8] sm:$0xff]
        %s2469 = scalar_lea.vmem [#allocation13], 224
        %v2470 = vld [vmem:[%s2469] sm:$0xf]
        %v2471 = vld [vmem:[%s2469 + $0x4] sm:$0xf]
        %v2472 = vld [vmem:[%s2469 + $0x8] sm:$0xf]
        %v2473 = vld [vmem:[%s2469 + $0xc] sm:$0xf]
        %v2474 = vld [vmem:[%s2469 + $0x10] sm:$0xf]
        %v2475 = vld [vmem:[%s2469 + $0x14] sm:$0xf]
        %v2476 = vld [vmem:[%s2469 + $0x18] sm:$0xf]
        %v2477 = vld [vmem:[%s2469 + $0x1c] sm:$0xf]
        %v2478 = vor.u32 %v2194, %v1878
        %v2479 = vrot.slane %v2203, 1
        %v2480 = vsel %vm1792, %v2478, %v2479
        %v2481 = vor.u32 %v2200, %v2479
        %v2482 = vshll.u32 %v936, 16
        %v2484 = vrot.slane %v2482, 1
        %v2485 = vsel %vm1792, %v2481, %v2484
        %v2486 = vshrl.u32 %v936, 16
        %v2488 = vor.u32 %v2486, %v2484
        %v2490 = vshll.u32 %v1758, 16
        %v2492 = vrot.slane %v2490, 1
        %v2493 = vsel %vm1792, %v2488, %v2492
        %v2502 = vunpack.c.l.b16 %v2470
        %v2503 = vunpack.c.l.b16 %v2471
        %v2504 = vunpack.c.l.b16 %v2472
        %v2505 = vunpack.c.l.b16 %v2473
        %v2506 = vunpack.c.l.b16 %v2474
        %v2507 = vunpack.c.l.b16 %v2475
        %v2508 = vunpack.c.l.b16 %v2476
        %v2509 = vunpack.c.l.b16 %v2477
        %v2510 = vpack.c.b16 %v2503, %v2502
        %v2511 = vpack.c.b16 %v2505, %v2504
        %v2512 = vpack.c.b16 %v2507, %v2506
        %v2513 = vpack.c.b16 %v2509, %v2508
        %v2519 = vsel %vm824, %v2480, 0
        %v2522 = vsel %vm824, %v2485, 0
        %v2525 = vsel %vm824, %v2493, 0
        %2527 = vmatprep.subr.bf16.mxu0 0
        %2528 = vmatpush1.bf16.msra.mxu0 %v2510
        %2529 = vmatprep.subr.bf16.mxu0 0
        %2530 = vmatpush1.bf16.msra.mxu0 %v2511
        %2531 = vmatprep.subr.bf16.mxu0 0
        %2532 = vmatpush1.bf16.msra.mxu0 %v2512
        %2533 = vmatprep.subr.bf16.mxu0 0
        %2534 = vmatpush1.bf16.msra.mxu0 %v2513
        %2535 = vmatprep.subr.bf16.mxu0 0
        %2536 = vmatpush1.bf16.msra.mxu0 0
        %2537 = vmatprep.subr.bf16.mxu0 0
        %2538 = vmatpush1.bf16.msra.mxu0 0
        %2539 = vmatprep.subr.bf16.mxu0 0
        %2540 = vmatpush1.bf16.msra.mxu0 0
        %2541 = vmatprep.subr.bf16.mxu0 0
        %2542 = vmatpush1.bf16.msra.mxu0 0
        %2543 = vmatprep.subr.bf16.mxu0 0
        %2544 = vmatpush1.bf16.msra.mxu0 0
        %2545 = vmatprep.subr.bf16.mxu0 0
        %2546 = vmatpush1.bf16.msra.mxu0 0
        %2547 = vmatprep.subr.bf16.mxu0 0
        %2548 = vmatpush1.bf16.msra.mxu0 0
        %2549 = vmatprep.subr.bf16.mxu0 0
        %2550 = vmatpush1.bf16.msra.mxu0 0
        %2551 = vmatprep.subr.bf16.mxu0 0
        %2552 = vmatpush1.bf16.msra.mxu0 0
        %2553 = vmatprep.subr.bf16.mxu0 0
        %2554 = vmatpush1.bf16.msra.mxu0 0
        %2555 = vmatprep.subr.bf16.mxu0 0
        %2556 = vmatpush1.bf16.msra.mxu0 0
        %2557 = vmatprep.subr.bf16.mxu0 0
        %2558 = vmatpush1.bf16.msra.mxu0 0
        %2559 = vmatprep.mubr.bf16.mxu0 0
        %2560 = vmatmul.mubr.bf16.gmra.mrb[0].mxu0 %v1914
        %v2561 = vpop.f32.mrb[0].mxu0
        %v2562 = vadd.f32 0.0, %v2561
        %v2563 = vpop.f32.mrb[0].mxu0
        %v2564 = vpop.f32.mrb[0].mxu0
        %v2565 = vadd.f32 0.0, %v2564
        %v2566 = vpop.f32.mrb[0].mxu0
        %2567 = vmatprep.mubr.bf16.mxu0 0
        %2568 = vmatmul.mubr.bf16.gmra.mrb[0].mxu0 %v1917
        %v2569 = vpop.f32.mrb[0].mxu0
        %v2570 = vadd.f32 0.0, %v2569
        %v2571 = vpop.f32.mrb[0].mxu0
        %v2572 = vpop.f32.mrb[0].mxu0
        %v2573 = vadd.f32 0.0, %v2572
        %v2574 = vpop.f32.mrb[0].mxu0
        %2575 = vmatprep.mubr.bf16.mxu0 0
        %2576 = vmatmul.mubr.bf16.gmra.mrb[0].mxu0 %v1920
        %v2577 = vpop.f32.mrb[0].mxu0
        %v2578 = vadd.f32 0.0, %v2577
        %v2579 = vpop.f32.mrb[0].mxu0
        %v2580 = vpop.f32.mrb[0].mxu0
        %v2581 = vadd.f32 0.0, %v2580
        %v2582 = vpop.f32.mrb[0].mxu0
        %2583 = vmatprep.mubr.bf16.mxu0 0
        %2584 = vmatmul.mubr.bf16.gmra.mrb[0].mxu0 %v1923
        %v2585 = vpop.f32.mrb[0].mxu0
        %v2586 = vadd.f32 0.0, %v2585
        %v2587 = vpop.f32.mrb[0].mxu0
        %v2588 = vpop.f32.mrb[0].mxu0
        %v2589 = vadd.f32 0.0, %v2588
        %v2590 = vpop.f32.mrb[0].mxu0
        %2591 = vmatprep.mubr.bf16.mxu0 0
        %2592 = vmatmul.mubr.bf16.gmra.mrb[0].mxu0 %v1926
        %v2593 = vpop.f32.mrb[0].mxu0
        %v2594 = vadd.f32 0.0, %v2593
        %v2595 = vpop.f32.mrb[0].mxu0
        %v2596 = vpop.f32.mrb[0].mxu0
        %v2597 = vadd.f32 0.0, %v2596
        %v2598 = vpop.f32.mrb[0].mxu0
        %2599 = vmatprep.mubr.bf16.mxu0 0
        %2600 = vmatmul.mubr.bf16.gmra.mrb[0].mxu0 %v1929
        %v2601 = vpop.f32.mrb[0].mxu0
        %v2602 = vadd.f32 0.0, %v2601
        %v2603 = vpop.f32.mrb[0].mxu0
        %v2604 = vpop.f32.mrb[0].mxu0
        %v2605 = vadd.f32 0.0, %v2604
        %v2606 = vpop.f32.mrb[0].mxu0
        %2607 = vmatprep.mubr.bf16.mxu0 0
        %2608 = vmatmul.mubr.bf16.gmra.mrb[0].mxu0 %v1932
        %v2609 = vpop.f32.mrb[0].mxu0
        %v2610 = vadd.f32 0.0, %v2609
        %v2611 = vpop.f32.mrb[0].mxu0
        %v2612 = vpop.f32.mrb[0].mxu0
        %v2613 = vadd.f32 0.0, %v2612
        %v2614 = vpop.f32.mrb[0].mxu0
        %2615 = vmatprep.mubr.bf16.mxu0 0
        %2616 = vmatmul.mubr.bf16.gmra.mrb[0].mxu0 %v1935
        %v2617 = vpop.f32.mrb[0].mxu0
        %v2618 = vadd.f32 0.0, %v2617
        %v2619 = vpop.f32.mrb[0].mxu0
        %v2620 = vpop.f32.mrb[0].mxu0
        %v2621 = vadd.f32 0.0, %v2620
        %v2622 = vpop.f32.mrb[0].mxu0
        %2623 = vmatprep.mubr.bf16.mxu0 0
        %2624 = vmatmul.mubr.bf16.gmra.mrb[0].mxu0 %v1938
        %v2625 = vpop.f32.mrb[0].mxu0
        %v2626 = vadd.f32 0.0, %v2625
        %v2627 = vpop.f32.mrb[0].mxu0
        %v2628 = vpop.f32.mrb[0].mxu0
        %v2629 = vadd.f32 0.0, %v2628
        %v2630 = vpop.f32.mrb[0].mxu0
        %2631 = vmatprep.mubr.bf16.mxu0 0
        %2632 = vmatmul.mubr.bf16.gmra.mrb[0].mxu0 %v2519
        %v2633 = vpop.f32.mrb[0].mxu0
        %v2634 = vadd.f32 0.0, %v2633
        %v2635 = vpop.f32.mrb[0].mxu0
        %v2636 = vpop.f32.mrb[0].mxu0
        %v2637 = vadd.f32 0.0, %v2636
        %v2638 = vpop.f32.mrb[0].mxu0
        %2639 = vmatprep.mubr.bf16.mxu0 0
        %2640 = vmatmul.mubr.bf16.gmra.mrb[0].mxu0 %v2522
        %v2641 = vpop.f32.mrb[0].mxu0
        %v2642 = vadd.f32 0.0, %v2641
        %v2643 = vpop.f32.mrb[0].mxu0
        %v2644 = vpop.f32.mrb[0].mxu0
        %v2645 = vadd.f32 0.0, %v2644
        %v2646 = vpop.f32.mrb[0].mxu0
        %2647 = vmatprep.mubr.bf16.mxu0 0
        %2648 = vmatmul.mubr.bf16.gmra.mrb[0].mxu0 %v2525
        %v2649 = vpop.f32.mrb[0].mxu0
        %v2650 = vadd.f32 0.0, %v2649
        %v2651 = vpop.f32.mrb[0].mxu0
        %v2652 = vpop.f32.mrb[0].mxu0
        %v2653 = vadd.f32 0.0, %v2652
        %v2654 = vpop.f32.mrb[0].mxu0
        %2655 = vdwg.mxu0
        %v2656 = vadd.f32 %v2445, %v2562
        %v2657 = vadd.f32 %v2446, %v2565
        %v2658 = vadd.f32 %v2447, %v2570
        %v2659 = vadd.f32 %v2448, %v2573
        %v2660 = vadd.f32 %v2449, %v2578
        %v2661 = vadd.f32 %v2450, %v2581
        %v2662 = vadd.f32 %v2451, %v2586
        %v2663 = vadd.f32 %v2452, %v2589
        %v2664 = vadd.f32 %v2453, %v2594
        %v2665 = vadd.f32 %v2454, %v2597
        %v2666 = vadd.f32 %v2455, %v2602
        %v2667 = vadd.f32 %v2456, %v2605
        %v2668 = vadd.f32 %v2457, %v2610
        %v2669 = vadd.f32 %v2458, %v2613
        %v2670 = vadd.f32 %v2459, %v2618
        %v2671 = vadd.f32 %v2460, %v2621
        %v2672 = vadd.f32 %v2461, %v2626
        %v2673 = vadd.f32 %v2462, %v2629
        %v2674 = vadd.f32 %v2463, %v2634
        %v2675 = vadd.f32 %v2464, %v2637
        %v2676 = vadd.f32 %v2465, %v2642
        %v2677 = vadd.f32 %v2466, %v2645
        %v2678 = vadd.f32 %v2467, %v2650
        %v2679 = vadd.f32 %v2468, %v2653
        %2680 = vst.msk [vmem:[#allocation3] sm:$0xff] %vm824, %v2656
        %2681 = vst.msk [vmem:[#allocation3 + $0x8] sm:$0xff] %vm824, %v2657
        %2682 = vst.msk [vmem:[#allocation3 + $0x10] sm:$0xff] %vm824, %v2658
        %2683 = vst.msk [vmem:[#allocation3 + $0x18] sm:$0xff] %vm824, %v2659
        %2684 = vst.msk [vmem:[#allocation3 + $0x20] sm:$0xff] %vm824, %v2660
        %2685 = vst.msk [vmem:[#allocation3 + $0x28] sm:$0xff] %vm824, %v2661
        %2686 = vst.msk [vmem:[#allocation3 + $0x30] sm:$0xff] %vm824, %v2662
        %2687 = vst.msk [vmem:[#allocation3 + $0x38] sm:$0xff] %vm824, %v2663
        %2688 = vst.msk [vmem:[#allocation3 + $0x40] sm:$0xff] %vm824, %v2664
        %2689 = vst.msk [vmem:[#allocation3 + $0x48] sm:$0xff] %vm824, %v2665
        %2690 = vst.msk [vmem:[#allocation3 + $0x50] sm:$0xff] %vm824, %v2666
        %2691 = vst.msk [vmem:[#allocation3 + $0x58] sm:$0xff] %vm824, %v2667
        %2692 = vst.msk [vmem:[#allocation3 + $0x60] sm:$0xff] %vm824, %v2668
        %2693 = vst.msk [vmem:[#allocation3 + $0x68] sm:$0xff] %vm824, %v2669
        %2694 = vst.msk [vmem:[#allocation3 + $0x70] sm:$0xff] %vm824, %v2670
        %2695 = vst.msk [vmem:[#allocation3 + $0x78] sm:$0xff] %vm824, %v2671
        %2696 = vst.msk [vmem:[#allocation3 + $0x80] sm:$0xff] %vm824, %v2672
        %2697 = vst.msk [vmem:[#allocation3 + $0x88] sm:$0xff] %vm824, %v2673
        %2698 = vst.msk [vmem:[#allocation3 + $0x90] sm:$0xff] %vm824, %v2674
        %2699 = vst.msk [vmem:[#allocation3 + $0x98] sm:$0xff] %vm824, %v2675
        %2700 = vst.msk [vmem:[#allocation3 + $0xa0] sm:$0xff] %vm824, %v2676
        %2701 = vst.msk [vmem:[#allocation3 + $0xa8] sm:$0xff] %vm824, %v2677
        %2702 = vst.msk [vmem:[#allocation3 + $0xb0] sm:$0xff] %vm824, %v2678
        %2703 = vst.msk [vmem:[#allocation3 + $0xb8] sm:$0xff] %vm824, %v2679
        %v2704 = vld [vmem:[#allocation3] sm:$0xff]
        %v2705 = vld [vmem:[#allocation3 + $0x8] sm:$0xff]
        %v2706 = vld [vmem:[#allocation3 + $0x10] sm:$0xff]
        %v2707 = vld [vmem:[#allocation3 + $0x18] sm:$0xff]
        %v2708 = vld [vmem:[#allocation3 + $0x20] sm:$0xff]
        %v2709 = vld [vmem:[#allocation3 + $0x28] sm:$0xff]
        %v2710 = vld [vmem:[#allocation3 + $0x30] sm:$0xff]
        %v2711 = vld [vmem:[#allocation3 + $0x38] sm:$0xff]
        %v2712 = vld [vmem:[#allocation3 + $0x40] sm:$0xff]
        %v2713 = vld [vmem:[#allocation3 + $0x48] sm:$0xff]
        %v2714 = vld [vmem:[#allocation3 + $0x50] sm:$0xff]
        %v2715 = vld [vmem:[#allocation3 + $0x58] sm:$0xff]
        %v2716 = vld [vmem:[#allocation3 + $0x60] sm:$0xff]
        %v2717 = vld [vmem:[#allocation3 + $0x68] sm:$0xff]
        %v2718 = vld [vmem:[#allocation3 + $0x70] sm:$0xff]
        %v2719 = vld [vmem:[#allocation3 + $0x78] sm:$0xff]
        %v2720 = vld [vmem:[#allocation3 + $0x80] sm:$0xff]
        %v2721 = vld [vmem:[#allocation3 + $0x88] sm:$0xff]
        %v2722 = vld [vmem:[#allocation3 + $0x90] sm:$0xff]
        %v2723 = vld [vmem:[#allocation3 + $0x98] sm:$0xff]
        %v2724 = vld [vmem:[#allocation3 + $0xa0] sm:$0xff]
        %v2725 = vld [vmem:[#allocation3 + $0xa8] sm:$0xff]
        %v2726 = vld [vmem:[#allocation3 + $0xb0] sm:$0xff]
        %v2727 = vld [vmem:[#allocation3 + $0xb8] sm:$0xff]
        %s2728 = scalar_lea.vmem [#allocation13], 64
        %v2729 = vld [vmem:[%s2728] sm:$0xf]
        %v2730 = vld [vmem:[%s2728 + $0x4] sm:$0xf]
        %v2731 = vld [vmem:[%s2728 + $0x8] sm:$0xf]
        %v2732 = vld [vmem:[%s2728 + $0xc] sm:$0xf]
        %v2733 = vld [vmem:[%s2728 + $0x10] sm:$0xf]
        %v2734 = vld [vmem:[%s2728 + $0x14] sm:$0xf]
        %v2735 = vld [vmem:[%s2728 + $0x18] sm:$0xf]
        %v2736 = vld [vmem:[%s2728 + $0x1c] sm:$0xf]
        %vm2738 = vcmask 1046528
        %v2739 = vrot.slane %v922, 1
        %v2740 = vrot.slane %v923, 1
        %v2741 = vsel %vm2738, %v2739, %v2740
        %v2742 = vrot.slane %v924, 1
        %v2743 = vsel %vm2738, %v2740, %v2742
        %v2744 = vrot.slane %v925, 1
        %v2745 = vsel %vm2738, %v2742, %v2744
        %v2746 = vrot.slane %v926, 1
        %v2747 = vsel %vm2738, %v2744, %v2746
        %v2748 = vrot.slane %v927, 1
        %v2749 = vsel %vm2738, %v2746, %v2748
        %v2750 = vrot.slane %v928, 1
        %v2751 = vsel %vm2738, %v2748, %v2750
        %v2752 = vrot.slane %v929, 1
        %v2753 = vsel %vm2738, %v2750, %v2752
        %v2754 = vrot.slane %v930, 1
        %v2755 = vsel %vm2738, %v2752, %v2754
        %v2756 = vrot.slane %v931, 1
        %v2757 = vsel %vm2738, %v2754, %v2756
        %v2758 = vrot.slane %v932, 1
        %v2759 = vsel %vm2738, %v2756, %v2758
        %v2760 = vrot.slane %v933, 1
        %v2761 = vsel %vm2738, %v2758, %v2760
        %v2762 = vrot.slane %v934, 1
        %v2763 = vsel %vm2738, %v2760, %v2762
        %v2772 = vunpack.c.l.b16 %v2729
        %v2773 = vunpack.c.l.b16 %v2730
        %v2774 = vunpack.c.l.b16 %v2731
        %v2775 = vunpack.c.l.b16 %v2732
        %v2776 = vunpack.c.l.b16 %v2733
        %v2777 = vunpack.c.l.b16 %v2734
        %v2778 = vunpack.c.l.b16 %v2735
        %v2779 = vunpack.c.l.b16 %v2736
        %v2780 = vpack.c.b16 %v2773, %v2772
        %v2781 = vpack.c.b16 %v2775, %v2774
        %v2782 = vpack.c.b16 %v2777, %v2776
        %v2783 = vpack.c.b16 %v2779, %v2778
        %v2789 = vsel %vm824, %v2741, 0
        %v2792 = vsel %vm824, %v2743, 0
        %v2795 = vsel %vm824, %v2745, 0
        %v2798 = vsel %vm824, %v2747, 0
        %v2801 = vsel %vm824, %v2749, 0
        %v2804 = vsel %vm824, %v2751, 0
        %v2807 = vsel %vm824, %v2753, 0
        %v2810 = vsel %vm824, %v2755, 0
        %v2813 = vsel %vm824, %v2757, 0
        %v2816 = vsel %vm824, %v2759, 0
        %v2819 = vsel %vm824, %v2761, 0
        %v2822 = vsel %vm824, %v2763, 0
        %2824 = vmatprep.subr.bf16.mxu0 0
        %2825 = vmatpush1.bf16.msra.mxu0 %v2780
        %2826 = vmatprep.subr.bf16.mxu0 0
        %2827 = vmatpush1.bf16.msra.mxu0 %v2781
        %2828 = vmatprep.subr.bf16.mxu0 0
        %2829 = vmatpush1.bf16.msra.mxu0 %v2782
        %2830 = vmatprep.subr.bf16.mxu0 0
        %2831 = vmatpush1.bf16.msra.mxu0 %v2783
        %2832 = vmatprep.subr.bf16.mxu0 0
        %2833 = vmatpush1.bf16.msra.mxu0 0
        %2834 = vmatprep.subr.bf16.mxu0 0
        %2835 = vmatpush1.bf16.msra.mxu0 0
        %2836 = vmatprep.subr.bf16.mxu0 0
        %2837 = vmatpush1.bf16.msra.mxu0 0
        %2838 = vmatprep.subr.bf16.mxu0 0
        %2839 = vmatpush1.bf16.msra.mxu0 0
        %2840 = vmatprep.subr.bf16.mxu0 0
        %2841 = vmatpush1.bf16.msra.mxu0 0
        %2842 = vmatprep.subr.bf16.mxu0 0
        %2843 = vmatpush1.bf16.msra.mxu0 0
        %2844 = vmatprep.subr.bf16.mxu0 0
        %2845 = vmatpush1.bf16.msra.mxu0 0
        %2846 = vmatprep.subr.bf16.mxu0 0
        %2847 = vmatpush1.bf16.msra.mxu0 0
        %2848 = vmatprep.subr.bf16.mxu0 0
        %2849 = vmatpush1.bf16.msra.mxu0 0
        %2850 = vmatprep.subr.bf16.mxu0 0
        %2851 = vmatpush1.bf16.msra.mxu0 0
        %2852 = vmatprep.subr.bf16.mxu0 0
        %2853 = vmatpush1.bf16.msra.mxu0 0
        %2854 = vmatprep.subr.bf16.mxu0 0
        %2855 = vmatpush1.bf16.msra.mxu0 0
        %2856 = vmatprep.mubr.bf16.mxu0 0
        %2857 = vmatmul.mubr.bf16.gmra.mrb[0].mxu0 %v2789
        %v2858 = vpop.f32.mrb[0].mxu0
        %v2859 = vadd.f32 0.0, %v2858
        %v2860 = vpop.f32.mrb[0].mxu0
        %v2861 = vpop.f32.mrb[0].mxu0
        %v2862 = vadd.f32 0.0, %v2861
        %v2863 = vpop.f32.mrb[0].mxu0
        %2864 = vmatprep.mubr.bf16.mxu0 0
        %2865 = vmatmul.mubr.bf16.gmra.mrb[0].mxu0 %v2792
        %v2866 = vpop.f32.mrb[0].mxu0
        %v2867 = vadd.f32 0.0, %v2866
        %v2868 = vpop.f32.mrb[0].mxu0
        %v2869 = vpop.f32.mrb[0].mxu0
        %v2870 = vadd.f32 0.0, %v2869
        %v2871 = vpop.f32.mrb[0].mxu0
        %2872 = vmatprep.mubr.bf16.mxu0 0
        %2873 = vmatmul.mubr.bf16.gmra.mrb[0].mxu0 %v2795
        %v2874 = vpop.f32.mrb[0].mxu0
        %v2875 = vadd.f32 0.0, %v2874
        %v2876 = vpop.f32.mrb[0].mxu0
        %v2877 = vpop.f32.mrb[0].mxu0
        %v2878 = vadd.f32 0.0, %v2877
        %v2879 = vpop.f32.mrb[0].mxu0
        %2880 = vmatprep.mubr.bf16.mxu0 0
        %2881 = vmatmul.mubr.bf16.gmra.mrb[0].mxu0 %v2798
        %v2882 = vpop.f32.mrb[0].mxu0
        %v2883 = vadd.f32 0.0, %v2882
        %v2884 = vpop.f32.mrb[0].mxu0
        %v2885 = vpop.f32.mrb[0].mxu0
        %v2886 = vadd.f32 0.0, %v2885
        %v2887 = vpop.f32.mrb[0].mxu0
        %2888 = vmatprep.mubr.bf16.mxu0 0
        %2889 = vmatmul.mubr.bf16.gmra.mrb[0].mxu0 %v2801
        %v2890 = vpop.f32.mrb[0].mxu0
        %v2891 = vadd.f32 0.0, %v2890
        %v2892 = vpop.f32.mrb[0].mxu0
        %v2893 = vpop.f32.mrb[0].mxu0
        %v2894 = vadd.f32 0.0, %v2893
        %v2895 = vpop.f32.mrb[0].mxu0
        %2896 = vmatprep.mubr.bf16.mxu0 0
        %2897 = vmatmul.mubr.bf16.gmra.mrb[0].mxu0 %v2804
        %v2898 = vpop.f32.mrb[0].mxu0
        %v2899 = vadd.f32 0.0, %v2898
        %v2900 = vpop.f32.mrb[0].mxu0
        %v2901 = vpop.f32.mrb[0].mxu0
        %v2902 = vadd.f32 0.0, %v2901
        %v2903 = vpop.f32.mrb[0].mxu0
        %2904 = vmatprep.mubr.bf16.mxu0 0
        %2905 = vmatmul.mubr.bf16.gmra.mrb[0].mxu0 %v2807
        %v2906 = vpop.f32.mrb[0].mxu0
        %v2907 = vadd.f32 0.0, %v2906
        %v2908 = vpop.f32.mrb[0].mxu0
        %v2909 = vpop.f32.mrb[0].mxu0
        %v2910 = vadd.f32 0.0, %v2909
        %v2911 = vpop.f32.mrb[0].mxu0
        %2912 = vmatprep.mubr.bf16.mxu0 0
        %2913 = vmatmul.mubr.bf16.gmra.mrb[0].mxu0 %v2810
        %v2914 = vpop.f32.mrb[0].mxu0
        %v2915 = vadd.f32 0.0, %v2914
        %v2916 = vpop.f32.mrb[0].mxu0
        %v2917 = vpop.f32.mrb[0].mxu0
        %v2918 = vadd.f32 0.0, %v2917
        %v2919 = vpop.f32.mrb[0].mxu0
        %2920 = vmatprep.mubr.bf16.mxu0 0
        %2921 = vmatmul.mubr.bf16.gmra.mrb[0].mxu0 %v2813
        %v2922 = vpop.f32.mrb[0].mxu0
        %v2923 = vadd.f32 0.0, %v2922
        %v2924 = vpop.f32.mrb[0].mxu0
        %v2925 = vpop.f32.mrb[0].mxu0
        %v2926 = vadd.f32 0.0, %v2925
        %v2927 = vpop.f32.mrb[0].mxu0
        %2928 = vmatprep.mubr.bf16.mxu0 0
        %2929 = vmatmul.mubr.bf16.gmra.mrb[0].mxu0 %v2816
        %v2930 = vpop.f32.mrb[0].mxu0
        %v2931 = vadd.f32 0.0, %v2930
        %v2932 = vpop.f32.mrb[0].mxu0
        %v2933 = vpop.f32.mrb[0].mxu0
        %v2934 = vadd.f32 0.0, %v2933
        %v2935 = vpop.f32.mrb[0].mxu0
        %2936 = vmatprep.mubr.bf16.mxu0 0
        %2937 = vmatmul.mubr.bf16.gmra.mrb[0].mxu0 %v2819
        %v2938 = vpop.f32.mrb[0].mxu0
        %v2939 = vadd.f32 0.0, %v2938
        %v2940 = vpop.f32.mrb[0].mxu0
        %v2941 = vpop.f32.mrb[0].mxu0
        %v2942 = vadd.f32 0.0, %v2941
        %v2943 = vpop.f32.mrb[0].mxu0
        %2944 = vmatprep.mubr.bf16.mxu0 0
        %2945 = vmatmul.mubr.bf16.gmra.mrb[0].mxu0 %v2822
        %v2946 = vpop.f32.mrb[0].mxu0
        %v2947 = vadd.f32 0.0, %v2946
        %v2948 = vpop.f32.mrb[0].mxu0
        %v2949 = vpop.f32.mrb[0].mxu0
        %v2950 = vadd.f32 0.0, %v2949
        %v2951 = vpop.f32.mrb[0].mxu0
        %2952 = vdwg.mxu0
        %v2953 = vadd.f32 %v2704, %v2859
        %v2954 = vadd.f32 %v2705, %v2862
        %v2955 = vadd.f32 %v2706, %v2867
        %v2956 = vadd.f32 %v2707, %v2870
        %v2957 = vadd.f32 %v2708, %v2875
        %v2958 = vadd.f32 %v2709, %v2878
        %v2959 = vadd.f32 %v2710, %v2883
        %v2960 = vadd.f32 %v2711, %v2886
        %v2961 = vadd.f32 %v2712, %v2891
        %v2962 = vadd.f32 %v2713, %v2894
        %v2963 = vadd.f32 %v2714, %v2899
        %v2964 = vadd.f32 %v2715, %v2902
        %v2965 = vadd.f32 %v2716, %v2907
        %v2966 = vadd.f32 %v2717, %v2910
        %v2967 = vadd.f32 %v2718, %v2915
        %v2968 = vadd.f32 %v2719, %v2918
        %v2969 = vadd.f32 %v2720, %v2923
        %v2970 = vadd.f32 %v2721, %v2926
        %v2971 = vadd.f32 %v2722, %v2931
        %v2972 = vadd.f32 %v2723, %v2934
        %v2973 = vadd.f32 %v2724, %v2939
        %v2974 = vadd.f32 %v2725, %v2942
        %v2975 = vadd.f32 %v2726, %v2947
        %v2976 = vadd.f32 %v2727, %v2950
        %2977 = vst.msk [vmem:[#allocation3] sm:$0xff] %vm824, %v2953
        %2978 = vst.msk [vmem:[#allocation3 + $0x8] sm:$0xff] %vm824, %v2954
        %2979 = vst.msk [vmem:[#allocation3 + $0x10] sm:$0xff] %vm824, %v2955
        %2980 = vst.msk [vmem:[#allocation3 + $0x18] sm:$0xff] %vm824, %v2956
        %2981 = vst.msk [vmem:[#allocation3 + $0x20] sm:$0xff] %vm824, %v2957
        %2982 = vst.msk [vmem:[#allocation3 + $0x28] sm:$0xff] %vm824, %v2958
        %2983 = vst.msk [vmem:[#allocation3 + $0x30] sm:$0xff] %vm824, %v2959
        %2984 = vst.msk [vmem:[#allocation3 + $0x38] sm:$0xff] %vm824, %v2960
        %2985 = vst.msk [vmem:[#allocation3 + $0x40] sm:$0xff] %vm824, %v2961
        %2986 = vst.msk [vmem:[#allocation3 + $0x48] sm:$0xff] %vm824, %v2962
        %2987 = vst.msk [vmem:[#allocation3 + $0x50] sm:$0xff] %vm824, %v2963
        %2988 = vst.msk [vmem:[#allocation3 + $0x58] sm:$0xff] %vm824, %v2964
        %2989 = vst.msk [vmem:[#allocation3 + $0x60] sm:$0xff] %vm824, %v2965
        %2990 = vst.msk [vmem:[#allocation3 + $0x68] sm:$0xff] %vm824, %v2966
        %2991 = vst.msk [vmem:[#allocation3 + $0x70] sm:$0xff] %vm824, %v2967
        %2992 = vst.msk [vmem:[#allocation3 + $0x78] sm:$0xff] %vm824, %v2968
        %2993 = vst.msk [vmem:[#allocation3 + $0x80] sm:$0xff] %vm824, %v2969
        %2994 = vst.msk [vmem:[#allocation3 + $0x88] sm:$0xff] %vm824, %v2970
        %2995 = vst.msk [vmem:[#allocation3 + $0x90] sm:$0xff] %vm824, %v2971
        %2996 = vst.msk [vmem:[#allocation3 + $0x98] sm:$0xff] %vm824, %v2972
        %2997 = vst.msk [vmem:[#allocation3 + $0xa0] sm:$0xff] %vm824, %v2973
        %2998 = vst.msk [vmem:[#allocation3 + $0xa8] sm:$0xff] %vm824, %v2974
        %2999 = vst.msk [vmem:[#allocation3 + $0xb0] sm:$0xff] %vm824, %v2975
        %3000 = vst.msk [vmem:[#allocation3 + $0xb8] sm:$0xff] %vm824, %v2976
        %v3001 = vld [vmem:[#allocation3] sm:$0xff]
        %v3002 = vld [vmem:[#allocation3 + $0x8] sm:$0xff]
        %v3003 = vld [vmem:[#allocation3 + $0x10] sm:$0xff]
        %v3004 = vld [vmem:[#allocation3 + $0x18] sm:$0xff]
        %v3005 = vld [vmem:[#allocation3 + $0x20] sm:$0xff]
        %v3006 = vld [vmem:[#allocation3 + $0x28] sm:$0xff]
        %v3007 = vld [vmem:[#allocation3 + $0x30] sm:$0xff]
        %v3008 = vld [vmem:[#allocation3 + $0x38] sm:$0xff]
        %v3009 = vld [vmem:[#allocation3 + $0x40] sm:$0xff]
        %v3010 = vld [vmem:[#allocation3 + $0x48] sm:$0xff]
        %v3011 = vld [vmem:[#allocation3 + $0x50] sm:$0xff]
        %v3012 = vld [vmem:[#allocation3 + $0x58] sm:$0xff]
        %v3013 = vld [vmem:[#allocation3 + $0x60] sm:$0xff]
        %v3014 = vld [vmem:[#allocation3 + $0x68] sm:$0xff]
        %v3015 = vld [vmem:[#allocation3 + $0x70] sm:$0xff]
        %v3016 = vld [vmem:[#allocation3 + $0x78] sm:$0xff]
        %v3017 = vld [vmem:[#allocation3 + $0x80] sm:$0xff]
        %v3018 = vld [vmem:[#allocation3 + $0x88] sm:$0xff]
        %v3019 = vld [vmem:[#allocation3 + $0x90] sm:$0xff]
        %v3020 = vld [vmem:[#allocation3 + $0x98] sm:$0xff]
        %v3021 = vld [vmem:[#allocation3 + $0xa0] sm:$0xff]
        %v3022 = vld [vmem:[#allocation3 + $0xa8] sm:$0xff]
        %v3023 = vld [vmem:[#allocation3 + $0xb0] sm:$0xff]
        %v3024 = vld [vmem:[#allocation3 + $0xb8] sm:$0xff]
        %s3025 = scalar_lea.vmem [#allocation13], 160
        %v3026 = vld [vmem:[%s3025] sm:$0xf]
        %v3027 = vld [vmem:[%s3025 + $0x4] sm:$0xf]
        %v3028 = vld [vmem:[%s3025 + $0x8] sm:$0xf]
        %v3029 = vld [vmem:[%s3025 + $0xc] sm:$0xf]
        %v3030 = vld [vmem:[%s3025 + $0x10] sm:$0xf]
        %v3031 = vld [vmem:[%s3025 + $0x14] sm:$0xf]
        %v3032 = vld [vmem:[%s3025 + $0x18] sm:$0xf]
        %v3033 = vld [vmem:[%s3025 + $0x1c] sm:$0xf]
        %vm3034 = vcmask 1042432
        %v3035 = vrot.slane %v923, 5
        %v3036 = vrot.slane %v924, 5
        %v3037 = vsel %vm3034, %v3035, %v3036
        %v3038 = vrot.slane %v925, 5
        %v3039 = vsel %vm3034, %v3036, %v3038
        %v3040 = vrot.slane %v926, 5
        %v3041 = vsel %vm3034, %v3038, %v3040
        %v3042 = vrot.slane %v927, 5
        %v3043 = vsel %vm3034, %v3040, %v3042
        %v3044 = vrot.slane %v928, 5
        %v3045 = vsel %vm3034, %v3042, %v3044
        %v3046 = vrot.slane %v929, 5
        %v3047 = vsel %vm3034, %v3044, %v3046
        %v3048 = vrot.slane %v930, 5
        %v3049 = vsel %vm3034, %v3046, %v3048
        %v3050 = vrot.slane %v931, 5
        %v3051 = vsel %vm3034, %v3048, %v3050
        %v3052 = vrot.slane %v932, 5
        %v3053 = vsel %vm3034, %v3050, %v3052
        %v3054 = vrot.slane %v933, 5
        %v3055 = vsel %vm3034, %v3052, %v3054
        %v3056 = vrot.slane %v934, 5
        %v3057 = vsel %vm3034, %v3054, %v3056
        %v3058 = vrot.slane %v935, 5
        %v3059 = vsel %vm3034, %v3056, %v3058
        %v3068 = vunpack.c.l.b16 %v3026
        %v3069 = vunpack.c.l.b16 %v3027
        %v3070 = vunpack.c.l.b16 %v3028
        %v3071 = vunpack.c.l.b16 %v3029
        %v3072 = vunpack.c.l.b16 %v3030
        %v3073 = vunpack.c.l.b16 %v3031
        %v3074 = vunpack.c.l.b16 %v3032
        %v3075 = vunpack.c.l.b16 %v3033
        %v3076 = vpack.c.b16 %v3069, %v3068
        %v3077 = vpack.c.b16 %v3071, %v3070
        %v3078 = vpack.c.b16 %v3073, %v3072
        %v3079 = vpack.c.b16 %v3075, %v3074
        %v3085 = vsel %vm824, %v3037, 0
        %v3088 = vsel %vm824, %v3039, 0
        %v3091 = vsel %vm824, %v3041, 0
        %v3094 = vsel %vm824, %v3043, 0
        %v3097 = vsel %vm824, %v3045, 0
        %v3100 = vsel %vm824, %v3047, 0
        %v3103 = vsel %vm824, %v3049, 0
        %v3106 = vsel %vm824, %v3051, 0
        %v3109 = vsel %vm824, %v3053, 0
        %v3112 = vsel %vm824, %v3055, 0
        %v3115 = vsel %vm824, %v3057, 0
        %v3118 = vsel %vm824, %v3059, 0
        %3120 = vmatprep.subr.bf16.mxu0 0
        %3121 = vmatpush1.bf16.msra.mxu0 %v3076
        %3122 = vmatprep.subr.bf16.mxu0 0
        %3123 = vmatpush1.bf16.msra.mxu0 %v3077
        %3124 = vmatprep.subr.bf16.mxu0 0
        %3125 = vmatpush1.bf16.msra.mxu0 %v3078
        %3126 = vmatprep.subr.bf16.mxu0 0
        %3127 = vmatpush1.bf16.msra.mxu0 %v3079
        %3128 = vmatprep.subr.bf16.mxu0 0
        %3129 = vmatpush1.bf16.msra.mxu0 0
        %3130 = vmatprep.subr.bf16.mxu0 0
        %3131 = vmatpush1.bf16.msra.mxu0 0
        %3132 = vmatprep.subr.bf16.mxu0 0
        %3133 = vmatpush1.bf16.msra.mxu0 0
        %3134 = vmatprep.subr.bf16.mxu0 0
        %3135 = vmatpush1.bf16.msra.mxu0 0
        %3136 = vmatprep.subr.bf16.mxu0 0
        %3137 = vmatpush1.bf16.msra.mxu0 0
        %3138 = vmatprep.subr.bf16.mxu0 0
        %3139 = vmatpush1.bf16.msra.mxu0 0
        %3140 = vmatprep.subr.bf16.mxu0 0
        %3141 = vmatpush1.bf16.msra.mxu0 0
        %3142 = vmatprep.subr.bf16.mxu0 0
        %3143 = vmatpush1.bf16.msra.mxu0 0
        %3144 = vmatprep.subr.bf16.mxu0 0
        %3145 = vmatpush1.bf16.msra.mxu0 0
        %3146 = vmatprep.subr.bf16.mxu0 0
        %3147 = vmatpush1.bf16.msra.mxu0 0
        %3148 = vmatprep.subr.bf16.mxu0 0
        %3149 = vmatpush1.bf16.msra.mxu0 0
        %3150 = vmatprep.subr.bf16.mxu0 0
        %3151 = vmatpush1.bf16.msra.mxu0 0
        %3152 = vmatprep.mubr.bf16.mxu0 0
        %3153 = vmatmul.mubr.bf16.gmra.mrb[0].mxu0 %v3085
        %v3154 = vpop.f32.mrb[0].mxu0
        %v3155 = vadd.f32 0.0, %v3154
        %v3156 = vpop.f32.mrb[0].mxu0
        %v3157 = vpop.f32.mrb[0].mxu0
        %v3158 = vadd.f32 0.0, %v3157
        %v3159 = vpop.f32.mrb[0].mxu0
        %3160 = vmatprep.mubr.bf16.mxu0 0
        %3161 = vmatmul.mubr.bf16.gmra.mrb[0].mxu0 %v3088
        %v3162 = vpop.f32.mrb[0].mxu0
        %v3163 = vadd.f32 0.0, %v3162
        %v3164 = vpop.f32.mrb[0].mxu0
        %v3165 = vpop.f32.mrb[0].mxu0
        %v3166 = vadd.f32 0.0, %v3165
        %v3167 = vpop.f32.mrb[0].mxu0
        %3168 = vmatprep.mubr.bf16.mxu0 0
        %3169 = vmatmul.mubr.bf16.gmra.mrb[0].mxu0 %v3091
        %v3170 = vpop.f32.mrb[0].mxu0
        %v3171 = vadd.f32 0.0, %v3170
        %v3172 = vpop.f32.mrb[0].mxu0
        %v3173 = vpop.f32.mrb[0].mxu0
        %v3174 = vadd.f32 0.0, %v3173
        %v3175 = vpop.f32.mrb[0].mxu0
        %3176 = vmatprep.mubr.bf16.mxu0 0
        %3177 = vmatmul.mubr.bf16.gmra.mrb[0].mxu0 %v3094
        %v3178 = vpop.f32.mrb[0].mxu0
        %v3179 = vadd.f32 0.0, %v3178
        %v3180 = vpop.f32.mrb[0].mxu0
        %v3181 = vpop.f32.mrb[0].mxu0
        %v3182 = vadd.f32 0.0, %v3181
        %v3183 = vpop.f32.mrb[0].mxu0
        %3184 = vmatprep.mubr.bf16.mxu0 0
        %3185 = vmatmul.mubr.bf16.gmra.mrb[0].mxu0 %v3097
        %v3186 = vpop.f32.mrb[0].mxu0
        %v3187 = vadd.f32 0.0, %v3186
        %v3188 = vpop.f32.mrb[0].mxu0
        %v3189 = vpop.f32.mrb[0].mxu0
        %v3190 = vadd.f32 0.0, %v3189
        %v3191 = vpop.f32.mrb[0].mxu0
        %3192 = vmatprep.mubr.bf16.mxu0 0
        %3193 = vmatmul.mubr.bf16.gmra.mrb[0].mxu0 %v3100
        %v3194 = vpop.f32.mrb[0].mxu0
        %v3195 = vadd.f32 0.0, %v3194
        %v3196 = vpop.f32.mrb[0].mxu0
        %v3197 = vpop.f32.mrb[0].mxu0
        %v3198 = vadd.f32 0.0, %v3197
        %v3199 = vpop.f32.mrb[0].mxu0
        %3200 = vmatprep.mubr.bf16.mxu0 0
        %3201 = vmatmul.mubr.bf16.gmra.mrb[0].mxu0 %v3103
        %v3202 = vpop.f32.mrb[0].mxu0
        %v3203 = vadd.f32 0.0, %v3202
        %v3204 = vpop.f32.mrb[0].mxu0
        %v3205 = vpop.f32.mrb[0].mxu0
        %v3206 = vadd.f32 0.0, %v3205
        %v3207 = vpop.f32.mrb[0].mxu0
        %3208 = vmatprep.mubr.bf16.mxu0 0
        %3209 = vmatmul.mubr.bf16.gmra.mrb[0].mxu0 %v3106
        %v3210 = vpop.f32.mrb[0].mxu0
        %v3211 = vadd.f32 0.0, %v3210
        %v3212 = vpop.f32.mrb[0].mxu0
        %v3213 = vpop.f32.mrb[0].mxu0
        %v3214 = vadd.f32 0.0, %v3213
        %v3215 = vpop.f32.mrb[0].mxu0
        %3216 = vmatprep.mubr.bf16.mxu0 0
        %3217 = vmatmul.mubr.bf16.gmra.mrb[0].mxu0 %v3109
        %v3218 = vpop.f32.mrb[0].mxu0
        %v3219 = vadd.f32 0.0, %v3218
        %v3220 = vpop.f32.mrb[0].mxu0
        %v3221 = vpop.f32.mrb[0].mxu0
        %v3222 = vadd.f32 0.0, %v3221
        %v3223 = vpop.f32.mrb[0].mxu0
        %3224 = vmatprep.mubr.bf16.mxu0 0
        %3225 = vmatmul.mubr.bf16.gmra.mrb[0].mxu0 %v3112
        %v3226 = vpop.f32.mrb[0].mxu0
        %v3227 = vadd.f32 0.0, %v3226
        %v3228 = vpop.f32.mrb[0].mxu0
        %v3229 = vpop.f32.mrb[0].mxu0
        %v3230 = vadd.f32 0.0, %v3229
        %v3231 = vpop.f32.mrb[0].mxu0
        %3232 = vmatprep.mubr.bf16.mxu0 0
        %3233 = vmatmul.mubr.bf16.gmra.mrb[0].mxu0 %v3115
        %v3234 = vpop.f32.mrb[0].mxu0
        %v3235 = vadd.f32 0.0, %v3234
        %v3236 = vpop.f32.mrb[0].mxu0
        %v3237 = vpop.f32.mrb[0].mxu0
        %v3238 = vadd.f32 0.0, %v3237
        %v3239 = vpop.f32.mrb[0].mxu0
        %3240 = vmatprep.mubr.bf16.mxu0 0
        %3241 = vmatmul.mubr.bf16.gmra.mrb[0].mxu0 %v3118
        %v3242 = vpop.f32.mrb[0].mxu0
        %v3243 = vadd.f32 0.0, %v3242
        %v3244 = vpop.f32.mrb[0].mxu0
        %v3245 = vpop.f32.mrb[0].mxu0
        %v3246 = vadd.f32 0.0, %v3245
        %v3247 = vpop.f32.mrb[0].mxu0
        %3248 = vdwg.mxu0
        %v3249 = vadd.f32 %v3001, %v3155
        %v3250 = vadd.f32 %v3002, %v3158
        %v3251 = vadd.f32 %v3003, %v3163
        %v3252 = vadd.f32 %v3004, %v3166
        %v3253 = vadd.f32 %v3005, %v3171
        %v3254 = vadd.f32 %v3006, %v3174
        %v3255 = vadd.f32 %v3007, %v3179
        %v3256 = vadd.f32 %v3008, %v3182
        %v3257 = vadd.f32 %v3009, %v3187
        %v3258 = vadd.f32 %v3010, %v3190
        %v3259 = vadd.f32 %v3011, %v3195
        %v3260 = vadd.f32 %v3012, %v3198
        %v3261 = vadd.f32 %v3013, %v3203
        %v3262 = vadd.f32 %v3014, %v3206
        %v3263 = vadd.f32 %v3015, %v3211
        %v3264 = vadd.f32 %v3016, %v3214
        %v3265 = vadd.f32 %v3017, %v3219
        %v3266 = vadd.f32 %v3018, %v3222
        %v3267 = vadd.f32 %v3019, %v3227
        %v3268 = vadd.f32 %v3020, %v3230
        %v3269 = vadd.f32 %v3021, %v3235
        %v3270 = vadd.f32 %v3022, %v3238
        %v3271 = vadd.f32 %v3023, %v3243
        %v3272 = vadd.f32 %v3024, %v3246
        %3273 = vst.msk [vmem:[#allocation3] sm:$0xff] %vm824, %v3249
        %3274 = vst.msk [vmem:[#allocation3 + $0x8] sm:$0xff] %vm824, %v3250
        %3275 = vst.msk [vmem:[#allocation3 + $0x10] sm:$0xff] %vm824, %v3251
        %3276 = vst.msk [vmem:[#allocation3 + $0x18] sm:$0xff] %vm824, %v3252
        %3277 = vst.msk [vmem:[#allocation3 + $0x20] sm:$0xff] %vm824, %v3253
        %3278 = vst.msk [vmem:[#allocation3 + $0x28] sm:$0xff] %vm824, %v3254
        %3279 = vst.msk [vmem:[#allocation3 + $0x30] sm:$0xff] %vm824, %v3255
        %3280 = vst.msk [vmem:[#allocation3 + $0x38] sm:$0xff] %vm824, %v3256
        %3281 = vst.msk [vmem:[#allocation3 + $0x40] sm:$0xff] %vm824, %v3257
        %3282 = vst.msk [vmem:[#allocation3 + $0x48] sm:$0xff] %vm824, %v3258
        %3283 = vst.msk [vmem:[#allocation3 + $0x50] sm:$0xff] %vm824, %v3259
        %3284 = vst.msk [vmem:[#allocation3 + $0x58] sm:$0xff] %vm824, %v3260
        %3285 = vst.msk [vmem:[#allocation3 + $0x60] sm:$0xff] %vm824, %v3261
        %3286 = vst.msk [vmem:[#allocation3 + $0x68] sm:$0xff] %vm824, %v3262
        %3287 = vst.msk [vmem:[#allocation3 + $0x70] sm:$0xff] %vm824, %v3263
        %3288 = vst.msk [vmem:[#allocation3 + $0x78] sm:$0xff] %vm824, %v3264
        %3289 = vst.msk [vmem:[#allocation3 + $0x80] sm:$0xff] %vm824, %v3265
        %3290 = vst.msk [vmem:[#allocation3 + $0x88] sm:$0xff] %vm824, %v3266
        %3291 = vst.msk [vmem:[#allocation3 + $0x90] sm:$0xff] %vm824, %v3267
        %3292 = vst.msk [vmem:[#allocation3 + $0x98] sm:$0xff] %vm824, %v3268
        %3293 = vst.msk [vmem:[#allocation3 + $0xa0] sm:$0xff] %vm824, %v3269
        %3294 = vst.msk [vmem:[#allocation3 + $0xa8] sm:$0xff] %vm824, %v3270
        %3295 = vst.msk [vmem:[#allocation3 + $0xb0] sm:$0xff] %vm824, %v3271
        %3296 = vst.msk [vmem:[#allocation3 + $0xb8] sm:$0xff] %vm824, %v3272
        %v3297 = vld [vmem:[#allocation3] sm:$0xff]
        %v3298 = vld [vmem:[#allocation3 + $0x8] sm:$0xff]
        %v3299 = vld [vmem:[#allocation3 + $0x10] sm:$0xff]
        %v3300 = vld [vmem:[#allocation3 + $0x18] sm:$0xff]
        %v3301 = vld [vmem:[#allocation3 + $0x20] sm:$0xff]
        %v3302 = vld [vmem:[#allocation3 + $0x28] sm:$0xff]
        %v3303 = vld [vmem:[#allocation3 + $0x30] sm:$0xff]
        %v3304 = vld [vmem:[#allocation3 + $0x38] sm:$0xff]
        %v3305 = vld [vmem:[#allocation3 + $0x40] sm:$0xff]
        %v3306 = vld [vmem:[#allocation3 + $0x48] sm:$0xff]
        %v3307 = vld [vmem:[#allocation3 + $0x50] sm:$0xff]
        %v3308 = vld [vmem:[#allocation3 + $0x58] sm:$0xff]
        %v3309 = vld [vmem:[#allocation3 + $0x60] sm:$0xff]
        %v3310 = vld [vmem:[#allocation3 + $0x68] sm:$0xff]
        %v3311 = vld [vmem:[#allocation3 + $0x70] sm:$0xff]
        %v3312 = vld [vmem:[#allocation3 + $0x78] sm:$0xff]
        %v3313 = vld [vmem:[#allocation3 + $0x80] sm:$0xff]
        %v3314 = vld [vmem:[#allocation3 + $0x88] sm:$0xff]
        %v3315 = vld [vmem:[#allocation3 + $0x90] sm:$0xff]
        %v3316 = vld [vmem:[#allocation3 + $0x98] sm:$0xff]
        %v3317 = vld [vmem:[#allocation3 + $0xa0] sm:$0xff]
        %v3318 = vld [vmem:[#allocation3 + $0xa8] sm:$0xff]
        %v3319 = vld [vmem:[#allocation3 + $0xb0] sm:$0xff]
        %v3320 = vld [vmem:[#allocation3 + $0xb8] sm:$0xff]
        %s3321 = scalar_lea.vmem [#allocation13], 256
        %v3322 = vld [vmem:[%s3321] sm:$0xf]
        %v3323 = vld [vmem:[%s3321 + $0x4] sm:$0xf]
        %v3324 = vld [vmem:[%s3321 + $0x8] sm:$0xf]
        %v3325 = vld [vmem:[%s3321 + $0xc] sm:$0xf]
        %v3326 = vld [vmem:[%s3321 + $0x10] sm:$0xf]
        %v3327 = vld [vmem:[%s3321 + $0x14] sm:$0xf]
        %v3328 = vld [vmem:[%s3321 + $0x18] sm:$0xf]
        %v3329 = vld [vmem:[%s3321 + $0x1c] sm:$0xf]
        %v3332 = vrot.slane %v935, 1
        %v3333 = vsel %vm2738, %v2762, %v3332
        %v3334 = vrot.slane %v936, 1
        %v3335 = vsel %vm2738, %v3332, %v3334
        %v3336 = vrot.slane %v1758, 1
        %v3337 = vsel %vm2738, %v3334, %v3336
        %v3346 = vunpack.c.l.b16 %v3322
        %v3347 = vunpack.c.l.b16 %v3323
        %v3348 = vunpack.c.l.b16 %v3324
        %v3349 = vunpack.c.l.b16 %v3325
        %v3350 = vunpack.c.l.b16 %v3326
        %v3351 = vunpack.c.l.b16 %v3327
        %v3352 = vunpack.c.l.b16 %v3328
        %v3353 = vunpack.c.l.b16 %v3329
        %v3354 = vpack.c.b16 %v3347, %v3346
        %v3355 = vpack.c.b16 %v3349, %v3348
        %v3356 = vpack.c.b16 %v3351, %v3350
        %v3357 = vpack.c.b16 %v3353, %v3352
        %v3363 = vsel %vm824, %v3333, 0
        %v3366 = vsel %vm824, %v3335, 0
        %v3369 = vsel %vm824, %v3337, 0
        %3371 = vmatprep.subr.bf16.mxu0 0
        %3372 = vmatpush1.bf16.msra.mxu0 %v3354
        %3373 = vmatprep.subr.bf16.mxu0 0
        %3374 = vmatpush1.bf16.msra.mxu0 %v3355
        %3375 = vmatprep.subr.bf16.mxu0 0
        %3376 = vmatpush1.bf16.msra.mxu0 %v3356
        %3377 = vmatprep.subr.bf16.mxu0 0
        %3378 = vmatpush1.bf16.msra.mxu0 %v3357
        %3379 = vmatprep.subr.bf16.mxu0 0
        %3380 = vmatpush1.bf16.msra.mxu0 0
        %3381 = vmatprep.subr.bf16.mxu0 0
        %3382 = vmatpush1.bf16.msra.mxu0 0
        %3383 = vmatprep.subr.bf16.mxu0 0
        %3384 = vmatpush1.bf16.msra.mxu0 0
        %3385 = vmatprep.subr.bf16.mxu0 0
        %3386 = vmatpush1.bf16.msra.mxu0 0
        %3387 = vmatprep.subr.bf16.mxu0 0
        %3388 = vmatpush1.bf16.msra.mxu0 0
        %3389 = vmatprep.subr.bf16.mxu0 0
        %3390 = vmatpush1.bf16.msra.mxu0 0
        %3391 = vmatprep.subr.bf16.mxu0 0
        %3392 = vmatpush1.bf16.msra.mxu0 0
        %3393 = vmatprep.subr.bf16.mxu0 0
        %3394 = vmatpush1.bf16.msra.mxu0 0
        %3395 = vmatprep.subr.bf16.mxu0 0
        %3396 = vmatpush1.bf16.msra.mxu0 0
        %3397 = vmatprep.subr.bf16.mxu0 0
        %3398 = vmatpush1.bf16.msra.mxu0 0
        %3399 = vmatprep.subr.bf16.mxu0 0
        %3400 = vmatpush1.bf16.msra.mxu0 0
        %3401 = vmatprep.subr.bf16.mxu0 0
        %3402 = vmatpush1.bf16.msra.mxu0 0
        %3403 = vmatprep.mubr.bf16.mxu0 0
        %3404 = vmatmul.mubr.bf16.gmra.mrb[0].mxu0 %v2798
        %v3405 = vpop.f32.mrb[0].mxu0
        %v3406 = vadd.f32 0.0, %v3405
        %v3407 = vpop.f32.mrb[0].mxu0
        %v3408 = vpop.f32.mrb[0].mxu0
        %v3409 = vadd.f32 0.0, %v3408
        %v3410 = vpop.f32.mrb[0].mxu0
        %3411 = vmatprep.mubr.bf16.mxu0 0
        %3412 = vmatmul.mubr.bf16.gmra.mrb[0].mxu0 %v2801
        %v3413 = vpop.f32.mrb[0].mxu0
        %v3414 = vadd.f32 0.0, %v3413
        %v3415 = vpop.f32.mrb[0].mxu0
        %v3416 = vpop.f32.mrb[0].mxu0
        %v3417 = vadd.f32 0.0, %v3416
        %v3418 = vpop.f32.mrb[0].mxu0
        %3419 = vmatprep.mubr.bf16.mxu0 0
        %3420 = vmatmul.mubr.bf16.gmra.mrb[0].mxu0 %v2804
        %v3421 = vpop.f32.mrb[0].mxu0
        %v3422 = vadd.f32 0.0, %v3421
        %v3423 = vpop.f32.mrb[0].mxu0
        %v3424 = vpop.f32.mrb[0].mxu0
        %v3425 = vadd.f32 0.0, %v3424
        %v3426 = vpop.f32.mrb[0].mxu0
        %3427 = vmatprep.mubr.bf16.mxu0 0
        %3428 = vmatmul.mubr.bf16.gmra.mrb[0].mxu0 %v2807
        %v3429 = vpop.f32.mrb[0].mxu0
        %v3430 = vadd.f32 0.0, %v3429
        %v3431 = vpop.f32.mrb[0].mxu0
        %v3432 = vpop.f32.mrb[0].mxu0
        %v3433 = vadd.f32 0.0, %v3432
        %v3434 = vpop.f32.mrb[0].mxu0
        %3435 = vmatprep.mubr.bf16.mxu0 0
        %3436 = vmatmul.mubr.bf16.gmra.mrb[0].mxu0 %v2810
        %v3437 = vpop.f32.mrb[0].mxu0
        %v3438 = vadd.f32 0.0, %v3437
        %v3439 = vpop.f32.mrb[0].mxu0
        %v3440 = vpop.f32.mrb[0].mxu0
        %v3441 = vadd.f32 0.0, %v3440
        %v3442 = vpop.f32.mrb[0].mxu0
        %3443 = vmatprep.mubr.bf16.mxu0 0
        %3444 = vmatmul.mubr.bf16.gmra.mrb[0].mxu0 %v2813
        %v3445 = vpop.f32.mrb[0].mxu0
        %v3446 = vadd.f32 0.0, %v3445
        %v3447 = vpop.f32.mrb[0].mxu0
        %v3448 = vpop.f32.mrb[0].mxu0
        %v3449 = vadd.f32 0.0, %v3448
        %v3450 = vpop.f32.mrb[0].mxu0
        %3451 = vmatprep.mubr.bf16.mxu0 0
        %3452 = vmatmul.mubr.bf16.gmra.mrb[0].mxu0 %v2816
        %v3453 = vpop.f32.mrb[0].mxu0
        %v3454 = vadd.f32 0.0, %v3453
        %v3455 = vpop.f32.mrb[0].mxu0
        %v3456 = vpop.f32.mrb[0].mxu0
        %v3457 = vadd.f32 0.0, %v3456
        %v3458 = vpop.f32.mrb[0].mxu0
        %3459 = vmatprep.mubr.bf16.mxu0 0
        %3460 = vmatmul.mubr.bf16.gmra.mrb[0].mxu0 %v2819
        %v3461 = vpop.f32.mrb[0].mxu0
        %v3462 = vadd.f32 0.0, %v3461
        %v3463 = vpop.f32.mrb[0].mxu0
        %v3464 = vpop.f32.mrb[0].mxu0
        %v3465 = vadd.f32 0.0, %v3464
        %v3466 = vpop.f32.mrb[0].mxu0
        %3467 = vmatprep.mubr.bf16.mxu0 0
        %3468 = vmatmul.mubr.bf16.gmra.mrb[0].mxu0 %v2822
        %v3469 = vpop.f32.mrb[0].mxu0
        %v3470 = vadd.f32 0.0, %v3469
        %v3471 = vpop.f32.mrb[0].mxu0
        %v3472 = vpop.f32.mrb[0].mxu0
        %v3473 = vadd.f32 0.0, %v3472
        %v3474 = vpop.f32.mrb[0].mxu0
        %3475 = vmatprep.mubr.bf16.mxu0 0
        %3476 = vmatmul.mubr.bf16.gmra.mrb[0].mxu0 %v3363
        %v3477 = vpop.f32.mrb[0].mxu0
        %v3478 = vadd.f32 0.0, %v3477
        %v3479 = vpop.f32.mrb[0].mxu0
        %v3480 = vpop.f32.mrb[0].mxu0
        %v3481 = vadd.f32 0.0, %v3480
        %v3482 = vpop.f32.mrb[0].mxu0
        %3483 = vmatprep.mubr.bf16.mxu0 0
        %3484 = vmatmul.mubr.bf16.gmra.mrb[0].mxu0 %v3366
        %v3485 = vpop.f32.mrb[0].mxu0
        %v3486 = vadd.f32 0.0, %v3485
        %v3487 = vpop.f32.mrb[0].mxu0
        %v3488 = vpop.f32.mrb[0].mxu0
        %v3489 = vadd.f32 0.0, %v3488
        %v3490 = vpop.f32.mrb[0].mxu0
        %3491 = vmatprep.mubr.bf16.mxu0 0
        %3492 = vmatmul.mubr.bf16.gmra.mrb[0].mxu0 %v3369
        %v3493 = vpop.f32.mrb[0].mxu0
        %v3494 = vadd.f32 0.0, %v3493
        %v3495 = vpop.f32.mrb[0].mxu0
        %v3496 = vpop.f32.mrb[0].mxu0
        %v3497 = vadd.f32 0.0, %v3496
        %v3498 = vpop.f32.mrb[0].mxu0
        %3499 = vdwg.mxu0
        %v3500 = vadd.f32 %v3297, %v3406
        %v3501 = vadd.f32 %v3298, %v3409
        %v3502 = vadd.f32 %v3299, %v3414
        %v3503 = vadd.f32 %v3300, %v3417
        %v3504 = vadd.f32 %v3301, %v3422
        %v3505 = vadd.f32 %v3302, %v3425
        %v3506 = vadd.f32 %v3303, %v3430
        %v3507 = vadd.f32 %v3304, %v3433
        %v3508 = vadd.f32 %v3305, %v3438
        %v3509 = vadd.f32 %v3306, %v3441
        %v3510 = vadd.f32 %v3307, %v3446
        %v3511 = vadd.f32 %v3308, %v3449
        %v3512 = vadd.f32 %v3309, %v3454
        %v3513 = vadd.f32 %v3310, %v3457
        %v3514 = vadd.f32 %v3311, %v3462
        %v3515 = vadd.f32 %v3312, %v3465
        %v3516 = vadd.f32 %v3313, %v3470
        %v3517 = vadd.f32 %v3314, %v3473
        %v3518 = vadd.f32 %v3315, %v3478
        %v3519 = vadd.f32 %v3316, %v3481
        %v3520 = vadd.f32 %v3317, %v3486
        %v3521 = vadd.f32 %v3318, %v3489
        %v3522 = vadd.f32 %v3319, %v3494
        %v3523 = vadd.f32 %v3320, %v3497
        %3524 = vst.msk [vmem:[#allocation3] sm:$0xff] %vm824, %v3500
        %3525 = vst.msk [vmem:[#allocation3 + $0x8] sm:$0xff] %vm824, %v3501
        %3526 = vst.msk [vmem:[#allocation3 + $0x10] sm:$0xff] %vm824, %v3502
        %3527 = vst.msk [vmem:[#allocation3 + $0x18] sm:$0xff] %vm824, %v3503
        %3528 = vst.msk [vmem:[#allocation3 + $0x20] sm:$0xff] %vm824, %v3504
        %3529 = vst.msk [vmem:[#allocation3 + $0x28] sm:$0xff] %vm824, %v3505
        %3530 = vst.msk [vmem:[#allocation3 + $0x30] sm:$0xff] %vm824, %v3506
        %3531 = vst.msk [vmem:[#allocation3 + $0x38] sm:$0xff] %vm824, %v3507
        %3532 = vst.msk [vmem:[#allocation3 + $0x40] sm:$0xff] %vm824, %v3508
        %3533 = vst.msk [vmem:[#allocation3 + $0x48] sm:$0xff] %vm824, %v3509
        %3534 = vst.msk [vmem:[#allocation3 + $0x50] sm:$0xff] %vm824, %v3510
        %3535 = vst.msk [vmem:[#allocation3 + $0x58] sm:$0xff] %vm824, %v3511
        %3536 = vst.msk [vmem:[#allocation3 + $0x60] sm:$0xff] %vm824, %v3512
        %3537 = vst.msk [vmem:[#allocation3 + $0x68] sm:$0xff] %vm824, %v3513
        %3538 = vst.msk [vmem:[#allocation3 + $0x70] sm:$0xff] %vm824, %v3514
        %3539 = vst.msk [vmem:[#allocation3 + $0x78] sm:$0xff] %vm824, %v3515
        %3540 = vst.msk [vmem:[#allocation3 + $0x80] sm:$0xff] %vm824, %v3516
        %3541 = vst.msk [vmem:[#allocation3 + $0x88] sm:$0xff] %vm824, %v3517
        %3542 = vst.msk [vmem:[#allocation3 + $0x90] sm:$0xff] %vm824, %v3518
        %3543 = vst.msk [vmem:[#allocation3 + $0x98] sm:$0xff] %vm824, %v3519
        %3544 = vst.msk [vmem:[#allocation3 + $0xa0] sm:$0xff] %vm824, %v3520
        %3545 = vst.msk [vmem:[#allocation3 + $0xa8] sm:$0xff] %vm824, %v3521
        %3546 = vst.msk [vmem:[#allocation3 + $0xb0] sm:$0xff] %vm824, %v3522
        %3547 = vst.msk [vmem:[#allocation3 + $0xb8] sm:$0xff] %vm824, %v3523
        %v3548 = vld [vmem:[#allocation3] sm:$0xff]
        %v3549 = vld [vmem:[#allocation3 + $0x8] sm:$0xff]
        %v3550 = vld [vmem:[#allocation3 + $0x18] sm:$0xff]
        %v3551 = vld [vmem:[#allocation3 + $0x20] sm:$0xff]
        %v3552 = vld [vmem:[#allocation3 + $0x30] sm:$0xff]
        %v3553 = vld [vmem:[#allocation3 + $0x38] sm:$0xff]
        %v3554 = vld [vmem:[#allocation3 + $0x48] sm:$0xff]
        %v3555 = vld [vmem:[#allocation3 + $0x50] sm:$0xff]
        %v3556 = vld [vmem:[#allocation3 + $0x60] sm:$0xff]
        %v3557 = vld [vmem:[#allocation3 + $0x68] sm:$0xff]
        %v3558 = vld [vmem:[#allocation3 + $0x78] sm:$0xff]
        %v3559 = vld [vmem:[#allocation3 + $0x80] sm:$0xff]
        %v3560 = vld [vmem:[#allocation3 + $0x90] sm:$0xff]
        %v3561 = vld [vmem:[#allocation3 + $0x98] sm:$0xff]
        %v3562 = vld [vmem:[#allocation3 + $0xa8] sm:$0xff]
        %v3563 = vld [vmem:[#allocation3 + $0xb0] sm:$0xff]
        %v3564 = vld [vmem:[#allocation15] sm:$0x1]
        %v3566 = vlaneseq
        %v3567 = vshrl.u32 %v3566, 7
        %v3568 = vsub.s32 0, %v3567
        %v3569 = vrot.slane %v3564, %v3568
        %v3571 = vadd.f32 %v3548, %v3569
        %v3572 = vadd.f32 %v3549, %v3569
        %v3573 = vadd.f32 %v3550, %v3569
        %v3574 = vadd.f32 %v3551, %v3569
        %v3575 = vadd.f32 %v3552, %v3569
        %v3576 = vadd.f32 %v3553, %v3569
        %v3577 = vadd.f32 %v3554, %v3569
        %v3578 = vadd.f32 %v3555, %v3569
        %v3579 = vadd.f32 %v3556, %v3569
        %v3580 = vadd.f32 %v3557, %v3569
        %v3581 = vadd.f32 %v3558, %v3569
        %v3582 = vadd.f32 %v3559, %v3569
        %v3583 = vadd.f32 %v3560, %v3569
        %v3584 = vadd.f32 %v3561, %v3569
        %v3585 = vadd.f32 %v3562, %v3569
        %v3586 = vadd.f32 %v3563, %v3569
        %3587 = vst.msk [vmem:[%s516] sm:$0xff] %vm824, %v3571
        %3588 = vst.msk [vmem:[%s516 + $0x8] sm:$0xff] %vm824, %v3572
        %3589 = vst.msk [vmem:[%s516 + $0x10] sm:$0xff] %vm824, %v3573
        %3590 = vst.msk [vmem:[%s516 + $0x18] sm:$0xff] %vm824, %v3574
        %3591 = vst.msk [vmem:[%s516 + $0x20] sm:$0xff] %vm824, %v3575
        %3592 = vst.msk [vmem:[%s516 + $0x28] sm:$0xff] %vm824, %v3576
        %3593 = vst.msk [vmem:[%s516 + $0x30] sm:$0xff] %vm824, %v3577
        %3594 = vst.msk [vmem:[%s516 + $0x38] sm:$0xff] %vm824, %v3578
        %3595 = vst.msk [vmem:[%s516 + $0x40] sm:$0xff] %vm824, %v3579
        %3596 = vst.msk [vmem:[%s516 + $0x48] sm:$0xff] %vm824, %v3580
        %3597 = vst.msk [vmem:[%s516 + $0x50] sm:$0xff] %vm824, %v3581
        %3598 = vst.msk [vmem:[%s516 + $0x58] sm:$0xff] %vm824, %v3582
        %3599 = vst.msk [vmem:[%s516 + $0x60] sm:$0xff] %vm824, %v3583
        %3600 = vst.msk [vmem:[%s516 + $0x68] sm:$0xff] %vm824, %v3584
        %3601 = vst.msk [vmem:[%s516 + $0x70] sm:$0xff] %vm824, %v3585
        %3602 = vst.msk [vmem:[%s516 + $0x78] sm:$0xff] %vm824, %v3586
        %s3603 = sand.u32 %s247, 1
        %s3604 = scalar_lea.sflag [#allocation6], %s3603
        %s3605 = sand.u32 %s247, 1
        %s3606 = smul.addr %s3605, 128
        %s3607 = scalar_lea.vmem [#allocation16], %s3606
        // Predicated region
        $region77: #{midblock_forward.5} parent=47 // pred_check
          %p3608 = pneg %p257
        $region78: #{midblock_forward.5} parent=47 // pred_check_branch
          %3610 = sbr.rel (%p3608) target = $region80
        $region79: #{midblock_forward.5} parent=47 // pred_region
          %s3611 = smul.u32 8, %s36
          %s3613 = ssub.s32 2048, 2048
          %3614 = vsyncadd %s3604, %s3613
          %s3615 = smul.addr %s3611, 2
          %s3616 = smul.addr %s35, 32
          %s3617 = sadd.s32 %s3615, %s3616
          %s3618 = smul.addr %s3617, 128
          %s3619 = scalar_lea.hbm %s7, %s3618
          %s3620 = sshll.u32 %s3607, 4
          %s3621 = int_to_ptr.vmem [resolvable:$true] %s3620
          %3626 = dma.vmem_to_hbm [thread:$0]  %s3621, 2048, %s3619, %s3604, 128, 128, 8
        $region80: #{midblock_forward.5} parent=47 // pred_fallthru
          _
      $region48: #{midblock_forward.5} parent=5 // pred_fallthru
        _
      %p3627 = scmp.le.s32.totalorder 2, %s26
      // Predicated region
      $region81: #{midblock_forward.5} parent=5 // pred_check
        %p3628 = pneg %p3627
      $region82: #{midblock_forward.5} parent=5 // pred_check_branch
        %3630 = sbr.rel (%p3628) target = $region84
      $region83: #{midblock_forward.5} parent=5 // pred_region
        %s3631 = ssub.s32 %s26, 2
        // Predicated region
        $region85: #{midblock_forward.5} parent=83 // pred_check
          %p3632 = pneg %p263
        $region86: #{midblock_forward.5} parent=83 // pred_check_branch
          %3634 = sbr.rel (%p3632) target = $region88
        $region87: #{midblock_forward.5} parent=83 // pred_region
          %s3635 = sand.u32 %s248, 1
          %s3636 = scalar_lea.sflag [#allocation6], %s3635
          %s3637 = sand.u32 %s248, 1
          %s3638 = smul.addr %s3637, 128
          %s3639 = scalar_lea.vmem [#allocation16], %s3638
          %3640 = dma.done %s3636, 2048
        $region88: #{midblock_forward.5} parent=83 // pred_fallthru
          _
      $region84: #{midblock_forward.5} parent=5 // pred_fallthru
        _
    $region6: #{midblock_forward.5} parent=1 // loop_footer
      %s30 = sadd.s32 1, %s26
    $region7: #{midblock_forward.5} parent=1 // loop_footer_branch
      %25 = sbr.rel target = $region3
    $region8: #{midblock_forward.5} parent=1 // loop_exit
      _
    %3641 = vsyncpa [#allocation5], 1
    %s3642 = scalar_lea.sflag [#allocation5], 1
    %3643 = vsyncpa %s3642, 1
    %3644 = vsyncpa [#allocation8], 1
    %s3645 = scalar_lea.sflag [#allocation8], 1
    %3646 = vsyncpa %s3645, 1
    %3647 = vsyncpa [#allocation11], 1
    %s3648 = scalar_lea.sflag [#allocation11], 1
    %3649 = vsyncpa %s3648, 1
    %3650 = vsyncpa [#allocation14], 1
    %3651 = vsyncpa [#allocation6], 1
    %s3652 = scalar_lea.sflag [#allocation6], 1
    %3653 = vsyncpa %s3652, 1

</llo_original>
